<compile_context>
chip_gen: v7x
topology: tpu7x:2x2x1
jax: 0.10.0
libtpu: 0.0.40
codegen_flags: <defaults>
</compile_context>

<pallas_src>
import functools
import math

import jax
import jax.numpy as jnp
from jax.experimental import pallas as pl
from jax.experimental.pallas import tpu as pltpu

F32 = jnp.float32


# ------------------------------ fused kernel --------------------------------

def fused_forward_kernel(n_vars, order, e_layers, n_heads,
                         tok_ref,
                         emb_w_ref, emb_b_ref,
                         qkv_c_ref, qkv_b_ref, o_c_ref, o_b_ref,
                         w1_ref, b1_ref, w2_ref, b2_ref,
                         ln1_g_ref, ln1_b_ref, ln2_g_ref, ln2_b_ref,
                         normf_g_ref, normf_b_ref,
                         proj_w_ref, proj_b_ref,
                         out_ref):
    bf16 = jnp.bfloat16
    f32 = jnp.float32

    def dot_bf16(a, b):
        # MXU matmul: bf16 operands, f32 accumulation.
        return jnp.dot(a.astype(bf16), b.astype(bf16), preferred_element_type=f32)

    def layer_norm(z, g, b):
        mu = jnp.mean(z, axis=-1, keepdims=True)
        zc = z - mu
        var = jnp.mean(zc * zc, axis=-1, keepdims=True)
        return zc * jax.lax.rsqrt(var + 1e-5) * g + b

    def taylor_kan(z, coeff_ref, layer, bias_eff):
        # y = bias_eff + sum_{k=1}^{order-1} z^k @ C_k   (x^0 term folded into bias_eff)
        acc = bias_eff                       # [1, Dout]; broadcasts on first add
        zp = z
        for k in range(order - 1):
            acc = acc + dot_bf16(zp, coeff_ref[layer, k])
            zp = zp * z
        return acc

    tok = tok_ref[0]                                       # [T, L] one batch element
    T, _ = tok.shape

    # ---- RevIN / non-stationary normalization over the time axis ----
    # Only the first n_vars rows are real variates; time-mark rows pass through.
    mu_all = jnp.mean(tok, axis=-1, keepdims=True)         # [T, 1]
    cen = tok - mu_all
    var_all = jnp.mean(cen * cen, axis=-1, keepdims=True)  # unbiased=False
    std_all = jnp.sqrt(var_all + 1e-5)                     # [T, 1]
    row = jax.lax.broadcasted_iota(jnp.int32, (T, 1), 0)
    is_var = row < n_vars
    xn = jnp.where(is_var, cen * pl.reciprocal(std_all, approx=True), tok)

    # ---- inverted embedding: every variate / time-mark channel is a token ----
    enc = dot_bf16(xn, emb_w_ref[...]) + emb_b_ref[...]    # [T, D]
    D = enc.shape[1]
    H = n_heads
    E = D // H
    scale = 1.0 / math.sqrt(E)
    lane = jax.lax.broadcasted_iota(jnp.int32, (1, D), 1)  # lane (feature) index

    for l in range(e_layers):
        # --- TaylorKAN Q|K|V: one output-stacked GEMM per Taylor power ---
        qkv = taylor_kan(enc, qkv_c_ref, l, qkv_b_ref[l])  # [T, 3D]
        q = qkv[:, 0 * D:1 * D]
        k = qkv[:, 1 * D:2 * D]
        v = qkv[:, 2 * D:3 * D]

        # --- multi-head FullAttention (mask_flag=False), all heads in VMEM ---
        # head h is selected with a lane mask (no reshape/transpose/concat):
        #   (q * mask_h) @ k^T  ==  q_h @ k_h^T
        attn = jnp.zeros((T, D), f32)
        for h in range(H):
            hmask = ((lane >= h * E) & (lane < (h + 1) * E)).astype(f32)   # [1, D]
            s = jax.lax.dot_general((q * hmask).astype(bf16), k.astype(bf16),
                                    (((1,), (1,)), ((), ())),
                                    preferred_element_type=f32) * scale    # [T, T]
            m = jnp.max(s, axis=-1, keepdims=True)
            p = jnp.exp(s - m)
            p = p * pl.reciprocal(jnp.sum(p, axis=-1, keepdims=True), approx=True)
            attn = attn + dot_bf16(p, v) * hmask                           # [T, D]

        # --- TaylorKAN output projection ---
        attn_out = taylor_kan(attn, o_c_ref, l, o_b_ref[l])                # [T, D]

        # --- EncoderLayer: Add&LN1, conv1d(k=1)->relu->conv1d(k=1), Add&LN2 ---
        x1 = layer_norm(enc + attn_out, ln1_g_ref[l], ln1_b_ref[l])
        hid = jnp.maximum(dot_bf16(x1, w1_ref[l]) + b1_ref[l], 0.0)        # relu
        y = dot_bf16(hid, w2_ref[l]) + b2_ref[l]
        enc = layer_norm(x1 + y, ln2_g_ref[l], ln2_b_ref[l])

    # --- encoder final LayerNorm ---
    enc = layer_norm(enc, normf_g_ref[...], normf_b_ref[...])

    # --- projection (nn.Linear(d_model, pred_len), PyTorch [out, in] weight)
    #     applied to the variate tokens only, then RevIN de-normalization.
    #     Produced directly in [N, pred_len] layout (no in-kernel transpose). ---
    dec = jax.lax.dot_general(enc[:n_vars, :].astype(bf16),
                              proj_w_ref[...].astype(bf16),
                              (((1,), (1,)), ((), ())),
                              preferred_element_type=f32) + proj_b_ref[...]  # [N, P]
    out_ref[0] = dec * std_all[:n_vars] + mu_all[:n_vars]


# ------------------------------- forward pass --------------------------------

def ikransformer_forward(params, x_enc, x_mark, *, pred_len, n_heads, order, e_layers):
    B, L, N = x_enc.shape
    M = x_mark.shape[2]
    T = N + M

    # One-time tiny input relayout to token-major [B, T, L]; everything else
    # (RevIN, embedding, encoder, projection, de-norm) happens inside one kernel.
    tok = jnp.concatenate([jnp.transpose(x_enc, (0, 2, 1)),
                           jnp.transpose(x_mark, (0, 2, 1))], axis=1)

    weight_names = ('emb_w', 'emb_b', 'qkv_c', 'qkv_b', 'o_c', 'o_b',
                    'w1', 'b1', 'w2', 'b2',
                    'ln1_g', 'ln1_b', 'ln2_g', 'ln2_b',
                    'normf_g', 'normf_b', 'proj_w', 'proj_b')
    weights = [params[n] for n in weight_names]

    def _full_spec(a):
        nd = a.ndim
        return pl.BlockSpec(a.shape, lambda b: (0,) * nd)   # VMEM-resident weights

    kernel = functools.partial(fused_forward_kernel, N, order, e_layers, n_heads)

    out_nf = pl.pallas_call(
        kernel,
        grid=(B,),
        in_specs=[pl.BlockSpec((1, T, L), lambda b: (b, 0, 0))]
                 + [_full_spec(w) for w in weights],
        out_specs=pl.BlockSpec((1, N, pred_len), lambda b: (b, 0, 0)),
        out_shape=jax.ShapeDtypeStruct((B, N, pred_len), F32),
        compiler_params=pltpu.CompilerParams(dimension_semantics=("parallel",)),
    )(tok, *weights)

    # [B, N, pred_len] -> [B, pred_len, N]  (== projection(...).permute(0,2,1)[:, :, :N])
    return jnp.transpose(out_nf, (0, 2, 1))


# ------------------------------ parameters ----------------------------------

def init_params(key, seq_len, pred_len, d_model, d_ff, e_layers, order):
    keys = jax.random.split(key, 6)

    def nrm(k, shape, scale):
        return jax.random.normal(k, shape, F32) * scale

    # TaylorKAN coefficients (PyTorch layout: [out, in, order], init randn*0.01).
    # Packed here as [e_layers, order-1, in, out] for powers k = 1..order-1 with
    # the k = 0 (constant) term folded into the effective bias:
    #   bias_eff[o] = bias[o] + sum_i C[o, i, 0]
    # Q | K | V coefficient blocks are stacked along the output axis.
    # TODO(synk): when loading real checkpoints, permute [out, in, order] ->
    #             [k, in, out] and apply the same x^0 bias fold.
    qkv_c_raw = nrm(keys[1], (e_layers, order, d_model, 3 * d_model), 0.01)
    o_c_raw = nrm(keys[2], (e_layers, order, d_model, d_model), 0.01)

    return {
        # iTransformer_Embedder: nn.Linear(seq_len, d_model) (weight stored [in, out])
        'emb_w': nrm(keys[0], (seq_len, d_model), 1.0 / math.sqrt(seq_len)),
        'emb_b': jnp.zeros((1, d_model), F32),
        'qkv_c': qkv_c_raw[:, 1:],                                # powers 1..order-1
        'qkv_b': jnp.sum(qkv_c_raw[:, 0], axis=1, keepdims=True),  # folded x^0 + bias(0)
        'o_c': o_c_raw[:, 1:],
        'o_b': jnp.sum(o_c_raw[:, 0], axis=1, keepdims=True),
        # EncoderLayer Conv1d(k=1) pair, feature-last weights
        'w1': nrm(keys[3], (e_layers, d_model, d_ff), 1.0 / math.sqrt(d_model)),
        'b1': jnp.zeros((e_layers, 1, d_ff), F32),
        'w2': nrm(keys[4], (e_layers, d_ff, d_model), 1.0 / math.sqrt(d_ff)),
        'b2': jnp.zeros((e_layers, 1, d_model), F32),
        'ln1_g': jnp.ones((e_layers, 1, d_model), F32),
        'ln1_b': jnp.zeros((e_layers, 1, d_model), F32),
        'ln2_g': jnp.ones((e_layers, 1, d_model), F32),
        'ln2_b': jnp.zeros((e_layers, 1, d_model), F32),
        'normf_g': jnp.ones((1, d_model), F32),
        'normf_b': jnp.zeros((1, d_model), F32),
        # projection: nn.Linear(d_model, pred_len), PyTorch weight layout [out, in]
        'proj_w': nrm(keys[5], (pred_len, d_model), 1.0 / math.sqrt(d_model)),
        'proj_b': jnp.zeros((1, pred_len), F32),
    }


# ---------------------------------- main -------------------------------------

if __name__ == "__main__":
    B, L, N, M = 2, 16, 4, 3          # batch, hist_len, variates, time-mark feats
    pred_len, d_model, n_heads, d_ff, e_layers, order = 8, 32, 4, 64, 2, 3

    key = jax.random.PRNGKey(0)
    k1, k2, k3 = jax.random.split(key, 3)
    var_x = jax.random.normal(k1, (B, L, N), F32)
    marker_x = jax.random.normal(k2, (B, L, M), F32)
    params = init_params(k3, L, pred_len, d_model, d_ff, e_layers, order)

    fwd = jax.jit(functools.partial(ikransformer_forward, pred_len=pred_len,
                                    n_heads=n_heads, order=order, e_layers=e_layers))
    out = fwd(params, var_x, marker_x)
    jax.block_until_ready(out)
    assert out.shape == (B, pred_len, N), out.shape
    print("KERNEL_OK")
</pallas_src>

<mosaic_0001>
module attributes {stable_mosaic.version = 11 : i64} {
  func.func @fused_forward_kernel(%arg0: i32, %arg1: memref<1x7x16xf32, #tpu.memory_space<vmem>>, %arg2: memref<16x32xf32, #tpu.memory_space<vmem>>, %arg3: memref<1x32xf32, #tpu.memory_space<vmem>>, %arg4: memref<2x2x32x96xf32, #tpu.memory_space<vmem>>, %arg5: memref<2x1x96xf32, #tpu.memory_space<vmem>>, %arg6: memref<2x2x32x32xf32, #tpu.memory_space<vmem>>, %arg7: memref<2x1x32xf32, #tpu.memory_space<vmem>>, %arg8: memref<2x32x64xf32, #tpu.memory_space<vmem>>, %arg9: memref<2x1x64xf32, #tpu.memory_space<vmem>>, %arg10: memref<2x64x32xf32, #tpu.memory_space<vmem>>, %arg11: memref<2x1x32xf32, #tpu.memory_space<vmem>>, %arg12: memref<2x1x32xf32, #tpu.memory_space<vmem>>, %arg13: memref<2x1x32xf32, #tpu.memory_space<vmem>>, %arg14: memref<2x1x32xf32, #tpu.memory_space<vmem>>, %arg15: memref<2x1x32xf32, #tpu.memory_space<vmem>>, %arg16: memref<1x32xf32, #tpu.memory_space<vmem>>, %arg17: memref<1x32xf32, #tpu.memory_space<vmem>>, %arg18: memref<8x32xf32, #tpu.memory_space<vmem>>, %arg19: memref<1x8xf32, #tpu.memory_space<vmem>>, %arg20: memref<1x4x8xf32, #tpu.memory_space<vmem>>) attributes {dimension_semantics = [#tpu.dimension_semantics<parallel>], iteration_bounds = array<i64: 2>, scalar_prefetch = 0 : i64, scratch_operands = 0 : i64, tpu.core_type = #tpu.core_type<tc>, window_params = [{transform_indices = @transform_0, window_bounds = array<i64: 1, 7, 16>}, {pipeline_mode = #tpu.pipeline_mode<synchronous>, transform_indices = @transform_1, window_bounds = array<i64: 16, 32>}, {pipeline_mode = #tpu.pipeline_mode<synchronous>, transform_indices = @transform_2, window_bounds = array<i64: 1, 32>}, {pipeline_mode = #tpu.pipeline_mode<synchronous>, transform_indices = @transform_3, window_bounds = array<i64: 2, 2, 32, 96>}, {pipeline_mode = #tpu.pipeline_mode<synchronous>, transform_indices = @transform_4, window_bounds = array<i64: 2, 1, 96>}, {pipeline_mode = #tpu.pipeline_mode<synchronous>, transform_indices = @transform_5, window_bounds = array<i64: 2, 2, 32, 32>}, {pipeline_mode = #tpu.pipeline_mode<synchronous>, transform_indices = @transform_6, window_bounds = array<i64: 2, 1, 32>}, {pipeline_mode = #tpu.pipeline_mode<synchronous>, transform_indices = @transform_7, window_bounds = array<i64: 2, 32, 64>}, {pipeline_mode = #tpu.pipeline_mode<synchronous>, transform_indices = @transform_8, window_bounds = array<i64: 2, 1, 64>}, {pipeline_mode = #tpu.pipeline_mode<synchronous>, transform_indices = @transform_9, window_bounds = array<i64: 2, 64, 32>}, {pipeline_mode = #tpu.pipeline_mode<synchronous>, transform_indices = @transform_10, window_bounds = array<i64: 2, 1, 32>}, {pipeline_mode = #tpu.pipeline_mode<synchronous>, transform_indices = @transform_11, window_bounds = array<i64: 2, 1, 32>}, {pipeline_mode = #tpu.pipeline_mode<synchronous>, transform_indices = @transform_12, window_bounds = array<i64: 2, 1, 32>}, {pipeline_mode = #tpu.pipeline_mode<synchronous>, transform_indices = @transform_13, window_bounds = array<i64: 2, 1, 32>}, {pipeline_mode = #tpu.pipeline_mode<synchronous>, transform_indices = @transform_14, window_bounds = array<i64: 2, 1, 32>}, {pipeline_mode = #tpu.pipeline_mode<synchronous>, transform_indices = @transform_15, window_bounds = array<i64: 1, 32>}, {pipeline_mode = #tpu.pipeline_mode<synchronous>, transform_indices = @transform_16, window_bounds = array<i64: 1, 32>}, {pipeline_mode = #tpu.pipeline_mode<synchronous>, transform_indices = @transform_17, window_bounds = array<i64: 8, 32>}, {pipeline_mode = #tpu.pipeline_mode<synchronous>, transform_indices = @transform_18, window_bounds = array<i64: 1, 8>}, {transform_indices = @transform_19, window_bounds = array<i64: 1, 4, 8>}]} {
    %c0 = arith.constant 0 : index
    %c0_0 = arith.constant 0 : index
    %c0_1 = arith.constant 0 : index
    %0 = vector.load %arg1[%c0, %c0_0, %c0_1] : memref<1x7x16xf32, #tpu.memory_space<vmem>>, vector<1x7x16xf32>
    %1 = vector.shape_cast %0 : vector<1x7x16xf32> to vector<7x16xf32>
    %cst = arith.constant dense<0.000000e+00> : vector<7xf32>
    %2 = vector.multi_reduction <add>, %1, %cst [1] : vector<7x16xf32> to vector<7xf32>
    %3 = vector.shape_cast %2 : vector<7xf32> to vector<7x1xf32>
    %cst_2 = arith.constant 1.600000e+01 : f32
    %4 = vector.broadcast %cst_2 : f32 to vector<7x1xf32>
    %5 = arith.divf %3, %4 : vector<7x1xf32>
    %6 = vector.broadcast %5 : vector<7x1xf32> to vector<7x16xf32>
    %7 = arith.subf %1, %6 : vector<7x16xf32>
    %8 = arith.mulf %7, %7 : vector<7x16xf32>
    %cst_3 = arith.constant dense<0.000000e+00> : vector<7xf32>
    %9 = vector.multi_reduction <add>, %8, %cst_3 [1] : vector<7x16xf32> to vector<7xf32>
    %10 = vector.shape_cast %9 : vector<7xf32> to vector<7x1xf32>
    %cst_4 = arith.constant 1.600000e+01 : f32
    %11 = vector.broadcast %cst_4 : f32 to vector<7x1xf32>
    %12 = arith.divf %10, %11 : vector<7x1xf32>
    %cst_5 = arith.constant 9.99999974E-6 : f32
    %13 = vector.broadcast %cst_5 : f32 to vector<7x1xf32>
    %14 = arith.addf %12, %13 : vector<7x1xf32>
    %15 = math.sqrt %14 : vector<7x1xf32>
    %16 = tpu.iota {dimensions = array<i32: 0>} : vector<7x1xi32>
    %c4_i32 = arith.constant 4 : i32
    %17 = vector.broadcast %c4_i32 : i32 to vector<7x1xi32>
    %18 = arith.cmpi slt, %16, %17 : vector<7x1xi32>
    %19 = tpu.reciprocal %15 {approx = true} : vector<7x1xf32> -> vector<7x1xf32>
    %20 = vector.broadcast %19 : vector<7x1xf32> to vector<7x16xf32>
    %21 = arith.mulf %7, %20 : vector<7x16xf32>
    %22 = vector.shape_cast %18 : vector<7x1xi1> to vector<7x1xi1>
    %23 = vector.broadcast %22 : vector<7x1xi1> to vector<7x16xi1>
    %24 = arith.select %23, %21, %1 : vector<7x16xi1>, vector<7x16xf32>
    %c0_6 = arith.constant 0 : index
    %c0_7 = arith.constant 0 : index
    %25 = vector.load %arg2[%c0_6, %c0_7] : memref<16x32xf32, #tpu.memory_space<vmem>>, vector<16x32xf32>
    %26 = arith.truncf %24 : vector<7x16xf32> to vector<7x16xbf16>
    %27 = arith.truncf %25 : vector<16x32xf32> to vector<16x32xbf16>
    %cst_8 = arith.constant dense<0.000000e+00> : vector<7x32xf32>
    %28 = tpu.matmul %26, %27, %cst_8 {dimension_numbers = #tpu.dot_dimension_numbers<[1], [0], [0], [1], [0, 0, 1, 1], [], []>} : vector<7x16xbf16>, vector<16x32xbf16>, vector<7x32xf32> -> vector<7x32xf32>
    %c0_9 = arith.constant 0 : index
    %c0_10 = arith.constant 0 : index
    %29 = vector.load %arg3[%c0_9, %c0_10] : memref<1x32xf32, #tpu.memory_space<vmem>>, vector<1x32xf32>
    %30 = vector.broadcast %29 : vector<1x32xf32> to vector<7x32xf32>
    %31 = arith.addf %28, %30 : vector<7x32xf32>
    %32 = tpu.iota {dimensions = array<i32: 1>} : vector<1x32xi32>
    %c0_11 = arith.constant 0 : index
    %c0_12 = arith.constant 0 : index
    %c0_13 = arith.constant 0 : index
    %33 = vector.load %arg5[%c0_11, %c0_12, %c0_13] : memref<2x1x96xf32, #tpu.memory_space<vmem>>, vector<1x1x96xf32>
    %34 = vector.shape_cast %33 : vector<1x1x96xf32> to vector<1x96xf32>
    %c0_14 = arith.constant 0 : index
    %c0_15 = arith.constant 0 : index
    %c0_16 = arith.constant 0 : index
    %c0_17 = arith.constant 0 : index
    %35 = vector.load %arg4[%c0_14, %c0_15, %c0_16, %c0_17] : memref<2x2x32x96xf32, #tpu.memory_space<vmem>>, vector<1x1x32x96xf32>
    %36 = vector.shape_cast %35 : vector<1x1x32x96xf32> to vector<32x96xf32>
    %37 = arith.truncf %31 : vector<7x32xf32> to vector<7x32xbf16>
    %38 = arith.truncf %36 : vector<32x96xf32> to vector<32x96xbf16>
    %cst_18 = arith.constant dense<0.000000e+00> : vector<7x96xf32>
    %39 = tpu.matmul %37, %38, %cst_18 {dimension_numbers = #tpu.dot_dimension_numbers<[1], [0], [0], [1], [0, 0, 1, 1], [], []>} : vector<7x32xbf16>, vector<32x96xbf16>, vector<7x96xf32> -> vector<7x96xf32>
    %40 = vector.broadcast %34 : vector<1x96xf32> to vector<7x96xf32>
    %41 = arith.addf %40, %39 : vector<7x96xf32>
    %42 = arith.mulf %31, %31 : vector<7x32xf32>
    %c0_19 = arith.constant 0 : index
    %c1 = arith.constant 1 : index
    %c0_20 = arith.constant 0 : index
    %c0_21 = arith.constant 0 : index
    %43 = vector.load %arg4[%c0_19, %c1, %c0_20, %c0_21] : memref<2x2x32x96xf32, #tpu.memory_space<vmem>>, vector<1x1x32x96xf32>
    %44 = vector.shape_cast %43 : vector<1x1x32x96xf32> to vector<32x96xf32>
    %45 = arith.truncf %42 : vector<7x32xf32> to vector<7x32xbf16>
    %46 = arith.truncf %44 : vector<32x96xf32> to vector<32x96xbf16>
    %cst_22 = arith.constant dense<0.000000e+00> : vector<7x96xf32>
    %47 = tpu.matmul %45, %46, %cst_22 {dimension_numbers = #tpu.dot_dimension_numbers<[1], [0], [0], [1], [0, 0, 1, 1], [], []>} : vector<7x32xbf16>, vector<32x96xbf16>, vector<7x96xf32> -> vector<7x96xf32>
    %48 = arith.addf %41, %47 : vector<7x96xf32>
    %49 = vector.extract_strided_slice %48 {offsets = [0, 0], sizes = [7, 32], strides = [1, 1]} : vector<7x96xf32> to vector<7x32xf32>
    %50 = vector.extract_strided_slice %48 {offsets = [0, 32], sizes = [7, 32], strides = [1, 1]} : vector<7x96xf32> to vector<7x32xf32>
    %51 = vector.extract_strided_slice %48 {offsets = [0, 64], sizes = [7, 32], strides = [1, 1]} : vector<7x96xf32> to vector<7x32xf32>
    %cst_23 = arith.constant 0.000000e+00 : f32
    %52 = vector.broadcast %cst_23 : f32 to vector<7x32xf32>
    %c0_i32 = arith.constant 0 : i32
    %53 = vector.broadcast %c0_i32 : i32 to vector<1x32xi32>
    %54 = arith.cmpi sge, %32, %53 : vector<1x32xi32>
    %c8_i32 = arith.constant 8 : i32
    %55 = vector.broadcast %c8_i32 : i32 to vector<1x32xi32>
    %56 = arith.cmpi slt, %32, %55 : vector<1x32xi32>
    %57 = arith.andi %54, %56 : vector<1x32xi1>
    %58 = arith.extui %57 : vector<1x32xi1> to vector<1x32xi32>
    %59 = arith.sitofp %58 : vector<1x32xi32> to vector<1x32xf32>
    %60 = vector.broadcast %59 : vector<1x32xf32> to vector<7x32xf32>
    %61 = arith.mulf %49, %60 : vector<7x32xf32>
    %62 = arith.truncf %61 : vector<7x32xf32> to vector<7x32xbf16>
    %63 = arith.truncf %50 : vector<7x32xf32> to vector<7x32xbf16>
    %cst_24 = arith.constant dense<0.000000e+00> : vector<7x7xf32>
    %64 = tpu.matmul %62, %63, %cst_24 {dimension_numbers = #tpu.dot_dimension_numbers<[1], [1], [0], [0], [0, 0, 1, 0], [], []>} : vector<7x32xbf16>, vector<7x32xbf16>, vector<7x7xf32> -> vector<7x7xf32>
    %cst_25 = arith.constant 0.353553385 : f32
    %65 = vector.broadcast %cst_25 : f32 to vector<7x7xf32>
    %66 = arith.mulf %64, %65 : vector<7x7xf32>
    %cst_26 = arith.constant dense<0xFF800000> : vector<7xf32>
    %67 = vector.multi_reduction <maximumf>, %66, %cst_26 [1] : vector<7x7xf32> to vector<7xf32>
    %68 = vector.shape_cast %67 : vector<7xf32> to vector<7x1xf32>
    %69 = vector.broadcast %68 : vector<7x1xf32> to vector<7x7xf32>
    %70 = arith.subf %66, %69 : vector<7x7xf32>
    %71 = math.exp %70 : vector<7x7xf32>
    %cst_27 = arith.constant dense<0.000000e+00> : vector<7xf32>
    %72 = vector.multi_reduction <add>, %71, %cst_27 [1] : vector<7x7xf32> to vector<7xf32>
    %73 = vector.shape_cast %72 : vector<7xf32> to vector<7x1xf32>
    %74 = tpu.reciprocal %73 {approx = true} : vector<7x1xf32> -> vector<7x1xf32>
    %75 = vector.broadcast %74 : vector<7x1xf32> to vector<7x7xf32>
    %76 = arith.mulf %71, %75 : vector<7x7xf32>
    %77 = arith.truncf %76 : vector<7x7xf32> to vector<7x7xbf16>
    %78 = arith.truncf %51 : vector<7x32xf32> to vector<7x32xbf16>
    %cst_28 = arith.constant dense<0.000000e+00> : vector<7x32xf32>
    %79 = tpu.matmul %77, %78, %cst_28 {dimension_numbers = #tpu.dot_dimension_numbers<[1], [0], [0], [1], [0, 0, 1, 1], [], []>} : vector<7x7xbf16>, vector<7x32xbf16>, vector<7x32xf32> -> vector<7x32xf32>
    %80 = vector.broadcast %59 : vector<1x32xf32> to vector<7x32xf32>
    %81 = arith.mulf %79, %80 : vector<7x32xf32>
    %82 = arith.addf %52, %81 : vector<7x32xf32>
    %c8_i32_29 = arith.constant 8 : i32
    %83 = vector.broadcast %c8_i32_29 : i32 to vector<1x32xi32>
    %84 = arith.cmpi sge, %32, %83 : vector<1x32xi32>
    %c16_i32 = arith.constant 16 : i32
    %85 = vector.broadcast %c16_i32 : i32 to vector<1x32xi32>
    %86 = arith.cmpi slt, %32, %85 : vector<1x32xi32>
    %87 = arith.andi %84, %86 : vector<1x32xi1>
    %88 = arith.extui %87 : vector<1x32xi1> to vector<1x32xi32>
    %89 = arith.sitofp %88 : vector<1x32xi32> to vector<1x32xf32>
    %90 = vector.broadcast %89 : vector<1x32xf32> to vector<7x32xf32>
    %91 = arith.mulf %49, %90 : vector<7x32xf32>
    %92 = arith.truncf %91 : vector<7x32xf32> to vector<7x32xbf16>
    %93 = arith.truncf %50 : vector<7x32xf32> to vector<7x32xbf16>
    %cst_30 = arith.constant dense<0.000000e+00> : vector<7x7xf32>
    %94 = tpu.matmul %92, %93, %cst_30 {dimension_numbers = #tpu.dot_dimension_numbers<[1], [1], [0], [0], [0, 0, 1, 0], [], []>} : vector<7x32xbf16>, vector<7x32xbf16>, vector<7x7xf32> -> vector<7x7xf32>
    %cst_31 = arith.constant 0.353553385 : f32
    %95 = vector.broadcast %cst_31 : f32 to vector<7x7xf32>
    %96 = arith.mulf %94, %95 : vector<7x7xf32>
    %cst_32 = arith.constant dense<0xFF800000> : vector<7xf32>
    %97 = vector.multi_reduction <maximumf>, %96, %cst_32 [1] : vector<7x7xf32> to vector<7xf32>
    %98 = vector.shape_cast %97 : vector<7xf32> to vector<7x1xf32>
    %99 = vector.broadcast %98 : vector<7x1xf32> to vector<7x7xf32>
    %100 = arith.subf %96, %99 : vector<7x7xf32>
    %101 = math.exp %100 : vector<7x7xf32>
    %cst_33 = arith.constant dense<0.000000e+00> : vector<7xf32>
    %102 = vector.multi_reduction <add>, %101, %cst_33 [1] : vector<7x7xf32> to vector<7xf32>
    %103 = vector.shape_cast %102 : vector<7xf32> to vector<7x1xf32>
    %104 = tpu.reciprocal %103 {approx = true} : vector<7x1xf32> -> vector<7x1xf32>
    %105 = vector.broadcast %104 : vector<7x1xf32> to vector<7x7xf32>
    %106 = arith.mulf %101, %105 : vector<7x7xf32>
    %107 = arith.truncf %106 : vector<7x7xf32> to vector<7x7xbf16>
    %108 = arith.truncf %51 : vector<7x32xf32> to vector<7x32xbf16>
    %cst_34 = arith.constant dense<0.000000e+00> : vector<7x32xf32>
    %109 = tpu.matmul %107, %108, %cst_34 {dimension_numbers = #tpu.dot_dimension_numbers<[1], [0], [0], [1], [0, 0, 1, 1], [], []>} : vector<7x7xbf16>, vector<7x32xbf16>, vector<7x32xf32> -> vector<7x32xf32>
    %110 = vector.broadcast %89 : vector<1x32xf32> to vector<7x32xf32>
    %111 = arith.mulf %109, %110 : vector<7x32xf32>
    %112 = arith.addf %82, %111 : vector<7x32xf32>
    %c16_i32_35 = arith.constant 16 : i32
    %113 = vector.broadcast %c16_i32_35 : i32 to vector<1x32xi32>
    %114 = arith.cmpi sge, %32, %113 : vector<1x32xi32>
    %c24_i32 = arith.constant 24 : i32
    %115 = vector.broadcast %c24_i32 : i32 to vector<1x32xi32>
    %116 = arith.cmpi slt, %32, %115 : vector<1x32xi32>
    %117 = arith.andi %114, %116 : vector<1x32xi1>
    %118 = arith.extui %117 : vector<1x32xi1> to vector<1x32xi32>
    %119 = arith.sitofp %118 : vector<1x32xi32> to vector<1x32xf32>
    %120 = vector.broadcast %119 : vector<1x32xf32> to vector<7x32xf32>
    %121 = arith.mulf %49, %120 : vector<7x32xf32>
    %122 = arith.truncf %121 : vector<7x32xf32> to vector<7x32xbf16>
    %123 = arith.truncf %50 : vector<7x32xf32> to vector<7x32xbf16>
    %cst_36 = arith.constant dense<0.000000e+00> : vector<7x7xf32>
    %124 = tpu.matmul %122, %123, %cst_36 {dimension_numbers = #tpu.dot_dimension_numbers<[1], [1], [0], [0], [0, 0, 1, 0], [], []>} : vector<7x32xbf16>, vector<7x32xbf16>, vector<7x7xf32> -> vector<7x7xf32>
    %cst_37 = arith.constant 0.353553385 : f32
    %125 = vector.broadcast %cst_37 : f32 to vector<7x7xf32>
    %126 = arith.mulf %124, %125 : vector<7x7xf32>
    %cst_38 = arith.constant dense<0xFF800000> : vector<7xf32>
    %127 = vector.multi_reduction <maximumf>, %126, %cst_38 [1] : vector<7x7xf32> to vector<7xf32>
    %128 = vector.shape_cast %127 : vector<7xf32> to vector<7x1xf32>
    %129 = vector.broadcast %128 : vector<7x1xf32> to vector<7x7xf32>
    %130 = arith.subf %126, %129 : vector<7x7xf32>
    %131 = math.exp %130 : vector<7x7xf32>
    %cst_39 = arith.constant dense<0.000000e+00> : vector<7xf32>
    %132 = vector.multi_reduction <add>, %131, %cst_39 [1] : vector<7x7xf32> to vector<7xf32>
    %133 = vector.shape_cast %132 : vector<7xf32> to vector<7x1xf32>
    %134 = tpu.reciprocal %133 {approx = true} : vector<7x1xf32> -> vector<7x1xf32>
    %135 = vector.broadcast %134 : vector<7x1xf32> to vector<7x7xf32>
    %136 = arith.mulf %131, %135 : vector<7x7xf32>
    %137 = arith.truncf %136 : vector<7x7xf32> to vector<7x7xbf16>
    %138 = arith.truncf %51 : vector<7x32xf32> to vector<7x32xbf16>
    %cst_40 = arith.constant dense<0.000000e+00> : vector<7x32xf32>
    %139 = tpu.matmul %137, %138, %cst_40 {dimension_numbers = #tpu.dot_dimension_numbers<[1], [0], [0], [1], [0, 0, 1, 1], [], []>} : vector<7x7xbf16>, vector<7x32xbf16>, vector<7x32xf32> -> vector<7x32xf32>
    %140 = vector.broadcast %119 : vector<1x32xf32> to vector<7x32xf32>
    %141 = arith.mulf %139, %140 : vector<7x32xf32>
    %142 = arith.addf %112, %141 : vector<7x32xf32>
    %c24_i32_41 = arith.constant 24 : i32
    %143 = vector.broadcast %c24_i32_41 : i32 to vector<1x32xi32>
    %144 = arith.cmpi sge, %32, %143 : vector<1x32xi32>
    %c32_i32 = arith.constant 32 : i32
    %145 = vector.broadcast %c32_i32 : i32 to vector<1x32xi32>
    %146 = arith.cmpi slt, %32, %145 : vector<1x32xi32>
    %147 = arith.andi %144, %146 : vector<1x32xi1>
    %148 = arith.extui %147 : vector<1x32xi1> to vector<1x32xi32>
    %149 = arith.sitofp %148 : vector<1x32xi32> to vector<1x32xf32>
    %150 = vector.broadcast %149 : vector<1x32xf32> to vector<7x32xf32>
    %151 = arith.mulf %49, %150 : vector<7x32xf32>
    %152 = arith.truncf %151 : vector<7x32xf32> to vector<7x32xbf16>
    %153 = arith.truncf %50 : vector<7x32xf32> to vector<7x32xbf16>
    %cst_42 = arith.constant dense<0.000000e+00> : vector<7x7xf32>
    %154 = tpu.matmul %152, %153, %cst_42 {dimension_numbers = #tpu.dot_dimension_numbers<[1], [1], [0], [0], [0, 0, 1, 0], [], []>} : vector<7x32xbf16>, vector<7x32xbf16>, vector<7x7xf32> -> vector<7x7xf32>
    %cst_43 = arith.constant 0.353553385 : f32
    %155 = vector.broadcast %cst_43 : f32 to vector<7x7xf32>
    %156 = arith.mulf %154, %155 : vector<7x7xf32>
    %cst_44 = arith.constant dense<0xFF800000> : vector<7xf32>
    %157 = vector.multi_reduction <maximumf>, %156, %cst_44 [1] : vector<7x7xf32> to vector<7xf32>
    %158 = vector.shape_cast %157 : vector<7xf32> to vector<7x1xf32>
    %159 = vector.broadcast %158 : vector<7x1xf32> to vector<7x7xf32>
    %160 = arith.subf %156, %159 : vector<7x7xf32>
    %161 = math.exp %160 : vector<7x7xf32>
    %cst_45 = arith.constant dense<0.000000e+00> : vector<7xf32>
    %162 = vector.multi_reduction <add>, %161, %cst_45 [1] : vector<7x7xf32> to vector<7xf32>
    %163 = vector.shape_cast %162 : vector<7xf32> to vector<7x1xf32>
    %164 = tpu.reciprocal %163 {approx = true} : vector<7x1xf32> -> vector<7x1xf32>
    %165 = vector.broadcast %164 : vector<7x1xf32> to vector<7x7xf32>
    %166 = arith.mulf %161, %165 : vector<7x7xf32>
    %167 = arith.truncf %166 : vector<7x7xf32> to vector<7x7xbf16>
    %168 = arith.truncf %51 : vector<7x32xf32> to vector<7x32xbf16>
    %cst_46 = arith.constant dense<0.000000e+00> : vector<7x32xf32>
    %169 = tpu.matmul %167, %168, %cst_46 {dimension_numbers = #tpu.dot_dimension_numbers<[1], [0], [0], [1], [0, 0, 1, 1], [], []>} : vector<7x7xbf16>, vector<7x32xbf16>, vector<7x32xf32> -> vector<7x32xf32>
    %170 = vector.broadcast %149 : vector<1x32xf32> to vector<7x32xf32>
    %171 = arith.mulf %169, %170 : vector<7x32xf32>
    %172 = arith.addf %142, %171 : vector<7x32xf32>
    %c0_47 = arith.constant 0 : index
    %c0_48 = arith.constant 0 : index
    %c0_49 = arith.constant 0 : index
    %173 = vector.load %arg7[%c0_47, %c0_48, %c0_49] : memref<2x1x32xf32, #tpu.memory_space<vmem>>, vector<1x1x32xf32>
    %174 = vector.shape_cast %173 : vector<1x1x32xf32> to vector<1x32xf32>
    %c0_50 = arith.constant 0 : index
    %c0_51 = arith.constant 0 : index
    %c0_52 = arith.constant 0 : index
    %c0_53 = arith.constant 0 : index
    %175 = vector.load %arg6[%c0_50, %c0_51, %c0_52, %c0_53] : memref<2x2x32x32xf32, #tpu.memory_space<vmem>>, vector<1x1x32x32xf32>
    %176 = vector.shape_cast %175 : vector<1x1x32x32xf32> to vector<32x32xf32>
    %177 = arith.truncf %172 : vector<7x32xf32> to vector<7x32xbf16>
    %178 = arith.truncf %176 : vector<32x32xf32> to vector<32x32xbf16>
    %cst_54 = arith.constant dense<0.000000e+00> : vector<7x32xf32>
    %179 = tpu.matmul %177, %178, %cst_54 {dimension_numbers = #tpu.dot_dimension_numbers<[1], [0], [0], [1], [0, 0, 1, 1], [], []>} : vector<7x32xbf16>, vector<32x32xbf16>, vector<7x32xf32> -> vector<7x32xf32>
    %180 = vector.broadcast %174 : vector<1x32xf32> to vector<7x32xf32>
    %181 = arith.addf %180, %179 : vector<7x32xf32>
    %182 = arith.mulf %172, %172 : vector<7x32xf32>
    %c0_55 = arith.constant 0 : index
    %c1_56 = arith.constant 1 : index
    %c0_57 = arith.constant 0 : index
    %c0_58 = arith.constant 0 : index
    %183 = vector.load %arg6[%c0_55, %c1_56, %c0_57, %c0_58] : memref<2x2x32x32xf32, #tpu.memory_space<vmem>>, vector<1x1x32x32xf32>
    %184 = vector.shape_cast %183 : vector<1x1x32x32xf32> to vector<32x32xf32>
    %185 = arith.truncf %182 : vector<7x32xf32> to vector<7x32xbf16>
    %186 = arith.truncf %184 : vector<32x32xf32> to vector<32x32xbf16>
    %cst_59 = arith.constant dense<0.000000e+00> : vector<7x32xf32>
    %187 = tpu.matmul %185, %186, %cst_59 {dimension_numbers = #tpu.dot_dimension_numbers<[1], [0], [0], [1], [0, 0, 1, 1], [], []>} : vector<7x32xbf16>, vector<32x32xbf16>, vector<7x32xf32> -> vector<7x32xf32>
    %188 = arith.addf %181, %187 : vector<7x32xf32>
    %189 = arith.addf %31, %188 : vector<7x32xf32>
    %c0_60 = arith.constant 0 : index
    %c0_61 = arith.constant 0 : index
    %c0_62 = arith.constant 0 : index
    %190 = vector.load %arg12[%c0_60, %c0_61, %c0_62] : memref<2x1x32xf32, #tpu.memory_space<vmem>>, vector<1x1x32xf32>
    %191 = vector.shape_cast %190 : vector<1x1x32xf32> to vector<1x32xf32>
    %c0_63 = arith.constant 0 : index
    %c0_64 = arith.constant 0 : index
    %c0_65 = arith.constant 0 : index
    %192 = vector.load %arg13[%c0_63, %c0_64, %c0_65] : memref<2x1x32xf32, #tpu.memory_space<vmem>>, vector<1x1x32xf32>
    %193 = vector.shape_cast %192 : vector<1x1x32xf32> to vector<1x32xf32>
    %cst_66 = arith.constant dense<0.000000e+00> : vector<7xf32>
    %194 = vector.multi_reduction <add>, %189, %cst_66 [1] : vector<7x32xf32> to vector<7xf32>
    %195 = vector.shape_cast %194 : vector<7xf32> to vector<7x1xf32>
    %cst_67 = arith.constant 3.200000e+01 : f32
    %196 = vector.broadcast %cst_67 : f32 to vector<7x1xf32>
    %197 = arith.divf %195, %196 : vector<7x1xf32>
    %198 = vector.broadcast %197 : vector<7x1xf32> to vector<7x32xf32>
    %199 = arith.subf %189, %198 : vector<7x32xf32>
    %200 = arith.mulf %199, %199 : vector<7x32xf32>
    %cst_68 = arith.constant dense<0.000000e+00> : vector<7xf32>
    %201 = vector.multi_reduction <add>, %200, %cst_68 [1] : vector<7x32xf32> to vector<7xf32>
    %202 = vector.shape_cast %201 : vector<7xf32> to vector<7x1xf32>
    %cst_69 = arith.constant 3.200000e+01 : f32
    %203 = vector.broadcast %cst_69 : f32 to vector<7x1xf32>
    %204 = arith.divf %202, %203 : vector<7x1xf32>
    %cst_70 = arith.constant 9.99999974E-6 : f32
    %205 = vector.broadcast %cst_70 : f32 to vector<7x1xf32>
    %206 = arith.addf %204, %205 : vector<7x1xf32>
    %207 = math.rsqrt %206 : vector<7x1xf32>
    %208 = vector.broadcast %207 : vector<7x1xf32> to vector<7x32xf32>
    %209 = arith.mulf %199, %208 : vector<7x32xf32>
    %210 = vector.broadcast %191 : vector<1x32xf32> to vector<7x32xf32>
    %211 = arith.mulf %209, %210 : vector<7x32xf32>
    %212 = vector.broadcast %193 : vector<1x32xf32> to vector<7x32xf32>
    %213 = arith.addf %211, %212 : vector<7x32xf32>
    %c0_71 = arith.constant 0 : index
    %c0_72 = arith.constant 0 : index
    %c0_73 = arith.constant 0 : index
    %214 = vector.load %arg8[%c0_71, %c0_72, %c0_73] : memref<2x32x64xf32, #tpu.memory_space<vmem>>, vector<1x32x64xf32>
    %215 = vector.shape_cast %214 : vector<1x32x64xf32> to vector<32x64xf32>
    %216 = arith.truncf %213 : vector<7x32xf32> to vector<7x32xbf16>
    %217 = arith.truncf %215 : vector<32x64xf32> to vector<32x64xbf16>
    %cst_74 = arith.constant dense<0.000000e+00> : vector<7x64xf32>
    %218 = tpu.matmul %216, %217, %cst_74 {dimension_numbers = #tpu.dot_dimension_numbers<[1], [0], [0], [1], [0, 0, 1, 1], [], []>} : vector<7x32xbf16>, vector<32x64xbf16>, vector<7x64xf32> -> vector<7x64xf32>
    %c0_75 = arith.constant 0 : index
    %c0_76 = arith.constant 0 : index
    %c0_77 = arith.constant 0 : index
    %219 = vector.load %arg9[%c0_75, %c0_76, %c0_77] : memref<2x1x64xf32, #tpu.memory_space<vmem>>, vector<1x1x64xf32>
    %220 = vector.shape_cast %219 : vector<1x1x64xf32> to vector<1x64xf32>
    %221 = vector.broadcast %220 : vector<1x64xf32> to vector<7x64xf32>
    %222 = arith.addf %218, %221 : vector<7x64xf32>
    %cst_78 = arith.constant 0.000000e+00 : f32
    %223 = vector.broadcast %cst_78 : f32 to vector<7x64xf32>
    %224 = arith.maximumf %222, %223 : vector<7x64xf32>
    %c0_79 = arith.constant 0 : index
    %c0_80 = arith.constant 0 : index
    %c0_81 = arith.constant 0 : index
    %225 = vector.load %arg10[%c0_79, %c0_80, %c0_81] : memref<2x64x32xf32, #tpu.memory_space<vmem>>, vector<1x64x32xf32>
    %226 = vector.shape_cast %225 : vector<1x64x32xf32> to vector<64x32xf32>
    %227 = arith.truncf %224 : vector<7x64xf32> to vector<7x64xbf16>
    %228 = arith.truncf %226 : vector<64x32xf32> to vector<64x32xbf16>
    %cst_82 = arith.constant dense<0.000000e+00> : vector<7x32xf32>
    %229 = tpu.matmul %227, %228, %cst_82 {dimension_numbers = #tpu.dot_dimension_numbers<[1], [0], [0], [1], [0, 0, 1, 1], [], []>} : vector<7x64xbf16>, vector<64x32xbf16>, vector<7x32xf32> -> vector<7x32xf32>
    %c0_83 = arith.constant 0 : index
    %c0_84 = arith.constant 0 : index
    %c0_85 = arith.constant 0 : index
    %230 = vector.load %arg11[%c0_83, %c0_84, %c0_85] : memref<2x1x32xf32, #tpu.memory_space<vmem>>, vector<1x1x32xf32>
    %231 = vector.shape_cast %230 : vector<1x1x32xf32> to vector<1x32xf32>
    %232 = vector.broadcast %231 : vector<1x32xf32> to vector<7x32xf32>
    %233 = arith.addf %229, %232 : vector<7x32xf32>
    %234 = arith.addf %213, %233 : vector<7x32xf32>
    %c0_86 = arith.constant 0 : index
    %c0_87 = arith.constant 0 : index
    %c0_88 = arith.constant 0 : index
    %235 = vector.load %arg14[%c0_86, %c0_87, %c0_88] : memref<2x1x32xf32, #tpu.memory_space<vmem>>, vector<1x1x32xf32>
    %236 = vector.shape_cast %235 : vector<1x1x32xf32> to vector<1x32xf32>
    %c0_89 = arith.constant 0 : index
    %c0_90 = arith.constant 0 : index
    %c0_91 = arith.constant 0 : index
    %237 = vector.load %arg15[%c0_89, %c0_90, %c0_91] : memref<2x1x32xf32, #tpu.memory_space<vmem>>, vector<1x1x32xf32>
    %238 = vector.shape_cast %237 : vector<1x1x32xf32> to vector<1x32xf32>
    %cst_92 = arith.constant dense<0.000000e+00> : vector<7xf32>
    %239 = vector.multi_reduction <add>, %234, %cst_92 [1] : vector<7x32xf32> to vector<7xf32>
    %240 = vector.shape_cast %239 : vector<7xf32> to vector<7x1xf32>
    %cst_93 = arith.constant 3.200000e+01 : f32
    %241 = vector.broadcast %cst_93 : f32 to vector<7x1xf32>
    %242 = arith.divf %240, %241 : vector<7x1xf32>
    %243 = vector.broadcast %242 : vector<7x1xf32> to vector<7x32xf32>
    %244 = arith.subf %234, %243 : vector<7x32xf32>
    %245 = arith.mulf %244, %244 : vector<7x32xf32>
    %cst_94 = arith.constant dense<0.000000e+00> : vector<7xf32>
    %246 = vector.multi_reduction <add>, %245, %cst_94 [1] : vector<7x32xf32> to vector<7xf32>
    %247 = vector.shape_cast %246 : vector<7xf32> to vector<7x1xf32>
    %cst_95 = arith.constant 3.200000e+01 : f32
    %248 = vector.broadcast %cst_95 : f32 to vector<7x1xf32>
    %249 = arith.divf %247, %248 : vector<7x1xf32>
    %cst_96 = arith.constant 9.99999974E-6 : f32
    %250 = vector.broadcast %cst_96 : f32 to vector<7x1xf32>
    %251 = arith.addf %249, %250 : vector<7x1xf32>
    %252 = math.rsqrt %251 : vector<7x1xf32>
    %253 = vector.broadcast %252 : vector<7x1xf32> to vector<7x32xf32>
    %254 = arith.mulf %244, %253 : vector<7x32xf32>
    %255 = vector.broadcast %236 : vector<1x32xf32> to vector<7x32xf32>
    %256 = arith.mulf %254, %255 : vector<7x32xf32>
    %257 = vector.broadcast %238 : vector<1x32xf32> to vector<7x32xf32>
    %258 = arith.addf %256, %257 : vector<7x32xf32>
    %c1_97 = arith.constant 1 : index
    %c0_98 = arith.constant 0 : index
    %c0_99 = arith.constant 0 : index
    %259 = vector.load %arg5[%c1_97, %c0_98, %c0_99] : memref<2x1x96xf32, #tpu.memory_space<vmem>>, vector<1x1x96xf32>
    %260 = vector.shape_cast %259 : vector<1x1x96xf32> to vector<1x96xf32>
    %c1_100 = arith.constant 1 : index
    %c0_101 = arith.constant 0 : index
    %c0_102 = arith.constant 0 : index
    %c0_103 = arith.constant 0 : index
    %261 = vector.load %arg4[%c1_100, %c0_101, %c0_102, %c0_103] : memref<2x2x32x96xf32, #tpu.memory_space<vmem>>, vector<1x1x32x96xf32>
    %262 = vector.shape_cast %261 : vector<1x1x32x96xf32> to vector<32x96xf32>
    %263 = arith.truncf %258 : vector<7x32xf32> to vector<7x32xbf16>
    %264 = arith.truncf %262 : vector<32x96xf32> to vector<32x96xbf16>
    %cst_104 = arith.constant dense<0.000000e+00> : vector<7x96xf32>
    %265 = tpu.matmul %263, %264, %cst_104 {dimension_numbers = #tpu.dot_dimension_numbers<[1], [0], [0], [1], [0, 0, 1, 1], [], []>} : vector<7x32xbf16>, vector<32x96xbf16>, vector<7x96xf32> -> vector<7x96xf32>
    %266 = vector.broadcast %260 : vector<1x96xf32> to vector<7x96xf32>
    %267 = arith.addf %266, %265 : vector<7x96xf32>
    %268 = arith.mulf %258, %258 : vector<7x32xf32>
    %c1_105 = arith.constant 1 : index
    %c1_106 = arith.constant 1 : index
    %c0_107 = arith.constant 0 : index
    %c0_108 = arith.constant 0 : index
    %269 = vector.load %arg4[%c1_105, %c1_106, %c0_107, %c0_108] : memref<2x2x32x96xf32, #tpu.memory_space<vmem>>, vector<1x1x32x96xf32>
    %270 = vector.shape_cast %269 : vector<1x1x32x96xf32> to vector<32x96xf32>
    %271 = arith.truncf %268 : vector<7x32xf32> to vector<7x32xbf16>
    %272 = arith.truncf %270 : vector<32x96xf32> to vector<32x96xbf16>
    %cst_109 = arith.constant dense<0.000000e+00> : vector<7x96xf32>
    %273 = tpu.matmul %271, %272, %cst_109 {dimension_numbers = #tpu.dot_dimension_numbers<[1], [0], [0], [1], [0, 0, 1, 1], [], []>} : vector<7x32xbf16>, vector<32x96xbf16>, vector<7x96xf32> -> vector<7x96xf32>
    %274 = arith.addf %267, %273 : vector<7x96xf32>
    %275 = vector.extract_strided_slice %274 {offsets = [0, 0], sizes = [7, 32], strides = [1, 1]} : vector<7x96xf32> to vector<7x32xf32>
    %276 = vector.extract_strided_slice %274 {offsets = [0, 32], sizes = [7, 32], strides = [1, 1]} : vector<7x96xf32> to vector<7x32xf32>
    %277 = vector.extract_strided_slice %274 {offsets = [0, 64], sizes = [7, 32], strides = [1, 1]} : vector<7x96xf32> to vector<7x32xf32>
    %cst_110 = arith.constant 0.000000e+00 : f32
    %278 = vector.broadcast %cst_110 : f32 to vector<7x32xf32>
    %c0_i32_111 = arith.constant 0 : i32
    %279 = vector.broadcast %c0_i32_111 : i32 to vector<1x32xi32>
    %280 = arith.cmpi sge, %32, %279 : vector<1x32xi32>
    %c8_i32_112 = arith.constant 8 : i32
    %281 = vector.broadcast %c8_i32_112 : i32 to vector<1x32xi32>
    %282 = arith.cmpi slt, %32, %281 : vector<1x32xi32>
    %283 = arith.andi %280, %282 : vector<1x32xi1>
    %284 = arith.extui %283 : vector<1x32xi1> to vector<1x32xi32>
    %285 = arith.sitofp %284 : vector<1x32xi32> to vector<1x32xf32>
    %286 = vector.broadcast %285 : vector<1x32xf32> to vector<7x32xf32>
    %287 = arith.mulf %275, %286 : vector<7x32xf32>
    %288 = arith.truncf %287 : vector<7x32xf32> to vector<7x32xbf16>
    %289 = arith.truncf %276 : vector<7x32xf32> to vector<7x32xbf16>
    %cst_113 = arith.constant dense<0.000000e+00> : vector<7x7xf32>
    %290 = tpu.matmul %288, %289, %cst_113 {dimension_numbers = #tpu.dot_dimension_numbers<[1], [1], [0], [0], [0, 0, 1, 0], [], []>} : vector<7x32xbf16>, vector<7x32xbf16>, vector<7x7xf32> -> vector<7x7xf32>
    %cst_114 = arith.constant 0.353553385 : f32
    %291 = vector.broadcast %cst_114 : f32 to vector<7x7xf32>
    %292 = arith.mulf %290, %291 : vector<7x7xf32>
    %cst_115 = arith.constant dense<0xFF800000> : vector<7xf32>
    %293 = vector.multi_reduction <maximumf>, %292, %cst_115 [1] : vector<7x7xf32> to vector<7xf32>
    %294 = vector.shape_cast %293 : vector<7xf32> to vector<7x1xf32>
    %295 = vector.broadcast %294 : vector<7x1xf32> to vector<7x7xf32>
    %296 = arith.subf %292, %295 : vector<7x7xf32>
    %297 = math.exp %296 : vector<7x7xf32>
    %cst_116 = arith.constant dense<0.000000e+00> : vector<7xf32>
    %298 = vector.multi_reduction <add>, %297, %cst_116 [1] : vector<7x7xf32> to vector<7xf32>
    %299 = vector.shape_cast %298 : vector<7xf32> to vector<7x1xf32>
    %300 = tpu.reciprocal %299 {approx = true} : vector<7x1xf32> -> vector<7x1xf32>
    %301 = vector.broadcast %300 : vector<7x1xf32> to vector<7x7xf32>
    %302 = arith.mulf %297, %301 : vector<7x7xf32>
    %303 = arith.truncf %302 : vector<7x7xf32> to vector<7x7xbf16>
    %304 = arith.truncf %277 : vector<7x32xf32> to vector<7x32xbf16>
    %cst_117 = arith.constant dense<0.000000e+00> : vector<7x32xf32>
    %305 = tpu.matmul %303, %304, %cst_117 {dimension_numbers = #tpu.dot_dimension_numbers<[1], [0], [0], [1], [0, 0, 1, 1], [], []>} : vector<7x7xbf16>, vector<7x32xbf16>, vector<7x32xf32> -> vector<7x32xf32>
    %306 = vector.broadcast %285 : vector<1x32xf32> to vector<7x32xf32>
    %307 = arith.mulf %305, %306 : vector<7x32xf32>
    %308 = arith.addf %278, %307 : vector<7x32xf32>
    %c8_i32_118 = arith.constant 8 : i32
    %309 = vector.broadcast %c8_i32_118 : i32 to vector<1x32xi32>
    %310 = arith.cmpi sge, %32, %309 : vector<1x32xi32>
    %c16_i32_119 = arith.constant 16 : i32
    %311 = vector.broadcast %c16_i32_119 : i32 to vector<1x32xi32>
    %312 = arith.cmpi slt, %32, %311 : vector<1x32xi32>
    %313 = arith.andi %310, %312 : vector<1x32xi1>
    %314 = arith.extui %313 : vector<1x32xi1> to vector<1x32xi32>
    %315 = arith.sitofp %314 : vector<1x32xi32> to vector<1x32xf32>
    %316 = vector.broadcast %315 : vector<1x32xf32> to vector<7x32xf32>
    %317 = arith.mulf %275, %316 : vector<7x32xf32>
    %318 = arith.truncf %317 : vector<7x32xf32> to vector<7x32xbf16>
    %319 = arith.truncf %276 : vector<7x32xf32> to vector<7x32xbf16>
    %cst_120 = arith.constant dense<0.000000e+00> : vector<7x7xf32>
    %320 = tpu.matmul %318, %319, %cst_120 {dimension_numbers = #tpu.dot_dimension_numbers<[1], [1], [0], [0], [0, 0, 1, 0], [], []>} : vector<7x32xbf16>, vector<7x32xbf16>, vector<7x7xf32> -> vector<7x7xf32>
    %cst_121 = arith.constant 0.353553385 : f32
    %321 = vector.broadcast %cst_121 : f32 to vector<7x7xf32>
    %322 = arith.mulf %320, %321 : vector<7x7xf32>
    %cst_122 = arith.constant dense<0xFF800000> : vector<7xf32>
    %323 = vector.multi_reduction <maximumf>, %322, %cst_122 [1] : vector<7x7xf32> to vector<7xf32>
    %324 = vector.shape_cast %323 : vector<7xf32> to vector<7x1xf32>
    %325 = vector.broadcast %324 : vector<7x1xf32> to vector<7x7xf32>
    %326 = arith.subf %322, %325 : vector<7x7xf32>
    %327 = math.exp %326 : vector<7x7xf32>
    %cst_123 = arith.constant dense<0.000000e+00> : vector<7xf32>
    %328 = vector.multi_reduction <add>, %327, %cst_123 [1] : vector<7x7xf32> to vector<7xf32>
    %329 = vector.shape_cast %328 : vector<7xf32> to vector<7x1xf32>
    %330 = tpu.reciprocal %329 {approx = true} : vector<7x1xf32> -> vector<7x1xf32>
    %331 = vector.broadcast %330 : vector<7x1xf32> to vector<7x7xf32>
    %332 = arith.mulf %327, %331 : vector<7x7xf32>
    %333 = arith.truncf %332 : vector<7x7xf32> to vector<7x7xbf16>
    %334 = arith.truncf %277 : vector<7x32xf32> to vector<7x32xbf16>
    %cst_124 = arith.constant dense<0.000000e+00> : vector<7x32xf32>
    %335 = tpu.matmul %333, %334, %cst_124 {dimension_numbers = #tpu.dot_dimension_numbers<[1], [0], [0], [1], [0, 0, 1, 1], [], []>} : vector<7x7xbf16>, vector<7x32xbf16>, vector<7x32xf32> -> vector<7x32xf32>
    %336 = vector.broadcast %315 : vector<1x32xf32> to vector<7x32xf32>
    %337 = arith.mulf %335, %336 : vector<7x32xf32>
    %338 = arith.addf %308, %337 : vector<7x32xf32>
    %c16_i32_125 = arith.constant 16 : i32
    %339 = vector.broadcast %c16_i32_125 : i32 to vector<1x32xi32>
    %340 = arith.cmpi sge, %32, %339 : vector<1x32xi32>
    %c24_i32_126 = arith.constant 24 : i32
    %341 = vector.broadcast %c24_i32_126 : i32 to vector<1x32xi32>
    %342 = arith.cmpi slt, %32, %341 : vector<1x32xi32>
    %343 = arith.andi %340, %342 : vector<1x32xi1>
    %344 = arith.extui %343 : vector<1x32xi1> to vector<1x32xi32>
    %345 = arith.sitofp %344 : vector<1x32xi32> to vector<1x32xf32>
    %346 = vector.broadcast %345 : vector<1x32xf32> to vector<7x32xf32>
    %347 = arith.mulf %275, %346 : vector<7x32xf32>
    %348 = arith.truncf %347 : vector<7x32xf32> to vector<7x32xbf16>
    %349 = arith.truncf %276 : vector<7x32xf32> to vector<7x32xbf16>
    %cst_127 = arith.constant dense<0.000000e+00> : vector<7x7xf32>
    %350 = tpu.matmul %348, %349, %cst_127 {dimension_numbers = #tpu.dot_dimension_numbers<[1], [1], [0], [0], [0, 0, 1, 0], [], []>} : vector<7x32xbf16>, vector<7x32xbf16>, vector<7x7xf32> -> vector<7x7xf32>
    %cst_128 = arith.constant 0.353553385 : f32
    %351 = vector.broadcast %cst_128 : f32 to vector<7x7xf32>
    %352 = arith.mulf %350, %351 : vector<7x7xf32>
    %cst_129 = arith.constant dense<0xFF800000> : vector<7xf32>
    %353 = vector.multi_reduction <maximumf>, %352, %cst_129 [1] : vector<7x7xf32> to vector<7xf32>
    %354 = vector.shape_cast %353 : vector<7xf32> to vector<7x1xf32>
    %355 = vector.broadcast %354 : vector<7x1xf32> to vector<7x7xf32>
    %356 = arith.subf %352, %355 : vector<7x7xf32>
    %357 = math.exp %356 : vector<7x7xf32>
    %cst_130 = arith.constant dense<0.000000e+00> : vector<7xf32>
    %358 = vector.multi_reduction <add>, %357, %cst_130 [1] : vector<7x7xf32> to vector<7xf32>
    %359 = vector.shape_cast %358 : vector<7xf32> to vector<7x1xf32>
    %360 = tpu.reciprocal %359 {approx = true} : vector<7x1xf32> -> vector<7x1xf32>
    %361 = vector.broadcast %360 : vector<7x1xf32> to vector<7x7xf32>
    %362 = arith.mulf %357, %361 : vector<7x7xf32>
    %363 = arith.truncf %362 : vector<7x7xf32> to vector<7x7xbf16>
    %364 = arith.truncf %277 : vector<7x32xf32> to vector<7x32xbf16>
    %cst_131 = arith.constant dense<0.000000e+00> : vector<7x32xf32>
    %365 = tpu.matmul %363, %364, %cst_131 {dimension_numbers = #tpu.dot_dimension_numbers<[1], [0], [0], [1], [0, 0, 1, 1], [], []>} : vector<7x7xbf16>, vector<7x32xbf16>, vector<7x32xf32> -> vector<7x32xf32>
    %366 = vector.broadcast %345 : vector<1x32xf32> to vector<7x32xf32>
    %367 = arith.mulf %365, %366 : vector<7x32xf32>
    %368 = arith.addf %338, %367 : vector<7x32xf32>
    %c24_i32_132 = arith.constant 24 : i32
    %369 = vector.broadcast %c24_i32_132 : i32 to vector<1x32xi32>
    %370 = arith.cmpi sge, %32, %369 : vector<1x32xi32>
    %c32_i32_133 = arith.constant 32 : i32
    %371 = vector.broadcast %c32_i32_133 : i32 to vector<1x32xi32>
    %372 = arith.cmpi slt, %32, %371 : vector<1x32xi32>
    %373 = arith.andi %370, %372 : vector<1x32xi1>
    %374 = arith.extui %373 : vector<1x32xi1> to vector<1x32xi32>
    %375 = arith.sitofp %374 : vector<1x32xi32> to vector<1x32xf32>
    %376 = vector.broadcast %375 : vector<1x32xf32> to vector<7x32xf32>
    %377 = arith.mulf %275, %376 : vector<7x32xf32>
    %378 = arith.truncf %377 : vector<7x32xf32> to vector<7x32xbf16>
    %379 = arith.truncf %276 : vector<7x32xf32> to vector<7x32xbf16>
    %cst_134 = arith.constant dense<0.000000e+00> : vector<7x7xf32>
    %380 = tpu.matmul %378, %379, %cst_134 {dimension_numbers = #tpu.dot_dimension_numbers<[1], [1], [0], [0], [0, 0, 1, 0], [], []>} : vector<7x32xbf16>, vector<7x32xbf16>, vector<7x7xf32> -> vector<7x7xf32>
    %cst_135 = arith.constant 0.353553385 : f32
    %381 = vector.broadcast %cst_135 : f32 to vector<7x7xf32>
    %382 = arith.mulf %380, %381 : vector<7x7xf32>
    %cst_136 = arith.constant dense<0xFF800000> : vector<7xf32>
    %383 = vector.multi_reduction <maximumf>, %382, %cst_136 [1] : vector<7x7xf32> to vector<7xf32>
    %384 = vector.shape_cast %383 : vector<7xf32> to vector<7x1xf32>
    %385 = vector.broadcast %384 : vector<7x1xf32> to vector<7x7xf32>
    %386 = arith.subf %382, %385 : vector<7x7xf32>
    %387 = math.exp %386 : vector<7x7xf32>
    %cst_137 = arith.constant dense<0.000000e+00> : vector<7xf32>
    %388 = vector.multi_reduction <add>, %387, %cst_137 [1] : vector<7x7xf32> to vector<7xf32>
    %389 = vector.shape_cast %388 : vector<7xf32> to vector<7x1xf32>
    %390 = tpu.reciprocal %389 {approx = true} : vector<7x1xf32> -> vector<7x1xf32>
    %391 = vector.broadcast %390 : vector<7x1xf32> to vector<7x7xf32>
    %392 = arith.mulf %387, %391 : vector<7x7xf32>
    %393 = arith.truncf %392 : vector<7x7xf32> to vector<7x7xbf16>
    %394 = arith.truncf %277 : vector<7x32xf32> to vector<7x32xbf16>
    %cst_138 = arith.constant dense<0.000000e+00> : vector<7x32xf32>
    %395 = tpu.matmul %393, %394, %cst_138 {dimension_numbers = #tpu.dot_dimension_numbers<[1], [0], [0], [1], [0, 0, 1, 1], [], []>} : vector<7x7xbf16>, vector<7x32xbf16>, vector<7x32xf32> -> vector<7x32xf32>
    %396 = vector.broadcast %375 : vector<1x32xf32> to vector<7x32xf32>
    %397 = arith.mulf %395, %396 : vector<7x32xf32>
    %398 = arith.addf %368, %397 : vector<7x32xf32>
    %c1_139 = arith.constant 1 : index
    %c0_140 = arith.constant 0 : index
    %c0_141 = arith.constant 0 : index
    %399 = vector.load %arg7[%c1_139, %c0_140, %c0_141] : memref<2x1x32xf32, #tpu.memory_space<vmem>>, vector<1x1x32xf32>
    %400 = vector.shape_cast %399 : vector<1x1x32xf32> to vector<1x32xf32>
    %c1_142 = arith.constant 1 : index
    %c0_143 = arith.constant 0 : index
    %c0_144 = arith.constant 0 : index
    %c0_145 = arith.constant 0 : index
    %401 = vector.load %arg6[%c1_142, %c0_143, %c0_144, %c0_145] : memref<2x2x32x32xf32, #tpu.memory_space<vmem>>, vector<1x1x32x32xf32>
    %402 = vector.shape_cast %401 : vector<1x1x32x32xf32> to vector<32x32xf32>
    %403 = arith.truncf %398 : vector<7x32xf32> to vector<7x32xbf16>
    %404 = arith.truncf %402 : vector<32x32xf32> to vector<32x32xbf16>
    %cst_146 = arith.constant dense<0.000000e+00> : vector<7x32xf32>
    %405 = tpu.matmul %403, %404, %cst_146 {dimension_numbers = #tpu.dot_dimension_numbers<[1], [0], [0], [1], [0, 0, 1, 1], [], []>} : vector<7x32xbf16>, vector<32x32xbf16>, vector<7x32xf32> -> vector<7x32xf32>
    %406 = vector.broadcast %400 : vector<1x32xf32> to vector<7x32xf32>
    %407 = arith.addf %406, %405 : vector<7x32xf32>
    %408 = arith.mulf %398, %398 : vector<7x32xf32>
    %c1_147 = arith.constant 1 : index
    %c1_148 = arith.constant 1 : index
    %c0_149 = arith.constant 0 : index
    %c0_150 = arith.constant 0 : index
    %409 = vector.load %arg6[%c1_147, %c1_148, %c0_149, %c0_150] : memref<2x2x32x32xf32, #tpu.memory_space<vmem>>, vector<1x1x32x32xf32>
    %410 = vector.shape_cast %409 : vector<1x1x32x32xf32> to vector<32x32xf32>
    %411 = arith.truncf %408 : vector<7x32xf32> to vector<7x32xbf16>
    %412 = arith.truncf %410 : vector<32x32xf32> to vector<32x32xbf16>
    %cst_151 = arith.constant dense<0.000000e+00> : vector<7x32xf32>
    %413 = tpu.matmul %411, %412, %cst_151 {dimension_numbers = #tpu.dot_dimension_numbers<[1], [0], [0], [1], [0, 0, 1, 1], [], []>} : vector<7x32xbf16>, vector<32x32xbf16>, vector<7x32xf32> -> vector<7x32xf32>
    %414 = arith.addf %407, %413 : vector<7x32xf32>
    %415 = arith.addf %258, %414 : vector<7x32xf32>
    %c1_152 = arith.constant 1 : index
    %c0_153 = arith.constant 0 : index
    %c0_154 = arith.constant 0 : index
    %416 = vector.load %arg12[%c1_152, %c0_153, %c0_154] : memref<2x1x32xf32, #tpu.memory_space<vmem>>, vector<1x1x32xf32>
    %417 = vector.shape_cast %416 : vector<1x1x32xf32> to vector<1x32xf32>
    %c1_155 = arith.constant 1 : index
    %c0_156 = arith.constant 0 : index
    %c0_157 = arith.constant 0 : index
    %418 = vector.load %arg13[%c1_155, %c0_156, %c0_157] : memref<2x1x32xf32, #tpu.memory_space<vmem>>, vector<1x1x32xf32>
    %419 = vector.shape_cast %418 : vector<1x1x32xf32> to vector<1x32xf32>
    %cst_158 = arith.constant dense<0.000000e+00> : vector<7xf32>
    %420 = vector.multi_reduction <add>, %415, %cst_158 [1] : vector<7x32xf32> to vector<7xf32>
    %421 = vector.shape_cast %420 : vector<7xf32> to vector<7x1xf32>
    %cst_159 = arith.constant 3.200000e+01 : f32
    %422 = vector.broadcast %cst_159 : f32 to vector<7x1xf32>
    %423 = arith.divf %421, %422 : vector<7x1xf32>
    %424 = vector.broadcast %423 : vector<7x1xf32> to vector<7x32xf32>
    %425 = arith.subf %415, %424 : vector<7x32xf32>
    %426 = arith.mulf %425, %425 : vector<7x32xf32>
    %cst_160 = arith.constant dense<0.000000e+00> : vector<7xf32>
    %427 = vector.multi_reduction <add>, %426, %cst_160 [1] : vector<7x32xf32> to vector<7xf32>
    %428 = vector.shape_cast %427 : vector<7xf32> to vector<7x1xf32>
    %cst_161 = arith.constant 3.200000e+01 : f32
    %429 = vector.broadcast %cst_161 : f32 to vector<7x1xf32>
    %430 = arith.divf %428, %429 : vector<7x1xf32>
    %cst_162 = arith.constant 9.99999974E-6 : f32
    %431 = vector.broadcast %cst_162 : f32 to vector<7x1xf32>
    %432 = arith.addf %430, %431 : vector<7x1xf32>
    %433 = math.rsqrt %432 : vector<7x1xf32>
    %434 = vector.broadcast %433 : vector<7x1xf32> to vector<7x32xf32>
    %435 = arith.mulf %425, %434 : vector<7x32xf32>
    %436 = vector.broadcast %417 : vector<1x32xf32> to vector<7x32xf32>
    %437 = arith.mulf %435, %436 : vector<7x32xf32>
    %438 = vector.broadcast %419 : vector<1x32xf32> to vector<7x32xf32>
    %439 = arith.addf %437, %438 : vector<7x32xf32>
    %c1_163 = arith.constant 1 : index
    %c0_164 = arith.constant 0 : index
    %c0_165 = arith.constant 0 : index
    %440 = vector.load %arg8[%c1_163, %c0_164, %c0_165] : memref<2x32x64xf32, #tpu.memory_space<vmem>>, vector<1x32x64xf32>
    %441 = vector.shape_cast %440 : vector<1x32x64xf32> to vector<32x64xf32>
    %442 = arith.truncf %439 : vector<7x32xf32> to vector<7x32xbf16>
    %443 = arith.truncf %441 : vector<32x64xf32> to vector<32x64xbf16>
    %cst_166 = arith.constant dense<0.000000e+00> : vector<7x64xf32>
    %444 = tpu.matmul %442, %443, %cst_166 {dimension_numbers = #tpu.dot_dimension_numbers<[1], [0], [0], [1], [0, 0, 1, 1], [], []>} : vector<7x32xbf16>, vector<32x64xbf16>, vector<7x64xf32> -> vector<7x64xf32>
    %c1_167 = arith.constant 1 : index
    %c0_168 = arith.constant 0 : index
    %c0_169 = arith.constant 0 : index
    %445 = vector.load %arg9[%c1_167, %c0_168, %c0_169] : memref<2x1x64xf32, #tpu.memory_space<vmem>>, vector<1x1x64xf32>
    %446 = vector.shape_cast %445 : vector<1x1x64xf32> to vector<1x64xf32>
    %447 = vector.broadcast %446 : vector<1x64xf32> to vector<7x64xf32>
    %448 = arith.addf %444, %447 : vector<7x64xf32>
    %cst_170 = arith.constant 0.000000e+00 : f32
    %449 = vector.broadcast %cst_170 : f32 to vector<7x64xf32>
    %450 = arith.maximumf %448, %449 : vector<7x64xf32>
    %c1_171 = arith.constant 1 : index
    %c0_172 = arith.constant 0 : index
    %c0_173 = arith.constant 0 : index
    %451 = vector.load %arg10[%c1_171, %c0_172, %c0_173] : memref<2x64x32xf32, #tpu.memory_space<vmem>>, vector<1x64x32xf32>
    %452 = vector.shape_cast %451 : vector<1x64x32xf32> to vector<64x32xf32>
    %453 = arith.truncf %450 : vector<7x64xf32> to vector<7x64xbf16>
    %454 = arith.truncf %452 : vector<64x32xf32> to vector<64x32xbf16>
    %cst_174 = arith.constant dense<0.000000e+00> : vector<7x32xf32>
    %455 = tpu.matmul %453, %454, %cst_174 {dimension_numbers = #tpu.dot_dimension_numbers<[1], [0], [0], [1], [0, 0, 1, 1], [], []>} : vector<7x64xbf16>, vector<64x32xbf16>, vector<7x32xf32> -> vector<7x32xf32>
    %c1_175 = arith.constant 1 : index
    %c0_176 = arith.constant 0 : index
    %c0_177 = arith.constant 0 : index
    %456 = vector.load %arg11[%c1_175, %c0_176, %c0_177] : memref<2x1x32xf32, #tpu.memory_space<vmem>>, vector<1x1x32xf32>
    %457 = vector.shape_cast %456 : vector<1x1x32xf32> to vector<1x32xf32>
    %458 = vector.broadcast %457 : vector<1x32xf32> to vector<7x32xf32>
    %459 = arith.addf %455, %458 : vector<7x32xf32>
    %460 = arith.addf %439, %459 : vector<7x32xf32>
    %c1_178 = arith.constant 1 : index
    %c0_179 = arith.constant 0 : index
    %c0_180 = arith.constant 0 : index
    %461 = vector.load %arg14[%c1_178, %c0_179, %c0_180] : memref<2x1x32xf32, #tpu.memory_space<vmem>>, vector<1x1x32xf32>
    %462 = vector.shape_cast %461 : vector<1x1x32xf32> to vector<1x32xf32>
    %c1_181 = arith.constant 1 : index
    %c0_182 = arith.constant 0 : index
    %c0_183 = arith.constant 0 : index
    %463 = vector.load %arg15[%c1_181, %c0_182, %c0_183] : memref<2x1x32xf32, #tpu.memory_space<vmem>>, vector<1x1x32xf32>
    %464 = vector.shape_cast %463 : vector<1x1x32xf32> to vector<1x32xf32>
    %cst_184 = arith.constant dense<0.000000e+00> : vector<7xf32>
    %465 = vector.multi_reduction <add>, %460, %cst_184 [1] : vector<7x32xf32> to vector<7xf32>
    %466 = vector.shape_cast %465 : vector<7xf32> to vector<7x1xf32>
    %cst_185 = arith.constant 3.200000e+01 : f32
    %467 = vector.broadcast %cst_185 : f32 to vector<7x1xf32>
    %468 = arith.divf %466, %467 : vector<7x1xf32>
    %469 = vector.broadcast %468 : vector<7x1xf32> to vector<7x32xf32>
    %470 = arith.subf %460, %469 : vector<7x32xf32>
    %471 = arith.mulf %470, %470 : vector<7x32xf32>
    %cst_186 = arith.constant dense<0.000000e+00> : vector<7xf32>
    %472 = vector.multi_reduction <add>, %471, %cst_186 [1] : vector<7x32xf32> to vector<7xf32>
    %473 = vector.shape_cast %472 : vector<7xf32> to vector<7x1xf32>
    %cst_187 = arith.constant 3.200000e+01 : f32
    %474 = vector.broadcast %cst_187 : f32 to vector<7x1xf32>
    %475 = arith.divf %473, %474 : vector<7x1xf32>
    %cst_188 = arith.constant 9.99999974E-6 : f32
    %476 = vector.broadcast %cst_188 : f32 to vector<7x1xf32>
    %477 = arith.addf %475, %476 : vector<7x1xf32>
    %478 = math.rsqrt %477 : vector<7x1xf32>
    %479 = vector.broadcast %478 : vector<7x1xf32> to vector<7x32xf32>
    %480 = arith.mulf %470, %479 : vector<7x32xf32>
    %481 = vector.broadcast %462 : vector<1x32xf32> to vector<7x32xf32>
    %482 = arith.mulf %480, %481 : vector<7x32xf32>
    %483 = vector.broadcast %464 : vector<1x32xf32> to vector<7x32xf32>
    %484 = arith.addf %482, %483 : vector<7x32xf32>
    %c0_189 = arith.constant 0 : index
    %c0_190 = arith.constant 0 : index
    %485 = vector.load %arg16[%c0_189, %c0_190] : memref<1x32xf32, #tpu.memory_space<vmem>>, vector<1x32xf32>
    %c0_191 = arith.constant 0 : index
    %c0_192 = arith.constant 0 : index
    %486 = vector.load %arg17[%c0_191, %c0_192] : memref<1x32xf32, #tpu.memory_space<vmem>>, vector<1x32xf32>
    %cst_193 = arith.constant dense<0.000000e+00> : vector<7xf32>
    %487 = vector.multi_reduction <add>, %484, %cst_193 [1] : vector<7x32xf32> to vector<7xf32>
    %488 = vector.shape_cast %487 : vector<7xf32> to vector<7x1xf32>
    %cst_194 = arith.constant 3.200000e+01 : f32
    %489 = vector.broadcast %cst_194 : f32 to vector<7x1xf32>
    %490 = arith.divf %488, %489 : vector<7x1xf32>
    %491 = vector.broadcast %490 : vector<7x1xf32> to vector<7x32xf32>
    %492 = arith.subf %484, %491 : vector<7x32xf32>
    %493 = arith.mulf %492, %492 : vector<7x32xf32>
    %cst_195 = arith.constant dense<0.000000e+00> : vector<7xf32>
    %494 = vector.multi_reduction <add>, %493, %cst_195 [1] : vector<7x32xf32> to vector<7xf32>
    %495 = vector.shape_cast %494 : vector<7xf32> to vector<7x1xf32>
    %cst_196 = arith.constant 3.200000e+01 : f32
    %496 = vector.broadcast %cst_196 : f32 to vector<7x1xf32>
    %497 = arith.divf %495, %496 : vector<7x1xf32>
    %cst_197 = arith.constant 9.99999974E-6 : f32
    %498 = vector.broadcast %cst_197 : f32 to vector<7x1xf32>
    %499 = arith.addf %497, %498 : vector<7x1xf32>
    %500 = math.rsqrt %499 : vector<7x1xf32>
    %501 = vector.broadcast %500 : vector<7x1xf32> to vector<7x32xf32>
    %502 = arith.mulf %492, %501 : vector<7x32xf32>
    %503 = vector.broadcast %485 : vector<1x32xf32> to vector<7x32xf32>
    %504 = arith.mulf %502, %503 : vector<7x32xf32>
    %505 = vector.broadcast %486 : vector<1x32xf32> to vector<7x32xf32>
    %506 = arith.addf %504, %505 : vector<7x32xf32>
    %507 = vector.extract_strided_slice %506 {offsets = [0, 0], sizes = [4, 32], strides = [1, 1]} : vector<7x32xf32> to vector<4x32xf32>
    %508 = arith.truncf %507 : vector<4x32xf32> to vector<4x32xbf16>
    %c0_198 = arith.constant 0 : index
    %c0_199 = arith.constant 0 : index
    %509 = vector.load %arg18[%c0_198, %c0_199] : memref<8x32xf32, #tpu.memory_space<vmem>>, vector<8x32xf32>
    %510 = arith.truncf %509 : vector<8x32xf32> to vector<8x32xbf16>
    %cst_200 = arith.constant dense<0.000000e+00> : vector<4x8xf32>
    %511 = tpu.matmul %508, %510, %cst_200 {dimension_numbers = #tpu.dot_dimension_numbers<[1], [1], [0], [0], [0, 0, 1, 0], [], []>} : vector<4x32xbf16>, vector<8x32xbf16>, vector<4x8xf32> -> vector<4x8xf32>
    %c0_201 = arith.constant 0 : index
    %c0_202 = arith.constant 0 : index
    %512 = vector.load %arg19[%c0_201, %c0_202] : memref<1x8xf32, #tpu.memory_space<vmem>>, vector<1x8xf32>
    %513 = vector.broadcast %512 : vector<1x8xf32> to vector<4x8xf32>
    %514 = arith.addf %511, %513 : vector<4x8xf32>
    %515 = vector.extract_strided_slice %15 {offsets = [0, 0], sizes = [4, 1], strides = [1, 1]} : vector<7x1xf32> to vector<4x1xf32>
    %516 = vector.broadcast %515 : vector<4x1xf32> to vector<4x8xf32>
    %517 = arith.mulf %514, %516 : vector<4x8xf32>
    %518 = vector.extract_strided_slice %5 {offsets = [0, 0], sizes = [4, 1], strides = [1, 1]} : vector<7x1xf32> to vector<4x1xf32>
    %519 = vector.broadcast %518 : vector<4x1xf32> to vector<4x8xf32>
    %520 = arith.addf %517, %519 : vector<4x8xf32>
    %c0_203 = arith.constant 0 : index
    %c0_204 = arith.constant 0 : index
    %c0_205 = arith.constant 0 : index
    %521 = vector.load %arg20[%c0_203, %c0_204, %c0_205] : memref<1x4x8xf32, #tpu.memory_space<vmem>>, vector<1x4x8xf32>
    %522 = vector.shape_cast %521 : vector<1x4x8xf32> to vector<4x8xf32>
    %523 = vector.shape_cast %520 : vector<4x8xf32> to vector<1x4x8xf32>
    tpu.vector_store %arg20[%c0_203, %c0_204, %c0_205], %523 {strides = array<i32>} : memref<1x4x8xf32, #tpu.memory_space<vmem>>, vector<1x4x8xf32>,
    return
  }
  func.func @transform_0(%arg0: i32) -> (i32, i32, i32) {
    %c0_i32 = arith.constant 0 : i32
    %c0_i32_0 = arith.constant 0 : i32
    %c0_i32_1 = arith.constant 0 : i32
    return %arg0, %c0_i32, %c0_i32_0 : i32, i32, i32
  }
  func.func @transform_1(%arg0: i32) -> (i32, i32) {
    %c0_i32 = arith.constant 0 : i32
    %c0_i32_0 = arith.constant 0 : i32
    %c0_i32_1 = arith.constant 0 : i32
    return %c0_i32, %c0_i32_0 : i32, i32
  }
  func.func @transform_2(%arg0: i32) -> (i32, i32) {
    %c0_i32 = arith.constant 0 : i32
    %c0_i32_0 = arith.constant 0 : i32
    %c0_i32_1 = arith.constant 0 : i32
    return %c0_i32, %c0_i32_0 : i32, i32
  }
  func.func @transform_3(%arg0: i32) -> (i32, i32, i32, i32) {
    %c0_i32 = arith.constant 0 : i32
    %c0_i32_0 = arith.constant 0 : i32
    %c0_i32_1 = arith.constant 0 : i32
    %c0_i32_2 = arith.constant 0 : i32
    %c0_i32_3 = arith.constant 0 : i32
    return %c0_i32, %c0_i32_0, %c0_i32_1, %c0_i32_2 : i32, i32, i32, i32
  }
  func.func @transform_4(%arg0: i32) -> (i32, i32, i32) {
    %c0_i32 = arith.constant 0 : i32
    %c0_i32_0 = arith.constant 0 : i32
    %c0_i32_1 = arith.constant 0 : i32
    %c0_i32_2 = arith.constant 0 : i32
    return %c0_i32, %c0_i32_0, %c0_i32_1 : i32, i32, i32
  }
  func.func @transform_5(%arg0: i32) -> (i32, i32, i32, i32) {
    %c0_i32 = arith.constant 0 : i32
    %c0_i32_0 = arith.constant 0 : i32
    %c0_i32_1 = arith.constant 0 : i32
    %c0_i32_2 = arith.constant 0 : i32
    %c0_i32_3 = arith.constant 0 : i32
    return %c0_i32, %c0_i32_0, %c0_i32_1, %c0_i32_2 : i32, i32, i32, i32
  }
  func.func @transform_6(%arg0: i32) -> (i32, i32, i32) {
    %c0_i32 = arith.constant 0 : i32
    %c0_i32_0 = arith.constant 0 : i32
    %c0_i32_1 = arith.constant 0 : i32
    %c0_i32_2 = arith.constant 0 : i32
    return %c0_i32, %c0_i32_0, %c0_i32_1 : i32, i32, i32
  }
  func.func @transform_7(%arg0: i32) -> (i32, i32, i32) {
    %c0_i32 = arith.constant 0 : i32
    %c0_i32_0 = arith.constant 0 : i32
    %c0_i32_1 = arith.constant 0 : i32
    %c0_i32_2 = arith.constant 0 : i32
    return %c0_i32, %c0_i32_0, %c0_i32_1 : i32, i32, i32
  }
  func.func @transform_8(%arg0: i32) -> (i32, i32, i32) {
    %c0_i32 = arith.constant 0 : i32
    %c0_i32_0 = arith.constant 0 : i32
    %c0_i32_1 = arith.constant 0 : i32
    %c0_i32_2 = arith.constant 0 : i32
    return %c0_i32, %c0_i32_0, %c0_i32_1 : i32, i32, i32
  }
  func.func @transform_9(%arg0: i32) -> (i32, i32, i32) {
    %c0_i32 = arith.constant 0 : i32
    %c0_i32_0 = arith.constant 0 : i32
    %c0_i32_1 = arith.constant 0 : i32
    %c0_i32_2 = arith.constant 0 : i32
    return %c0_i32, %c0_i32_0, %c0_i32_1 : i32, i32, i32
  }
  func.func @transform_10(%arg0: i32) -> (i32, i32, i32) {
    %c0_i32 = arith.constant 0 : i32
    %c0_i32_0 = arith.constant 0 : i32
    %c0_i32_1 = arith.constant 0 : i32
    %c0_i32_2 = arith.constant 0 : i32
    return %c0_i32, %c0_i32_0, %c0_i32_1 : i32, i32, i32
  }
  func.func @transform_11(%arg0: i32) -> (i32, i32, i32) {
    %c0_i32 = arith.constant 0 : i32
    %c0_i32_0 = arith.constant 0 : i32
    %c0_i32_1 = arith.constant 0 : i32
    %c0_i32_2 = arith.constant 0 : i32
    return %c0_i32, %c0_i32_0, %c0_i32_1 : i32, i32, i32
  }
  func.func @transform_12(%arg0: i32) -> (i32, i32, i32) {
    %c0_i32 = arith.constant 0 : i32
    %c0_i32_0 = arith.constant 0 : i32
    %c0_i32_1 = arith.constant 0 : i32
    %c0_i32_2 = arith.constant 0 : i32
    return %c0_i32, %c0_i32_0, %c0_i32_1 : i32, i32, i32
  }
  func.func @transform_13(%arg0: i32) -> (i32, i32, i32) {
    %c0_i32 = arith.constant 0 : i32
    %c0_i32_0 = arith.constant 0 : i32
    %c0_i32_1 = arith.constant 0 : i32
    %c0_i32_2 = arith.constant 0 : i32
    return %c0_i32, %c0_i32_0, %c0_i32_1 : i32, i32, i32
  }
  func.func @transform_14(%arg0: i32) -> (i32, i32, i32) {
    %c0_i32 = arith.constant 0 : i32
    %c0_i32_0 = arith.constant 0 : i32
    %c0_i32_1 = arith.constant 0 : i32
    %c0_i32_2 = arith.constant 0 : i32
    return %c0_i32, %c0_i32_0, %c0_i32_1 : i32, i32, i32
  }
  func.func @transform_15(%arg0: i32) -> (i32, i32) {
    %c0_i32 = arith.constant 0 : i32
    %c0_i32_0 = arith.constant 0 : i32
    %c0_i32_1 = arith.constant 0 : i32
    return %c0_i32, %c0_i32_0 : i32, i32
  }
  func.func @transform_16(%arg0: i32) -> (i32, i32) {
    %c0_i32 = arith.constant 0 : i32
    %c0_i32_0 = arith.constant 0 : i32
    %c0_i32_1 = arith.constant 0 : i32
    return %c0_i32, %c0_i32_0 : i32, i32
  }
  func.func @transform_17(%arg0: i32) -> (i32, i32) {
    %c0_i32 = arith.constant 0 : i32
    %c0_i32_0 = arith.constant 0 : i32
    %c0_i32_1 = arith.constant 0 : i32
    return %c0_i32, %c0_i32_0 : i32, i32
  }
  func.func @transform_18(%arg0: i32) -> (i32, i32) {
    %c0_i32 = arith.constant 0 : i32
    %c0_i32_0 = arith.constant 0 : i32
    %c0_i32_1 = arith.constant 0 : i32
    return %c0_i32, %c0_i32_0 : i32, i32
  }
  func.func @transform_19(%arg0: i32) -> (i32, i32, i32) {
    %c0_i32 = arith.constant 0 : i32
    %c0_i32_0 = arith.constant 0 : i32
    %c0_i32_1 = arith.constant 0 : i32
    return %arg0, %c0_i32, %c0_i32_0 : i32, i32, i32
  }
}

</mosaic_0001>

<llo_original>
// kernel: ikransformer_forward.1
$region0: #{ikransformer_forward.1}
  #allocation0 [shape = 'u32[]', space=smem, size = 0x4, offset = 0x4, fixed_abs, tag = 'smem constant byte address 0x4 - core index']
  #allocation1 [shape = 'u32[144,128]{1,0:T(1,128)}', space=vmem, size = 0x12000, scoped, tag = 'internal scratch']
  %s0 = inlined_call_operand.vmem [shape: f32[2,7,16], index: 0, kind: input, shape index: {}]
  %s1 = inlined_call_operand.hbm [shape: f32[16,32], index: 1, kind: input, shape index: {}]
  %s2 = inlined_call_operand.hbm [shape: f32[1,32], index: 2, kind: input, shape index: {}]
  %s3 = inlined_call_operand.vmem [shape: f32[2,2,32,96], index: 3, kind: input, shape index: {}]
  %s4 = inlined_call_operand.vmem [shape: f32[2,1,96], index: 4, kind: input, shape index: {}]
  %s5 = inlined_call_operand.vmem [shape: f32[2,2,32,32], index: 5, kind: input, shape index: {}]
  %s6 = inlined_call_operand.hbm [shape: f32[2,1,32], index: 6, kind: input, shape index: {}]
  %s7 = inlined_call_operand.hbm [shape: f32[2,32,64], index: 7, kind: input, shape index: {}]
  %s8 = inlined_call_operand.hbm [shape: f32[2,1,64], index: 8, kind: input, shape index: {}]
  %s9 = inlined_call_operand.vmem [shape: f32[2,64,32], index: 9, kind: input, shape index: {}]
  %s10 = inlined_call_operand.hbm [shape: f32[2,1,32], index: 10, kind: input, shape index: {}]
  %s11 = inlined_call_operand.hbm [shape: f32[2,1,32], index: 11, kind: input, shape index: {}]
  %s12 = inlined_call_operand.hbm [shape: f32[2,1,32], index: 12, kind: input, shape index: {}]
  %s13 = inlined_call_operand.hbm [shape: f32[2,1,32], index: 13, kind: input, shape index: {}]
  %s14 = inlined_call_operand.hbm [shape: f32[2,1,32], index: 14, kind: input, shape index: {}]
  %s15 = inlined_call_operand.vmem [shape: f32[1,32], index: 15, kind: input, shape index: {}]
  %s16 = inlined_call_operand.hbm [shape: f32[1,32], index: 16, kind: input, shape index: {}]
  %s17 = inlined_call_operand.vmem [shape: f32[8,32], index: 17, kind: input, shape index: {}]
  %s18 = inlined_call_operand.vmem [shape: f32[1,8], index: 18, kind: input, shape index: {}]
  %s19 = inlined_call_operand.hbm [shape: f32[2,4,8], index: 19, kind: output, shape index: {}]
  %s20 = sld [smem:[#allocation0]]
  $region153: #{ikransformer_forward.1} parent=0
    _
  %s22 = ssub.s32 1, %s20
  %s23 = scalar_select 0, %s22, %s20
  $region1: #{ikransformer_forward.1} parent=0
    #allocation2 [shape = 'u8[8192]{0}', space=vmem, size = 0x2000, scoped, tag = 'input window, operand 1, single buffered']
    #allocation3 [shape = 's32[2]{0}', space=sflag, size = 0x8, scoped, tag = 'scoped memory for ikransformer_forward.1']
    #allocation4 [shape = 's32[2]{0}', space=sflag, size = 0x8, scoped, tag = 'scoped memory for ikransformer_forward.1']
    #allocation5 [shape = 'u8[512]{0}', space=vmem, size = 0x400, scoped, tag = 'input window, operand 2, single buffered']
    #allocation6 [shape = 's32[1]{0}', space=sflag, size = 0x4, scoped, tag = 'scoped memory for ikransformer_forward.1']
    #allocation7 [shape = 'u8[1024]{0}', space=vmem, size = 0x400, scoped, tag = 'input window, operand 6, single buffered']
    #allocation8 [shape = 'u8[32768]{0}', space=vmem, size = 0x8000, scoped, tag = 'input window, operand 7, single buffered']
    #allocation9 [shape = 's32[1]{0}', space=sflag, size = 0x4, scoped, tag = 'scoped memory for ikransformer_forward.1']
    #allocation10 [shape = 'u8[1024]{0}', space=vmem, size = 0x400, scoped, tag = 'input window, operand 8, single buffered']
    #allocation11 [shape = 'u8[1024]{0}', space=vmem, size = 0x400, scoped, tag = 'input window, operand 10, single buffered']
    #allocation12 [shape = 's32[1]{0}', space=sflag, size = 0x4, scoped, tag = 'scoped memory for ikransformer_forward.1']
    #allocation13 [shape = 'u8[1024]{0}', space=vmem, size = 0x400, scoped, tag = 'input window, operand 11, single buffered']
    #allocation14 [shape = 'u8[1024]{0}', space=vmem, size = 0x400, scoped, tag = 'input window, operand 12, single buffered']
    #allocation15 [shape = 's32[1]{0}', space=sflag, size = 0x4, scoped, tag = 'scoped memory for ikransformer_forward.1']
    #allocation16 [shape = 'u8[1024]{0}', space=vmem, size = 0x400, scoped, tag = 'input window, operand 13, single buffered']
    #allocation17 [shape = 'u8[1024]{0}', space=vmem, size = 0x400, scoped, tag = 'input window, operand 14, single buffered']
    #allocation18 [shape = 's32[1]{0}', space=sflag, size = 0x4, scoped, tag = 'scoped memory for ikransformer_forward.1']
    #allocation19 [shape = 'u8[512]{0}', space=vmem, size = 0x400, scoped, tag = 'input window, operand 16, single buffered']
    #allocation20 [shape = 'u8[4096]{0}', space=vmem, size = 0x1000, scoped, tag = 'output window, operand 0']
    %24 = vsyncpa [#allocation3], 0
    %25 = vsyncpa [#allocation6], 0
    %26 = vsyncpa [#allocation9], 0
    %27 = vsyncpa [#allocation12], 0
    %28 = vsyncpa [#allocation15], 0
    %29 = vsyncpa [#allocation18], 0
    %30 = vsyncpa [#allocation4], 0
    %s31 = scalar_lea.sflag [#allocation4], 1
    %32 = vsyncpa %s31, 0
    loop: start=0, step=1, limit=4
    $region2: #{ikransformer_forward.1} parent=1 // loop_pre_header
      _
    $region3: #{ikransformer_forward.1} parent=1 // loop_header
      %s34 = sphi 0, %s38
      %p35 = scmp.ge.s32.totalorder %s34, 4
      %s44 = sphi 0, %s46
      %s47 = sphi 0, %s44
      %s48 = sphi 0, %s47
      %s64 = sphi 0, %s48
      %s68 = sphi 0, %s68
      %s70 = sphi 0, %s68
      %s71 = sphi 0, %s70
      %s85 = sphi 0, %s71
      %s89 = sphi 0, %s89
      %s91 = sphi 0, %s89
      %s92 = sphi 0, %s91
      %s106 = sphi 0, %s92
      %s110 = sphi 0, %s110
      %s112 = sphi 0, %s110
      %s113 = sphi 0, %s112
      %s127 = sphi 0, %s113
      %s131 = sphi 0, %s131
      %s133 = sphi 0, %s131
      %s134 = sphi 0, %s133
      %s148 = sphi 0, %s134
      %s152 = sphi 0, %s152
      %s154 = sphi 0, %s152
      %s155 = sphi 0, %s154
      %s169 = sphi 0, %s155
      %s173 = sphi 0, %s173
      %s175 = sphi 0, %s173
      %s176 = sphi 0, %s175
      %s190 = sphi 0, %s176
      %s194 = sphi 0, %s194
      %s196 = sphi 0, %s194
      %s197 = sphi 0, %s196
      %s211 = sphi 0, %s197
      %s215 = sphi 0, %s215
      %s217 = sphi 0, %s215
      %s218 = sphi 0, %s217
      %s232 = sphi 0, %s218
      %s236 = sphi 0, %s236
      %s238 = sphi 0, %s236
      %s239 = sphi 0, %s238
      %s253 = sphi 0, %s239
      %s257 = sphi 0, %s257
      %s259 = sphi 0, %s257
      %s260 = sphi 0, %s259
      %s274 = sphi 0, %s260
      %s278 = sphi 0, %s278
      %s280 = sphi 0, %s278
      %s281 = sphi 0, %s280
      %s295 = sphi 0, %s281
      %s299 = sphi 0, %s299
      %s301 = sphi 0, %s299
      %s302 = sphi 0, %s301
      %s316 = sphi 0, %s302
      %s320 = sphi 0, %s320
      %s322 = sphi 0, %s320
      %s323 = sphi 0, %s322
      %s337 = sphi 0, %s323
      %s341 = sphi 0, %s341
      %s343 = sphi 0, %s341
      %s344 = sphi 0, %s343
      %s358 = sphi 0, %s344
      %s362 = sphi 0, %s362
      %s364 = sphi 0, %s362
      %s365 = sphi 0, %s364
      %s379 = sphi 0, %s365
      %s383 = sphi 0, %s383
      %s385 = sphi 0, %s383
      %s386 = sphi 0, %s385
      %s400 = sphi 0, %s386
      %s404 = sphi 0, %s404
      %s406 = sphi 0, %s404
      %s407 = sphi 0, %s406
      %s421 = sphi 0, %s407
      %s425 = sphi 0, %s425
      %s427 = sphi 0, %s425
      %s428 = sphi 0, %s427
      %s442 = sphi 0, %s428
      %s448 = sphi 0, %s450
      %s451 = sphi 0, %s448
      %s452 = sphi 0, %s451
      %s468 = sphi 0, %s452
    $region4: #{ikransformer_forward.1} parent=1 // loop_header_branch
      %37 = sbr.rel (%p35) target = $region8
    $region5: #{ikransformer_forward.1} parent=1 // loop_body
      %s39 = ssub.s32 %s34, 1
      %s40 = ssub.s32 %s34, 2
      %s41 = sadd.s32 %s34, 1
      %s42 = ssub.s32 %s34, %s41
      %p43 = scmp.eq.s32.totalorder %s42, 0
      %s45 = sadd.s32 %s44, 1
      %s46 = scalar_select %p43, %s44, %s45
      %p49 = pneg %p43
      %p50 = scmp.eq.s32.totalorder %s34, 1
      %p51 = por %p49, %p50
      %p52 = scmp.ne.s32.totalorder %s44, %s47
      %p53 = scmp.eq.s32.totalorder %s34, 0
      %p54 = por %p52, %p53
      %p55 = scmp.ne.s32.totalorder %s44, %s47
      %p56 = scmp.eq.s32.totalorder %s39, 1
      %p57 = por %p55, %p56
      %p58 = scmp.ne.s32.totalorder %s47, %s48
      %p59 = scmp.eq.s32.totalorder %s39, 0
      %p60 = por %p58, %p59
      %p61 = scmp.ne.s32.totalorder %s47, %s48
      %p62 = scmp.eq.s32.totalorder %s40, 1
      %p63 = por %p61, %p62
      %p65 = scmp.ne.s32.totalorder %s48, %s64
      %p66 = scmp.eq.s32.totalorder %s40, 0
      %p67 = por %p65, %p66
      %s69 = sadd.s32 %s68, 1
      %p72 = scmp.eq.s32.totalorder %s34, 1
      %p73 = scmp.ne.s32.totalorder %s68, %s70
      %p74 = scmp.eq.s32.totalorder %s34, 0
      %p75 = por %p73, %p74
      %p76 = scmp.ne.s32.totalorder %s68, %s70
      %p77 = scmp.eq.s32.totalorder %s39, 1
      %p78 = por %p76, %p77
      %p79 = scmp.ne.s32.totalorder %s70, %s71
      %p80 = scmp.eq.s32.totalorder %s39, 0
      %p81 = por %p79, %p80
      %p82 = scmp.ne.s32.totalorder %s70, %s71
      %p83 = scmp.eq.s32.totalorder %s40, 1
      %p84 = por %p82, %p83
      %p86 = scmp.ne.s32.totalorder %s71, %s85
      %p87 = scmp.eq.s32.totalorder %s40, 0
      %p88 = por %p86, %p87
      %s90 = sadd.s32 %s89, 1
      %p93 = scmp.eq.s32.totalorder %s34, 1
      %p94 = scmp.ne.s32.totalorder %s89, %s91
      %p95 = scmp.eq.s32.totalorder %s34, 0
      %p96 = por %p94, %p95
      %p97 = scmp.ne.s32.totalorder %s89, %s91
      %p98 = scmp.eq.s32.totalorder %s39, 1
      %p99 = por %p97, %p98
      %p100 = scmp.ne.s32.totalorder %s91, %s92
      %p101 = scmp.eq.s32.totalorder %s39, 0
      %p102 = por %p100, %p101
      %p103 = scmp.ne.s32.totalorder %s91, %s92
      %p104 = scmp.eq.s32.totalorder %s40, 1
      %p105 = por %p103, %p104
      %p107 = scmp.ne.s32.totalorder %s92, %s106
      %p108 = scmp.eq.s32.totalorder %s40, 0
      %p109 = por %p107, %p108
      %s111 = sadd.s32 %s110, 1
      %p114 = scmp.eq.s32.totalorder %s34, 1
      %p115 = scmp.ne.s32.totalorder %s110, %s112
      %p116 = scmp.eq.s32.totalorder %s34, 0
      %p117 = por %p115, %p116
      %p118 = scmp.ne.s32.totalorder %s110, %s112
      %p119 = scmp.eq.s32.totalorder %s39, 1
      %p120 = por %p118, %p119
      %p121 = scmp.ne.s32.totalorder %s112, %s113
      %p122 = scmp.eq.s32.totalorder %s39, 0
      %p123 = por %p121, %p122
      %p124 = scmp.ne.s32.totalorder %s112, %s113
      %p125 = scmp.eq.s32.totalorder %s40, 1
      %p126 = por %p124, %p125
      %p128 = scmp.ne.s32.totalorder %s113, %s127
      %p129 = scmp.eq.s32.totalorder %s40, 0
      %p130 = por %p128, %p129
      %s132 = sadd.s32 %s131, 1
      %p135 = scmp.eq.s32.totalorder %s34, 1
      %p136 = scmp.ne.s32.totalorder %s131, %s133
      %p137 = scmp.eq.s32.totalorder %s34, 0
      %p138 = por %p136, %p137
      %p139 = scmp.ne.s32.totalorder %s131, %s133
      %p140 = scmp.eq.s32.totalorder %s39, 1
      %p141 = por %p139, %p140
      %p142 = scmp.ne.s32.totalorder %s133, %s134
      %p143 = scmp.eq.s32.totalorder %s39, 0
      %p144 = por %p142, %p143
      %p145 = scmp.ne.s32.totalorder %s133, %s134
      %p146 = scmp.eq.s32.totalorder %s40, 1
      %p147 = por %p145, %p146
      %p149 = scmp.ne.s32.totalorder %s134, %s148
      %p150 = scmp.eq.s32.totalorder %s40, 0
      %p151 = por %p149, %p150
      %s153 = sadd.s32 %s152, 1
      %p156 = scmp.eq.s32.totalorder %s34, 1
      %p157 = scmp.ne.s32.totalorder %s152, %s154
      %p158 = scmp.eq.s32.totalorder %s34, 0
      %p159 = por %p157, %p158
      %p160 = scmp.ne.s32.totalorder %s152, %s154
      %p161 = scmp.eq.s32.totalorder %s39, 1
      %p162 = por %p160, %p161
      %p163 = scmp.ne.s32.totalorder %s154, %s155
      %p164 = scmp.eq.s32.totalorder %s39, 0
      %p165 = por %p163, %p164
      %p166 = scmp.ne.s32.totalorder %s154, %s155
      %p167 = scmp.eq.s32.totalorder %s40, 1
      %p168 = por %p166, %p167
      %p170 = scmp.ne.s32.totalorder %s155, %s169
      %p171 = scmp.eq.s32.totalorder %s40, 0
      %p172 = por %p170, %p171
      %s174 = sadd.s32 %s173, 1
      %p177 = scmp.eq.s32.totalorder %s34, 1
      %p178 = scmp.ne.s32.totalorder %s173, %s175
      %p179 = scmp.eq.s32.totalorder %s34, 0
      %p180 = por %p178, %p179
      %p181 = scmp.ne.s32.totalorder %s173, %s175
      %p182 = scmp.eq.s32.totalorder %s39, 1
      %p183 = por %p181, %p182
      %p184 = scmp.ne.s32.totalorder %s175, %s176
      %p185 = scmp.eq.s32.totalorder %s39, 0
      %p186 = por %p184, %p185
      %p187 = scmp.ne.s32.totalorder %s175, %s176
      %p188 = scmp.eq.s32.totalorder %s40, 1
      %p189 = por %p187, %p188
      %p191 = scmp.ne.s32.totalorder %s176, %s190
      %p192 = scmp.eq.s32.totalorder %s40, 0
      %p193 = por %p191, %p192
      %s195 = sadd.s32 %s194, 1
      %p198 = scmp.eq.s32.totalorder %s34, 1
      %p199 = scmp.ne.s32.totalorder %s194, %s196
      %p200 = scmp.eq.s32.totalorder %s34, 0
      %p201 = por %p199, %p200
      %p202 = scmp.ne.s32.totalorder %s194, %s196
      %p203 = scmp.eq.s32.totalorder %s39, 1
      %p204 = por %p202, %p203
      %p205 = scmp.ne.s32.totalorder %s196, %s197
      %p206 = scmp.eq.s32.totalorder %s39, 0
      %p207 = por %p205, %p206
      %p208 = scmp.ne.s32.totalorder %s196, %s197
      %p209 = scmp.eq.s32.totalorder %s40, 1
      %p210 = por %p208, %p209
      %p212 = scmp.ne.s32.totalorder %s197, %s211
      %p213 = scmp.eq.s32.totalorder %s40, 0
      %p214 = por %p212, %p213
      %s216 = sadd.s32 %s215, 1
      %p219 = scmp.eq.s32.totalorder %s34, 1
      %p220 = scmp.ne.s32.totalorder %s215, %s217
      %p221 = scmp.eq.s32.totalorder %s34, 0
      %p222 = por %p220, %p221
      %p223 = scmp.ne.s32.totalorder %s215, %s217
      %p224 = scmp.eq.s32.totalorder %s39, 1
      %p225 = por %p223, %p224
      %p226 = scmp.ne.s32.totalorder %s217, %s218
      %p227 = scmp.eq.s32.totalorder %s39, 0
      %p228 = por %p226, %p227
      %p229 = scmp.ne.s32.totalorder %s217, %s218
      %p230 = scmp.eq.s32.totalorder %s40, 1
      %p231 = por %p229, %p230
      %p233 = scmp.ne.s32.totalorder %s218, %s232
      %p234 = scmp.eq.s32.totalorder %s40, 0
      %p235 = por %p233, %p234
      %s237 = sadd.s32 %s236, 1
      %p240 = scmp.eq.s32.totalorder %s34, 1
      %p241 = scmp.ne.s32.totalorder %s236, %s238
      %p242 = scmp.eq.s32.totalorder %s34, 0
      %p243 = por %p241, %p242
      %p244 = scmp.ne.s32.totalorder %s236, %s238
      %p245 = scmp.eq.s32.totalorder %s39, 1
      %p246 = por %p244, %p245
      %p247 = scmp.ne.s32.totalorder %s238, %s239
      %p248 = scmp.eq.s32.totalorder %s39, 0
      %p249 = por %p247, %p248
      %p250 = scmp.ne.s32.totalorder %s238, %s239
      %p251 = scmp.eq.s32.totalorder %s40, 1
      %p252 = por %p250, %p251
      %p254 = scmp.ne.s32.totalorder %s239, %s253
      %p255 = scmp.eq.s32.totalorder %s40, 0
      %p256 = por %p254, %p255
      %s258 = sadd.s32 %s257, 1
      %p261 = scmp.eq.s32.totalorder %s34, 1
      %p262 = scmp.ne.s32.totalorder %s257, %s259
      %p263 = scmp.eq.s32.totalorder %s34, 0
      %p264 = por %p262, %p263
      %p265 = scmp.ne.s32.totalorder %s257, %s259
      %p266 = scmp.eq.s32.totalorder %s39, 1
      %p267 = por %p265, %p266
      %p268 = scmp.ne.s32.totalorder %s259, %s260
      %p269 = scmp.eq.s32.totalorder %s39, 0
      %p270 = por %p268, %p269
      %p271 = scmp.ne.s32.totalorder %s259, %s260
      %p272 = scmp.eq.s32.totalorder %s40, 1
      %p273 = por %p271, %p272
      %p275 = scmp.ne.s32.totalorder %s260, %s274
      %p276 = scmp.eq.s32.totalorder %s40, 0
      %p277 = por %p275, %p276
      %s279 = sadd.s32 %s278, 1
      %p282 = scmp.eq.s32.totalorder %s34, 1
      %p283 = scmp.ne.s32.totalorder %s278, %s280
      %p284 = scmp.eq.s32.totalorder %s34, 0
      %p285 = por %p283, %p284
      %p286 = scmp.ne.s32.totalorder %s278, %s280
      %p287 = scmp.eq.s32.totalorder %s39, 1
      %p288 = por %p286, %p287
      %p289 = scmp.ne.s32.totalorder %s280, %s281
      %p290 = scmp.eq.s32.totalorder %s39, 0
      %p291 = por %p289, %p290
      %p292 = scmp.ne.s32.totalorder %s280, %s281
      %p293 = scmp.eq.s32.totalorder %s40, 1
      %p294 = por %p292, %p293
      %p296 = scmp.ne.s32.totalorder %s281, %s295
      %p297 = scmp.eq.s32.totalorder %s40, 0
      %p298 = por %p296, %p297
      %s300 = sadd.s32 %s299, 1
      %p303 = scmp.eq.s32.totalorder %s34, 1
      %p304 = scmp.ne.s32.totalorder %s299, %s301
      %p305 = scmp.eq.s32.totalorder %s34, 0
      %p306 = por %p304, %p305
      %p307 = scmp.ne.s32.totalorder %s299, %s301
      %p308 = scmp.eq.s32.totalorder %s39, 1
      %p309 = por %p307, %p308
      %p310 = scmp.ne.s32.totalorder %s301, %s302
      %p311 = scmp.eq.s32.totalorder %s39, 0
      %p312 = por %p310, %p311
      %p313 = scmp.ne.s32.totalorder %s301, %s302
      %p314 = scmp.eq.s32.totalorder %s40, 1
      %p315 = por %p313, %p314
      %p317 = scmp.ne.s32.totalorder %s302, %s316
      %p318 = scmp.eq.s32.totalorder %s40, 0
      %p319 = por %p317, %p318
      %s321 = sadd.s32 %s320, 1
      %p324 = scmp.eq.s32.totalorder %s34, 1
      %p325 = scmp.ne.s32.totalorder %s320, %s322
      %p326 = scmp.eq.s32.totalorder %s34, 0
      %p327 = por %p325, %p326
      %p328 = scmp.ne.s32.totalorder %s320, %s322
      %p329 = scmp.eq.s32.totalorder %s39, 1
      %p330 = por %p328, %p329
      %p331 = scmp.ne.s32.totalorder %s322, %s323
      %p332 = scmp.eq.s32.totalorder %s39, 0
      %p333 = por %p331, %p332
      %p334 = scmp.ne.s32.totalorder %s322, %s323
      %p335 = scmp.eq.s32.totalorder %s40, 1
      %p336 = por %p334, %p335
      %p338 = scmp.ne.s32.totalorder %s323, %s337
      %p339 = scmp.eq.s32.totalorder %s40, 0
      %p340 = por %p338, %p339
      %s342 = sadd.s32 %s341, 1
      %p345 = scmp.eq.s32.totalorder %s34, 1
      %p346 = scmp.ne.s32.totalorder %s341, %s343
      %p347 = scmp.eq.s32.totalorder %s34, 0
      %p348 = por %p346, %p347
      %p349 = scmp.ne.s32.totalorder %s341, %s343
      %p350 = scmp.eq.s32.totalorder %s39, 1
      %p351 = por %p349, %p350
      %p352 = scmp.ne.s32.totalorder %s343, %s344
      %p353 = scmp.eq.s32.totalorder %s39, 0
      %p354 = por %p352, %p353
      %p355 = scmp.ne.s32.totalorder %s343, %s344
      %p356 = scmp.eq.s32.totalorder %s40, 1
      %p357 = por %p355, %p356
      %p359 = scmp.ne.s32.totalorder %s344, %s358
      %p360 = scmp.eq.s32.totalorder %s40, 0
      %p361 = por %p359, %p360
      %s363 = sadd.s32 %s362, 1
      %p366 = scmp.eq.s32.totalorder %s34, 1
      %p367 = scmp.ne.s32.totalorder %s362, %s364
      %p368 = scmp.eq.s32.totalorder %s34, 0
      %p369 = por %p367, %p368
      %p370 = scmp.ne.s32.totalorder %s362, %s364
      %p371 = scmp.eq.s32.totalorder %s39, 1
      %p372 = por %p370, %p371
      %p373 = scmp.ne.s32.totalorder %s364, %s365
      %p374 = scmp.eq.s32.totalorder %s39, 0
      %p375 = por %p373, %p374
      %p376 = scmp.ne.s32.totalorder %s364, %s365
      %p377 = scmp.eq.s32.totalorder %s40, 1
      %p378 = por %p376, %p377
      %p380 = scmp.ne.s32.totalorder %s365, %s379
      %p381 = scmp.eq.s32.totalorder %s40, 0
      %p382 = por %p380, %p381
      %s384 = sadd.s32 %s383, 1
      %p387 = scmp.eq.s32.totalorder %s34, 1
      %p388 = scmp.ne.s32.totalorder %s383, %s385
      %p389 = scmp.eq.s32.totalorder %s34, 0
      %p390 = por %p388, %p389
      %p391 = scmp.ne.s32.totalorder %s383, %s385
      %p392 = scmp.eq.s32.totalorder %s39, 1
      %p393 = por %p391, %p392
      %p394 = scmp.ne.s32.totalorder %s385, %s386
      %p395 = scmp.eq.s32.totalorder %s39, 0
      %p396 = por %p394, %p395
      %p397 = scmp.ne.s32.totalorder %s385, %s386
      %p398 = scmp.eq.s32.totalorder %s40, 1
      %p399 = por %p397, %p398
      %p401 = scmp.ne.s32.totalorder %s386, %s400
      %p402 = scmp.eq.s32.totalorder %s40, 0
      %p403 = por %p401, %p402
      %s405 = sadd.s32 %s404, 1
      %p408 = scmp.eq.s32.totalorder %s34, 1
      %p409 = scmp.ne.s32.totalorder %s404, %s406
      %p410 = scmp.eq.s32.totalorder %s34, 0
      %p411 = por %p409, %p410
      %p412 = scmp.ne.s32.totalorder %s404, %s406
      %p413 = scmp.eq.s32.totalorder %s39, 1
      %p414 = por %p412, %p413
      %p415 = scmp.ne.s32.totalorder %s406, %s407
      %p416 = scmp.eq.s32.totalorder %s39, 0
      %p417 = por %p415, %p416
      %p418 = scmp.ne.s32.totalorder %s406, %s407
      %p419 = scmp.eq.s32.totalorder %s40, 1
      %p420 = por %p418, %p419
      %p422 = scmp.ne.s32.totalorder %s407, %s421
      %p423 = scmp.eq.s32.totalorder %s40, 0
      %p424 = por %p422, %p423
      %s426 = sadd.s32 %s425, 1
      %p429 = scmp.eq.s32.totalorder %s34, 1
      %p430 = scmp.ne.s32.totalorder %s425, %s427
      %p431 = scmp.eq.s32.totalorder %s34, 0
      %p432 = por %p430, %p431
      %p433 = scmp.ne.s32.totalorder %s425, %s427
      %p434 = scmp.eq.s32.totalorder %s39, 1
      %p435 = por %p433, %p434
      %p436 = scmp.ne.s32.totalorder %s427, %s428
      %p437 = scmp.eq.s32.totalorder %s39, 0
      %p438 = por %p436, %p437
      %p439 = scmp.ne.s32.totalorder %s427, %s428
      %p440 = scmp.eq.s32.totalorder %s40, 1
      %p441 = por %p439, %p440
      %p443 = scmp.ne.s32.totalorder %s428, %s442
      %p444 = scmp.eq.s32.totalorder %s40, 0
      %p445 = por %p443, %p444
      %s446 = ssub.s32 %s34, %s41
      %p447 = scmp.eq.s32.totalorder %s446, 0
      %s449 = sadd.s32 %s448, 1
      %s450 = scalar_select %p447, %s448, %s449
      %p453 = pneg %p447
      %p454 = scmp.eq.s32.totalorder %s34, 1
      %p455 = por %p453, %p454
      %p456 = scmp.ne.s32.totalorder %s448, %s451
      %p457 = scmp.eq.s32.totalorder %s34, 0
      %p458 = por %p456, %p457
      %p459 = scmp.ne.s32.totalorder %s448, %s451
      %p460 = scmp.eq.s32.totalorder %s39, 1
      %p461 = por %p459, %p460
      %p462 = scmp.ne.s32.totalorder %s451, %s452
      %p463 = scmp.eq.s32.totalorder %s39, 0
      %p464 = por %p462, %p463
      %p465 = scmp.ne.s32.totalorder %s451, %s452
      %p466 = scmp.eq.s32.totalorder %s40, 1
      %p467 = por %p465, %p466
      %p469 = scmp.ne.s32.totalorder %s452, %s468
      %p470 = scmp.eq.s32.totalorder %s40, 0
      %p471 = por %p469, %p470
      %p472 = scmp.le.s32.totalorder 1, %s34
      %p473 = scmp.lt.s32.totalorder %s34, 3
      %p474 = pnand %p472, %p473
      %p475 = pneg %p474
      // Predicated region
      $region9: #{ikransformer_forward.1} parent=5 // pred_check
        _
      $region10: #{ikransformer_forward.1} parent=5 // pred_check_branch
        %477 = sbr.rel (%p474) target = $region12
      $region11: #{ikransformer_forward.1} parent=5 // pred_region
        %s478 = ssub.s32 %s34, 1
        // Predicated region
        $region13: #{ikransformer_forward.1} parent=11 // pred_check
          %p479 = pneg %p81
        $region14: #{ikransformer_forward.1} parent=11 // pred_check_branch
          %481 = sbr.rel (%p479) target = $region16
        $region15: #{ikransformer_forward.1} parent=11 // pred_region
          %s483 = ssub.s32 256, 256
          %484 = vsyncadd [#allocation3], %s483
          %s485 = sshll.u32 [#allocation2], 4
          %s486 = int_to_ptr.vmem [resolvable:$true] %s485
          %491 = dma.hbm_to_vmem [thread:$0]  %s1, 256, %s486, [#allocation3], 128, 128, 8
        $region16: #{ikransformer_forward.1} parent=11 // pred_fallthru
          _
        // Predicated region
        $region17: #{ikransformer_forward.1} parent=11 // pred_check
          %p492 = pneg %p102
        $region18: #{ikransformer_forward.1} parent=11 // pred_check_branch
          %494 = sbr.rel (%p492) target = $region20
        $region19: #{ikransformer_forward.1} parent=11 // pred_region
          %s496 = ssub.s32 16, 16
          %497 = vsyncadd [#allocation6], %s496
          %s499 = sshll.u32 [#allocation5], 4
          %s500 = int_to_ptr.vmem [resolvable:$true] %s499
          %502 = dma.hbm_to_vmem [thread:$0]  %s2, 16, %s500, [#allocation6]
        $region20: #{ikransformer_forward.1} parent=11 // pred_fallthru
          _
        // Predicated region
        $region21: #{ikransformer_forward.1} parent=11 // pred_check
          %p503 = pneg %p123
        $region22: #{ikransformer_forward.1} parent=11 // pred_check_branch
          %505 = sbr.rel (%p503) target = $region24
        $region23: #{ikransformer_forward.1} parent=11 // pred_region
          _
        $region24: #{ikransformer_forward.1} parent=11 // pred_fallthru
          _
        // Predicated region
        $region25: #{ikransformer_forward.1} parent=11 // pred_check
          %p506 = pneg %p144
        $region26: #{ikransformer_forward.1} parent=11 // pred_check_branch
          %508 = sbr.rel (%p506) target = $region28
        $region27: #{ikransformer_forward.1} parent=11 // pred_region
          _
        $region28: #{ikransformer_forward.1} parent=11 // pred_fallthru
          _
        // Predicated region
        $region29: #{ikransformer_forward.1} parent=11 // pred_check
          %p509 = pneg %p165
        $region30: #{ikransformer_forward.1} parent=11 // pred_check_branch
          %511 = sbr.rel (%p509) target = $region32
        $region31: #{ikransformer_forward.1} parent=11 // pred_region
          _
        $region32: #{ikransformer_forward.1} parent=11 // pred_fallthru
          _
        // Predicated region
        $region33: #{ikransformer_forward.1} parent=11 // pred_check
          %p512 = pneg %p186
        $region34: #{ikransformer_forward.1} parent=11 // pred_check_branch
          %514 = sbr.rel (%p512) target = $region36
        $region35: #{ikransformer_forward.1} parent=11 // pred_region
          %s516 = ssub.s32 32, 32
          %517 = vsyncadd [#allocation6], %s516
          %s518 = sshll.u32 [#allocation7], 4
          %s519 = int_to_ptr.vmem [resolvable:$true] %s518
          %524 = dma.hbm_to_vmem [thread:$0]  %s6, 32, %s519, [#allocation6], 16, 16, 1
        $region36: #{ikransformer_forward.1} parent=11 // pred_fallthru
          _
        // Predicated region
        $region37: #{ikransformer_forward.1} parent=11 // pred_check
          %p525 = pneg %p207
        $region38: #{ikransformer_forward.1} parent=11 // pred_check_branch
          %527 = sbr.rel (%p525) target = $region40
        $region39: #{ikransformer_forward.1} parent=11 // pred_region
          %s529 = ssub.s32 1024, 1024
          %530 = vsyncadd [#allocation9], %s529
          %s531 = sshll.u32 [#allocation8], 4
          %s532 = int_to_ptr.vmem [resolvable:$true] %s531
          %537 = dma.hbm_to_vmem [thread:$0]  %s7, 1024, %s532, [#allocation9], 128, 128, 8
        $region40: #{ikransformer_forward.1} parent=11 // pred_fallthru
          _
        // Predicated region
        $region41: #{ikransformer_forward.1} parent=11 // pred_check
          %p538 = pneg %p228
        $region42: #{ikransformer_forward.1} parent=11 // pred_check_branch
          %540 = sbr.rel (%p538) target = $region44
        $region43: #{ikransformer_forward.1} parent=11 // pred_region
          %s542 = ssub.s32 32, 32
          %543 = vsyncadd [#allocation9], %s542
          %s544 = sshll.u32 [#allocation10], 4
          %s545 = int_to_ptr.vmem [resolvable:$true] %s544
          %550 = dma.hbm_to_vmem [thread:$0]  %s8, 32, %s545, [#allocation9], 16, 16, 1
        $region44: #{ikransformer_forward.1} parent=11 // pred_fallthru
          _
        // Predicated region
        $region45: #{ikransformer_forward.1} parent=11 // pred_check
          %p551 = pneg %p249
        $region46: #{ikransformer_forward.1} parent=11 // pred_check_branch
          %553 = sbr.rel (%p551) target = $region48
        $region47: #{ikransformer_forward.1} parent=11 // pred_region
          _
        $region48: #{ikransformer_forward.1} parent=11 // pred_fallthru
          _
        // Predicated region
        $region49: #{ikransformer_forward.1} parent=11 // pred_check
          %p554 = pneg %p270
        $region50: #{ikransformer_forward.1} parent=11 // pred_check_branch
          %556 = sbr.rel (%p554) target = $region52
        $region51: #{ikransformer_forward.1} parent=11 // pred_region
          %s558 = ssub.s32 32, 32
          %559 = vsyncadd [#allocation12], %s558
          %s560 = sshll.u32 [#allocation11], 4
          %s561 = int_to_ptr.vmem [resolvable:$true] %s560
          %566 = dma.hbm_to_vmem [thread:$0]  %s10, 32, %s561, [#allocation12], 16, 16, 1
        $region52: #{ikransformer_forward.1} parent=11 // pred_fallthru
          _
        // Predicated region
        $region53: #{ikransformer_forward.1} parent=11 // pred_check
          %p567 = pneg %p291
        $region54: #{ikransformer_forward.1} parent=11 // pred_check_branch
          %569 = sbr.rel (%p567) target = $region56
        $region55: #{ikransformer_forward.1} parent=11 // pred_region
          %s571 = ssub.s32 32, 32
          %572 = vsyncadd [#allocation12], %s571
          %s573 = sshll.u32 [#allocation13], 4
          %s574 = int_to_ptr.vmem [resolvable:$true] %s573
          %579 = dma.hbm_to_vmem [thread:$0]  %s11, 32, %s574, [#allocation12], 16, 16, 1
        $region56: #{ikransformer_forward.1} parent=11 // pred_fallthru
          _
        // Predicated region
        $region57: #{ikransformer_forward.1} parent=11 // pred_check
          %p580 = pneg %p312
        $region58: #{ikransformer_forward.1} parent=11 // pred_check_branch
          %582 = sbr.rel (%p580) target = $region60
        $region59: #{ikransformer_forward.1} parent=11 // pred_region
          %s584 = ssub.s32 32, 32
          %585 = vsyncadd [#allocation15], %s584
          %s586 = sshll.u32 [#allocation14], 4
          %s587 = int_to_ptr.vmem [resolvable:$true] %s586
          %592 = dma.hbm_to_vmem [thread:$0]  %s12, 32, %s587, [#allocation15], 16, 16, 1
        $region60: #{ikransformer_forward.1} parent=11 // pred_fallthru
          _
        // Predicated region
        $region61: #{ikransformer_forward.1} parent=11 // pred_check
          %p593 = pneg %p333
        $region62: #{ikransformer_forward.1} parent=11 // pred_check_branch
          %595 = sbr.rel (%p593) target = $region64
        $region63: #{ikransformer_forward.1} parent=11 // pred_region
          %s597 = ssub.s32 32, 32
          %598 = vsyncadd [#allocation15], %s597
          %s599 = sshll.u32 [#allocation16], 4
          %s600 = int_to_ptr.vmem [resolvable:$true] %s599
          %605 = dma.hbm_to_vmem [thread:$0]  %s13, 32, %s600, [#allocation15], 16, 16, 1
        $region64: #{ikransformer_forward.1} parent=11 // pred_fallthru
          _
        // Predicated region
        $region65: #{ikransformer_forward.1} parent=11 // pred_check
          %p606 = pneg %p354
        $region66: #{ikransformer_forward.1} parent=11 // pred_check_branch
          %608 = sbr.rel (%p606) target = $region68
        $region67: #{ikransformer_forward.1} parent=11 // pred_region
          %s610 = ssub.s32 32, 32
          %611 = vsyncadd [#allocation18], %s610
          %s612 = sshll.u32 [#allocation17], 4
          %s613 = int_to_ptr.vmem [resolvable:$true] %s612
          %618 = dma.hbm_to_vmem [thread:$0]  %s14, 32, %s613, [#allocation18], 16, 16, 1
        $region68: #{ikransformer_forward.1} parent=11 // pred_fallthru
          _
        // Predicated region
        $region69: #{ikransformer_forward.1} parent=11 // pred_check
          %p619 = pneg %p375
        $region70: #{ikransformer_forward.1} parent=11 // pred_check_branch
          %621 = sbr.rel (%p619) target = $region72
        $region71: #{ikransformer_forward.1} parent=11 // pred_region
          _
        $region72: #{ikransformer_forward.1} parent=11 // pred_fallthru
          _
        // Predicated region
        $region73: #{ikransformer_forward.1} parent=11 // pred_check
          %p622 = pneg %p396
        $region74: #{ikransformer_forward.1} parent=11 // pred_check_branch
          %624 = sbr.rel (%p622) target = $region76
        $region75: #{ikransformer_forward.1} parent=11 // pred_region
          %s626 = ssub.s32 16, 16
          %627 = vsyncadd [#allocation18], %s626
          %s629 = sshll.u32 [#allocation19], 4
          %s630 = int_to_ptr.vmem [resolvable:$true] %s629
          %632 = dma.hbm_to_vmem [thread:$0]  %s16, 16, %s630, [#allocation18]
        $region76: #{ikransformer_forward.1} parent=11 // pred_fallthru
          _
        // Predicated region
        $region77: #{ikransformer_forward.1} parent=11 // pred_check
          %p633 = pneg %p417
        $region78: #{ikransformer_forward.1} parent=11 // pred_check_branch
          %635 = sbr.rel (%p633) target = $region80
        $region79: #{ikransformer_forward.1} parent=11 // pred_region
          _
        $region80: #{ikransformer_forward.1} parent=11 // pred_fallthru
          _
        // Predicated region
        $region81: #{ikransformer_forward.1} parent=11 // pred_check
          %p636 = pneg %p438
        $region82: #{ikransformer_forward.1} parent=11 // pred_check_branch
          %638 = sbr.rel (%p636) target = $region84
        $region83: #{ikransformer_forward.1} parent=11 // pred_region
          _
        $region84: #{ikransformer_forward.1} parent=11 // pred_fallthru
          _
      $region12: #{ikransformer_forward.1} parent=5 // pred_fallthru
        _
      %p639 = scmp.lt.s32.totalorder %s34, 2
      // Predicated region
      $region85: #{ikransformer_forward.1} parent=5 // pred_check
        %p640 = pneg %p639
      $region86: #{ikransformer_forward.1} parent=5 // pred_check_branch
        %642 = sbr.rel (%p640) target = $region88
      $region87: #{ikransformer_forward.1} parent=5 // pred_region
        // Predicated region
        $region89: #{ikransformer_forward.1} parent=87 // pred_check
          %p643 = pneg %p54
        $region90: #{ikransformer_forward.1} parent=87 // pred_check_branch
          %645 = sbr.rel (%p643) target = $region92
        $region91: #{ikransformer_forward.1} parent=87 // pred_region
          %p646 = scmp.lt.s32.totalorder %s34, 1
          %s647 = scalar_select %p646, %s34, 1
          %s648 = smul.addr %s647, 8
          %s649 = scalar_lea.vmem %s0, %s648
        $region92: #{ikransformer_forward.1} parent=87 // pred_fallthru
          _
      $region88: #{ikransformer_forward.1} parent=5 // pred_fallthru
        _
      %p650 = scmp.le.s32.totalorder 1, %s34
      %p651 = scmp.lt.s32.totalorder %s34, 3
      %p652 = pnand %p650, %p651
      %p653 = pneg %p652
      // Predicated region
      $region93: #{ikransformer_forward.1} parent=5 // pred_check
        _
      $region94: #{ikransformer_forward.1} parent=5 // pred_check_branch
        %655 = sbr.rel (%p652) target = $region96
      $region95: #{ikransformer_forward.1} parent=5 // pred_region
        %s656 = ssub.s32 %s34, 1
        // Predicated region
        $region97: #{ikransformer_forward.1} parent=95 // pred_check
          %p657 = pneg %p81
        $region98: #{ikransformer_forward.1} parent=95 // pred_check_branch
          %659 = sbr.rel (%p657) target = $region100
        $region99: #{ikransformer_forward.1} parent=95 // pred_region
          %660 = dma.done [#allocation3], 256
        $region100: #{ikransformer_forward.1} parent=95 // pred_fallthru
          _
        // Predicated region
        $region101: #{ikransformer_forward.1} parent=95 // pred_check
          %p661 = pneg %p102
        $region102: #{ikransformer_forward.1} parent=95 // pred_check_branch
          %663 = sbr.rel (%p661) target = $region104
        $region103: #{ikransformer_forward.1} parent=95 // pred_region
          %664 = dma.done [#allocation6], 16
        $region104: #{ikransformer_forward.1} parent=95 // pred_fallthru
          _
        // Predicated region
        $region105: #{ikransformer_forward.1} parent=95 // pred_check
          %p665 = pneg %p186
        $region106: #{ikransformer_forward.1} parent=95 // pred_check_branch
          %667 = sbr.rel (%p665) target = $region108
        $region107: #{ikransformer_forward.1} parent=95 // pred_region
          %668 = dma.done [#allocation6], 32
        $region108: #{ikransformer_forward.1} parent=95 // pred_fallthru
          _
        // Predicated region
        $region109: #{ikransformer_forward.1} parent=95 // pred_check
          %p669 = pneg %p207
        $region110: #{ikransformer_forward.1} parent=95 // pred_check_branch
          %671 = sbr.rel (%p669) target = $region112
        $region111: #{ikransformer_forward.1} parent=95 // pred_region
          %672 = dma.done [#allocation9], 1024
        $region112: #{ikransformer_forward.1} parent=95 // pred_fallthru
          _
        // Predicated region
        $region113: #{ikransformer_forward.1} parent=95 // pred_check
          %p673 = pneg %p228
        $region114: #{ikransformer_forward.1} parent=95 // pred_check_branch
          %675 = sbr.rel (%p673) target = $region116
        $region115: #{ikransformer_forward.1} parent=95 // pred_region
          %676 = dma.done [#allocation9], 32
        $region116: #{ikransformer_forward.1} parent=95 // pred_fallthru
          _
        // Predicated region
        $region117: #{ikransformer_forward.1} parent=95 // pred_check
          %p677 = pneg %p270
        $region118: #{ikransformer_forward.1} parent=95 // pred_check_branch
          %679 = sbr.rel (%p677) target = $region120
        $region119: #{ikransformer_forward.1} parent=95 // pred_region
          %680 = dma.done [#allocation12], 32
        $region120: #{ikransformer_forward.1} parent=95 // pred_fallthru
          _
        // Predicated region
        $region121: #{ikransformer_forward.1} parent=95 // pred_check
          %p681 = pneg %p291
        $region122: #{ikransformer_forward.1} parent=95 // pred_check_branch
          %683 = sbr.rel (%p681) target = $region124
        $region123: #{ikransformer_forward.1} parent=95 // pred_region
          %684 = dma.done [#allocation12], 32
        $region124: #{ikransformer_forward.1} parent=95 // pred_fallthru
          _
        // Predicated region
        $region125: #{ikransformer_forward.1} parent=95 // pred_check
          %p685 = pneg %p312
        $region126: #{ikransformer_forward.1} parent=95 // pred_check_branch
          %687 = sbr.rel (%p685) target = $region128
        $region127: #{ikransformer_forward.1} parent=95 // pred_region
          %688 = dma.done [#allocation15], 32
        $region128: #{ikransformer_forward.1} parent=95 // pred_fallthru
          _
        // Predicated region
        $region129: #{ikransformer_forward.1} parent=95 // pred_check
          %p689 = pneg %p333
        $region130: #{ikransformer_forward.1} parent=95 // pred_check_branch
          %691 = sbr.rel (%p689) target = $region132
        $region131: #{ikransformer_forward.1} parent=95 // pred_region
          %692 = dma.done [#allocation15], 32
        $region132: #{ikransformer_forward.1} parent=95 // pred_fallthru
          _
        // Predicated region
        $region133: #{ikransformer_forward.1} parent=95 // pred_check
          %p693 = pneg %p354
        $region134: #{ikransformer_forward.1} parent=95 // pred_check_branch
          %695 = sbr.rel (%p693) target = $region136
        $region135: #{ikransformer_forward.1} parent=95 // pred_region
          %696 = dma.done [#allocation18], 32
        $region136: #{ikransformer_forward.1} parent=95 // pred_fallthru
          _
        // Predicated region
        $region137: #{ikransformer_forward.1} parent=95 // pred_check
          %p697 = pneg %p396
        $region138: #{ikransformer_forward.1} parent=95 // pred_check_branch
          %699 = sbr.rel (%p697) target = $region140
        $region139: #{ikransformer_forward.1} parent=95 // pred_region
          %700 = dma.done [#allocation18], 16
        $region140: #{ikransformer_forward.1} parent=95 // pred_fallthru
          _
        %p701 = scmp.lt.s32.totalorder %s39, 1
        %s702 = scalar_select %p701, %s39, 1
        %s703 = smul.addr %s702, 8
        %s704 = scalar_lea.vmem %s0, %s703
        %p705 = pneg %p60
        %p706 = pneg %p57
        %p707 = pneg %p81
        %p708 = pneg %p78
        %p709 = pneg %p102
        %p710 = pneg %p99
        %p711 = pneg %p123
        %p712 = pneg %p120
        %p713 = pneg %p144
        %p714 = pneg %p141
        %p715 = pneg %p165
        %p716 = pneg %p162
        %p717 = pneg %p186
        %p718 = pneg %p183
        %p719 = pneg %p207
        %p720 = pneg %p204
        %p721 = pneg %p228
        %p722 = pneg %p225
        %p723 = pneg %p249
        %p724 = pneg %p246
        %p725 = pneg %p270
        %p726 = pneg %p267
        %p727 = pneg %p291
        %p728 = pneg %p288
        %p729 = pneg %p312
        %p730 = pneg %p309
        %p731 = pneg %p333
        %p732 = pneg %p330
        %p733 = pneg %p354
        %p734 = pneg %p351
        %p735 = pneg %p375
        %p736 = pneg %p372
        %p737 = pneg %p396
        %p738 = pneg %p393
        %p739 = pneg %p417
        %p740 = pneg %p414
        %p741 = pneg %p438
        %p742 = pneg %p435
        %p743 = pneg %p464
        %p744 = pneg %p461
        %s745 = sand.u32 %s451, 1
        %s746 = scalar_lea.sflag [#allocation4], %s745
        %s747 = sand.u32 %s451, 1
        %s748 = smul.addr %s747, 4
        %s749 = scalar_lea.vmem [#allocation20], %s748
        %p750 = scmp.lt.s32.totalorder %s39, 1
        %s751 = scalar_select %p750, %s39, 1
        %s752 = smul.addr %s751, 8
        %s753 = scalar_lea.vmem %s0, %s752
        %v755 = vld [vmem:[%s753] sm:$0x7f]
        %vm756 = vcmask 129024
        %v757 = vsel %vm756, %v755, 0.0
        %758 = vadd.xlane.f32.xlu0 %v757
        %v759 = vpop.xlane.xlu0 %758
        %v760 = vrcp.pop 16.0
        %v761 = vmul.f32 %v759, %v760
        %v762 = vsub.f32 %v755, %v761
        %v763 = vmul.f32 %v762, %v762
        %v764 = vsel %vm756, %v763, 0.0
        %765 = vadd.xlane.f32.xlu0 %v764
        %v766 = vpop.xlane.xlu0 %765
        %v767 = vmul.f32 %v766, %v760
        %v768 = vadd.f32 %v767, 1e-05
        %v769 = vrsqrt.pop %v768
        %v770 = vmul.f32 %v768, %v769
        %vm771 = vcmp.eq.f32.partialorder %v768, inf
        %v772 = vsel %vm771, %v768, %v770
        %vm773 = vcmp.eq.f32.partialorder %v768, 0.0
        %v774 = vand.u32 %v768, 2147483648
        %v775 = vsel %vm773, %v774, %v772
        %v776 = vlaneseq
        %v777 = vshrl.u32 %v776, 7
        %vm778 = vcmp.lt.s32.totalorder %v777, 4
        %v779 = vrcp.pop %v775
        %v780 = vmul.f32 %v762, %v779
        %v781 = vsel %vm778, 1, 0
        %vm782 = vcmp.eq.s32.totalorder %v781, 1
        %v783 = vsel %vm782, %v780, %v755
        %v784 = vld [vmem:[#allocation2] sm:$0xff]
        %v785 = vld [vmem:[#allocation2 + $0x8] sm:$0xff]
        %v786 = vpack.c.bf16 %v783, %v783
        %v787 = vpack.c.bf16 %v785, %v784
        %v788 = vld [vmem:[#allocation5] sm:$0x1]
        %v790 = vlaneseq
        %v791 = vshrl.u32 %v790, 7
        %v792 = vsub.s32 0, %v791
        %v793 = vrot.slane %v788, %v792
        %vm795 = vcmask 130048
        %v797 = vsel %vm795, %v786, 0
        %799 = vmatprep.subr.bf16.mxu0 0
        %800 = vmatpush1.bf16.msra.mxu0 %v787
        %801 = vmatprep.subr.bf16.mxu0 0
        %802 = vmatpush1.bf16.msra.mxu0 0
        %803 = vmatprep.subr.bf16.mxu0 0
        %804 = vmatpush1.bf16.msra.mxu0 0
        %805 = vmatprep.subr.bf16.mxu0 0
        %806 = vmatpush1.bf16.msra.mxu0 0
        %807 = vmatprep.subr.bf16.mxu0 0
        %808 = vmatpush1.bf16.msra.mxu0 0
        %809 = vmatprep.subr.bf16.mxu0 0
        %810 = vmatpush1.bf16.msra.mxu0 0
        %811 = vmatprep.subr.bf16.mxu0 0
        %812 = vmatpush1.bf16.msra.mxu0 0
        %813 = vmatprep.subr.bf16.mxu0 0
        %814 = vmatpush1.bf16.msra.mxu0 0
        %815 = vmatprep.subr.bf16.mxu0 0
        %816 = vmatpush1.bf16.msra.mxu0 0
        %817 = vmatprep.subr.bf16.mxu0 0
        %818 = vmatpush1.bf16.msra.mxu0 0
        %819 = vmatprep.subr.bf16.mxu0 0
        %820 = vmatpush1.bf16.msra.mxu0 0
        %821 = vmatprep.subr.bf16.mxu0 0
        %822 = vmatpush1.bf16.msra.mxu0 0
        %823 = vmatprep.subr.bf16.mxu0 0
        %824 = vmatpush1.bf16.msra.mxu0 0
        %825 = vmatprep.subr.bf16.mxu0 0
        %826 = vmatpush1.bf16.msra.mxu0 0
        %827 = vmatprep.subr.bf16.mxu0 0
        %828 = vmatpush1.bf16.msra.mxu0 0
        %829 = vmatprep.subr.bf16.mxu0 0
        %830 = vmatpush1.bf16.msra.mxu0 0
        %831 = vmatprep.mubr.bf16.mxu0 0
        %832 = vmatmul.mubr.bf16.gmra.mrb[0].mxu0 %v797
        %v833 = vpop.f32.mrb[0].mxu0
        %v834 = vadd.f32 %v793, %v833
        %v835 = vpop.f32.mrb[0].mxu0
        %v836 = vpop.f32.mrb[0].mxu0
        %v837 = vpop.f32.mrb[0].mxu0
        %838 = vdwg.mxu0
        %v839 = vlaneseq
        %v840 = vand.u32 %v839, 127
        %v841 = vld [vmem:[%s4] sm:$0x1]
        %v842 = vld [vmem:[%s3] sm:$0xff]
        %v843 = vld [vmem:[%s3 + $0x8] sm:$0xff]
        %v844 = vld [vmem:[%s3 + $0x10] sm:$0xff]
        %v845 = vld [vmem:[%s3 + $0x18] sm:$0xff]
        %v846 = vpack.c.bf16 %v834, %v834
        %v847 = vpack.c.bf16 %v843, %v842
        %v848 = vpack.c.bf16 %v845, %v844
        %vm849 = vcmask 261120
        %v851 = vsel %vm849, %v846, 0
        %853 = vmatprep.subr.bf16.mxu0 0
        %854 = vmatpush1.bf16.msra.mxu0 %v847
        %855 = vmatprep.subr.bf16.mxu0 0
        %856 = vmatpush1.bf16.msra.mxu0 %v848
        %857 = vmatprep.subr.bf16.mxu0 0
        %858 = vmatpush1.bf16.msra.mxu0 0
        %859 = vmatprep.subr.bf16.mxu0 0
        %860 = vmatpush1.bf16.msra.mxu0 0
        %861 = vmatprep.subr.bf16.mxu0 0
        %862 = vmatpush1.bf16.msra.mxu0 0
        %863 = vmatprep.subr.bf16.mxu0 0
        %864 = vmatpush1.bf16.msra.mxu0 0
        %865 = vmatprep.subr.bf16.mxu0 0
        %866 = vmatpush1.bf16.msra.mxu0 0
        %867 = vmatprep.subr.bf16.mxu0 0
        %868 = vmatpush1.bf16.msra.mxu0 0
        %869 = vmatprep.subr.bf16.mxu0 0
        %870 = vmatpush1.bf16.msra.mxu0 0
        %871 = vmatprep.subr.bf16.mxu0 0
        %872 = vmatpush1.bf16.msra.mxu0 0
        %873 = vmatprep.subr.bf16.mxu0 0
        %874 = vmatpush1.bf16.msra.mxu0 0
        %875 = vmatprep.subr.bf16.mxu0 0
        %876 = vmatpush1.bf16.msra.mxu0 0
        %877 = vmatprep.subr.bf16.mxu0 0
        %878 = vmatpush1.bf16.msra.mxu0 0
        %879 = vmatprep.subr.bf16.mxu0 0
        %880 = vmatpush1.bf16.msra.mxu0 0
        %881 = vmatprep.subr.bf16.mxu0 0
        %882 = vmatpush1.bf16.msra.mxu0 0
        %883 = vmatprep.subr.bf16.mxu0 0
        %884 = vmatpush1.bf16.msra.mxu0 0
        %885 = vmatprep.mubr.bf16.mxu0 0
        %886 = vmatmul.mubr.bf16.gmra.mrb[0].mxu0 %v851
        %v887 = vpop.f32.mrb[0].mxu0
        %v888 = vadd.f32 0.0, %v887
        %v889 = vpop.f32.mrb[0].mxu0
        %v890 = vpop.f32.mrb[0].mxu0
        %v891 = vpop.f32.mrb[0].mxu0
        %892 = vdwg.mxu0
        %v894 = vlaneseq
        %v895 = vshrl.u32 %v894, 7
        %v896 = vsub.s32 0, %v895
        %v897 = vrot.slane %v841, %v896
        %v899 = vadd.f32 %v897, %v888
        %v900 = vmul.f32 %v834, %v834
        %s901 = scalar_lea.vmem %s3, 32
        %v902 = vld [vmem:[%s901] sm:$0xff]
        %v903 = vld [vmem:[%s901 + $0x8] sm:$0xff]
        %v904 = vld [vmem:[%s901 + $0x10] sm:$0xff]
        %v905 = vld [vmem:[%s901 + $0x18] sm:$0xff]
        %v906 = vpack.c.bf16 %v900, %v900
        %v907 = vpack.c.bf16 %v903, %v902
        %v908 = vpack.c.bf16 %v905, %v904
        %v910 = vsel %vm849, %v906, 0
        %912 = vmatprep.subr.bf16.mxu0 0
        %913 = vmatpush1.bf16.msra.mxu0 %v907
        %914 = vmatprep.subr.bf16.mxu0 0
        %915 = vmatpush1.bf16.msra.mxu0 %v908
        %916 = vmatprep.subr.bf16.mxu0 0
        %917 = vmatpush1.bf16.msra.mxu0 0
        %918 = vmatprep.subr.bf16.mxu0 0
        %919 = vmatpush1.bf16.msra.mxu0 0
        %920 = vmatprep.subr.bf16.mxu0 0
        %921 = vmatpush1.bf16.msra.mxu0 0
        %922 = vmatprep.subr.bf16.mxu0 0
        %923 = vmatpush1.bf16.msra.mxu0 0
        %924 = vmatprep.subr.bf16.mxu0 0
        %925 = vmatpush1.bf16.msra.mxu0 0
        %926 = vmatprep.subr.bf16.mxu0 0
        %927 = vmatpush1.bf16.msra.mxu0 0
        %928 = vmatprep.subr.bf16.mxu0 0
        %929 = vmatpush1.bf16.msra.mxu0 0
        %930 = vmatprep.subr.bf16.mxu0 0
        %931 = vmatpush1.bf16.msra.mxu0 0
        %932 = vmatprep.subr.bf16.mxu0 0
        %933 = vmatpush1.bf16.msra.mxu0 0
        %934 = vmatprep.subr.bf16.mxu0 0
        %935 = vmatpush1.bf16.msra.mxu0 0
        %936 = vmatprep.subr.bf16.mxu0 0
        %937 = vmatpush1.bf16.msra.mxu0 0
        %938 = vmatprep.subr.bf16.mxu0 0
        %939 = vmatpush1.bf16.msra.mxu0 0
        %940 = vmatprep.subr.bf16.mxu0 0
        %941 = vmatpush1.bf16.msra.mxu0 0
        %942 = vmatprep.subr.bf16.mxu0 0
        %943 = vmatpush1.bf16.msra.mxu0 0
        %944 = vmatprep.mubr.bf16.mxu0 0
        %945 = vmatmul.mubr.bf16.gmra.mrb[0].mxu0 %v910
        %v946 = vpop.f32.mrb[0].mxu0
        %v947 = vadd.f32 0.0, %v946
        %v948 = vpop.f32.mrb[0].mxu0
        %v949 = vpop.f32.mrb[0].mxu0
        %v950 = vpop.f32.mrb[0].mxu0
        %951 = vdwg.mxu0
        %v952 = vadd.f32 %v899, %v947
        %vm953 = vcmp.ge.s32.totalorder %v840, 0
        %vm954 = vcmp.lt.s32.totalorder %v840, 8
        %vm955 = vmand %vm953, %vm954
        %v956 = vsel %vm955, 1, 0
        %v957 = vcvt.s32.f32 %v956
        %v958 = vmul.f32 %v952, %v957
        %v959 = vpack.c.bf16 %v958, %v958
        %v960 = vpack.c.bf16 %v952, %v952
        %962 = vrot.lane.b32.xlu0 %v960, 96
        %v963 = vpop.permute.xlu0 %962
        %v965 = vsel %vm849, %v959, 0
        %v968 = vsel %vm849, %v963, 0
        %970 = vmatprep.subr.bf16.mxu0 0
        %971 = vmatpush1.bf16.xpose.msra.mxu0 %v968
        %972 = vmatprep.subr.bf16.mxu0 0
        %973 = vmatpush1.bf16.xpose.msra.mxu0 0
        %974 = vmatprep.subr.bf16.mxu0 0
        %975 = vmatpush1.bf16.xpose.msra.mxu0 0
        %976 = vmatprep.subr.bf16.mxu0 0
        %977 = vmatpush1.bf16.xpose.msra.mxu0 0
        %978 = vmatprep.subr.bf16.mxu0 0
        %979 = vmatpush1.bf16.xpose.msra.mxu0 0
        %980 = vmatprep.subr.bf16.mxu0 0
        %981 = vmatpush1.bf16.xpose.msra.mxu0 0
        %982 = vmatprep.subr.bf16.mxu0 0
        %983 = vmatpush1.bf16.xpose.msra.mxu0 0
        %984 = vmatprep.subr.bf16.mxu0 0
        %985 = vmatpush1.bf16.xpose.msra.mxu0 0
        %986 = vmatprep.subr.bf16.mxu0 0
        %987 = vmatpush1.bf16.xpose.msra.mxu0 0
        %988 = vmatprep.subr.bf16.mxu0 0
        %989 = vmatpush1.bf16.xpose.msra.mxu0 0
        %990 = vmatprep.subr.bf16.mxu0 0
        %991 = vmatpush1.bf16.xpose.msra.mxu0 0
        %992 = vmatprep.subr.bf16.mxu0 0
        %993 = vmatpush1.bf16.xpose.msra.mxu0 0
        %994 = vmatprep.subr.bf16.mxu0 0
        %995 = vmatpush1.bf16.xpose.msra.mxu0 0
        %996 = vmatprep.subr.bf16.mxu0 0
        %997 = vmatpush1.bf16.xpose.msra.mxu0 0
        %998 = vmatprep.subr.bf16.mxu0 0
        %999 = vmatpush1.bf16.xpose.msra.mxu0 0
        %1000 = vmatprep.subr.bf16.mxu0 0
        %1001 = vmatpush1.bf16.xpose.msra.mxu0 0
        %1002 = vmatprep.mubr.bf16.mxu0 0
        %1003 = vmatmul.mubr.bf16.gmra.mrb[0].mxu0 %v965
        %v1004 = vpop.f32.mrb[0].mxu0
        %v1005 = vadd.f32 0.0, %v1004
        %v1006 = vpop.f32.mrb[0].mxu0
        %v1007 = vpop.f32.mrb[0].mxu0
        %v1008 = vpop.f32.mrb[0].mxu0
        %1009 = vdwg.mxu0
        %v1010 = vmul.f32 %v1005, 0.35355338
        %vm1011 = vcmask 55296
        %v1012 = vsel %vm1011, %v1010, -inf
        %1013 = vmax.xlane.f32.xlu0 %v1012
        %v1014 = vpop.xlane.xlu0 %1013
        %v1015 = vsub.f32 %v1010, %v1014
        %v1016 = vmul.f32 %v1015, 1.442695
        %v1017 = vpow.pop %v1016
        %v1018 = vsel %vm1011, %v1017, 0.0
        %1019 = vadd.xlane.f32.xlu0 %v1018
        %v1020 = vpop.xlane.xlu0 %1019
        %v1021 = vrcp.pop %v1020
        %v1022 = vmul.f32 %v1017, %v1021
        %v1023 = vpack.c.bf16 %v1022, %v1022
        %1024 = vrot.lane.b32.xlu0 %v960, 64
        %v1025 = vpop.permute.xlu0 %1024
        %vm1026 = vcmask 56320
        %v1028 = vsel %vm1026, %v1023, 0
        %vm1030 = vcmask 1042432
        %vm1031 = vcmask 1043456
        %v1032 = vsel %vm1030, 4294967295, 65535
        %v1033 = vsel %vm1031, %v1032, 0
        %v1035 = vand.u32 %v1025, %v1033
        %1037 = vmatprep.subr.bf16.mxu0 0
        %1038 = vmatpush1.bf16.msra.mxu0 %v1035
        %1039 = vmatprep.subr.bf16.mxu0 0
        %1040 = vmatpush1.bf16.msra.mxu0 0
        %1041 = vmatprep.subr.bf16.mxu0 0
        %1042 = vmatpush1.bf16.msra.mxu0 0
        %1043 = vmatprep.subr.bf16.mxu0 0
        %1044 = vmatpush1.bf16.msra.mxu0 0
        %1045 = vmatprep.subr.bf16.mxu0 0
        %1046 = vmatpush1.bf16.msra.mxu0 0
        %1047 = vmatprep.subr.bf16.mxu0 0
        %1048 = vmatpush1.bf16.msra.mxu0 0
        %1049 = vmatprep.subr.bf16.mxu0 0
        %1050 = vmatpush1.bf16.msra.mxu0 0
        %1051 = vmatprep.subr.bf16.mxu0 0
        %1052 = vmatpush1.bf16.msra.mxu0 0
        %1053 = vmatprep.subr.bf16.mxu0 0
        %1054 = vmatpush1.bf16.msra.mxu0 0
        %1055 = vmatprep.subr.bf16.mxu0 0
        %1056 = vmatpush1.bf16.msra.mxu0 0
        %1057 = vmatprep.subr.bf16.mxu0 0
        %1058 = vmatpush1.bf16.msra.mxu0 0
        %1059 = vmatprep.subr.bf16.mxu0 0
        %1060 = vmatpush1.bf16.msra.mxu0 0
        %1061 = vmatprep.subr.bf16.mxu0 0
        %1062 = vmatpush1.bf16.msra.mxu0 0
        %1063 = vmatprep.subr.bf16.mxu0 0
        %1064 = vmatpush1.bf16.msra.mxu0 0
        %1065 = vmatprep.subr.bf16.mxu0 0
        %1066 = vmatpush1.bf16.msra.mxu0 0
        %1067 = vmatprep.subr.bf16.mxu0 0
        %1068 = vmatpush1.bf16.msra.mxu0 0
        %1069 = vmatprep.mubr.bf16.mxu0 0
        %1070 = vmatmul.mubr.bf16.gmra.mrb[0].mxu0 %v1028
        %v1071 = vpop.f32.mrb[0].mxu0
        %v1072 = vadd.f32 0.0, %v1071
        %v1073 = vpop.f32.mrb[0].mxu0
        %v1074 = vpop.f32.mrb[0].mxu0
        %v1075 = vpop.f32.mrb[0].mxu0
        %1076 = vdwg.mxu0
        %v1077 = vmul.f32 %v1072, %v957
        %v1078 = vadd.f32 %v1077, 0.0
        %vm1079 = vcmp.ge.s32.totalorder %v840, 8
        %vm1080 = vcmp.lt.s32.totalorder %v840, 16
        %vm1081 = vmand %vm1079, %vm1080
        %v1082 = vsel %vm1081, 1, 0
        %v1083 = vcvt.s32.f32 %v1082
        %v1084 = vmul.f32 %v952, %v1083
        %v1085 = vpack.c.bf16 %v1084, %v1084
        %v1087 = vsel %vm849, %v1085, 0
        %1089 = vmatprep.subr.bf16.mxu0 0
        %1090 = vmatpush1.bf16.xpose.msra.mxu0 %v968
        %1091 = vmatprep.subr.bf16.mxu0 0
        %1092 = vmatpush1.bf16.xpose.msra.mxu0 0
        %1093 = vmatprep.subr.bf16.mxu0 0
        %1094 = vmatpush1.bf16.xpose.msra.mxu0 0
        %1095 = vmatprep.subr.bf16.mxu0 0
        %1096 = vmatpush1.bf16.xpose.msra.mxu0 0
        %1097 = vmatprep.subr.bf16.mxu0 0
        %1098 = vmatpush1.bf16.xpose.msra.mxu0 0
        %1099 = vmatprep.subr.bf16.mxu0 0
        %1100 = vmatpush1.bf16.xpose.msra.mxu0 0
        %1101 = vmatprep.subr.bf16.mxu0 0
        %1102 = vmatpush1.bf16.xpose.msra.mxu0 0
        %1103 = vmatprep.subr.bf16.mxu0 0
        %1104 = vmatpush1.bf16.xpose.msra.mxu0 0
        %1105 = vmatprep.subr.bf16.mxu0 0
        %1106 = vmatpush1.bf16.xpose.msra.mxu0 0
        %1107 = vmatprep.subr.bf16.mxu0 0
        %1108 = vmatpush1.bf16.xpose.msra.mxu0 0
        %1109 = vmatprep.subr.bf16.mxu0 0
        %1110 = vmatpush1.bf16.xpose.msra.mxu0 0
        %1111 = vmatprep.subr.bf16.mxu0 0
        %1112 = vmatpush1.bf16.xpose.msra.mxu0 0
        %1113 = vmatprep.subr.bf16.mxu0 0
        %1114 = vmatpush1.bf16.xpose.msra.mxu0 0
        %1115 = vmatprep.subr.bf16.mxu0 0
        %1116 = vmatpush1.bf16.xpose.msra.mxu0 0
        %1117 = vmatprep.subr.bf16.mxu0 0
        %1118 = vmatpush1.bf16.xpose.msra.mxu0 0
        %1119 = vmatprep.subr.bf16.mxu0 0
        %1120 = vmatpush1.bf16.xpose.msra.mxu0 0
        %1121 = vmatprep.mubr.bf16.mxu0 0
        %1122 = vmatmul.mubr.bf16.gmra.mrb[0].mxu0 %v1087
        %v1123 = vpop.f32.mrb[0].mxu0
        %v1124 = vadd.f32 0.0, %v1123
        %v1125 = vpop.f32.mrb[0].mxu0
        %v1126 = vpop.f32.mrb[0].mxu0
        %v1127 = vpop.f32.mrb[0].mxu0
        %1128 = vdwg.mxu0
        %v1129 = vmul.f32 %v1124, 0.35355338
        %v1130 = vsel %vm1011, %v1129, -inf
        %1131 = vmax.xlane.f32.xlu0 %v1130
        %v1132 = vpop.xlane.xlu0 %1131
        %v1133 = vsub.f32 %v1129, %v1132
        %v1134 = vmul.f32 %v1133, 1.442695
        %v1135 = vpow.pop %v1134
        %v1136 = vsel %vm1011, %v1135, 0.0
        %1137 = vadd.xlane.f32.xlu0 %v1136
        %v1138 = vpop.xlane.xlu0 %1137
        %v1139 = vrcp.pop %v1138
        %v1140 = vmul.f32 %v1135, %v1139
        %v1141 = vpack.c.bf16 %v1140, %v1140
        %v1143 = vsel %vm1026, %v1141, 0
        %1145 = vmatprep.subr.bf16.mxu0 0
        %1146 = vmatpush1.bf16.msra.mxu0 %v1035
        %1147 = vmatprep.subr.bf16.mxu0 0
        %1148 = vmatpush1.bf16.msra.mxu0 0
        %1149 = vmatprep.subr.bf16.mxu0 0
        %1150 = vmatpush1.bf16.msra.mxu0 0
        %1151 = vmatprep.subr.bf16.mxu0 0
        %1152 = vmatpush1.bf16.msra.mxu0 0
        %1153 = vmatprep.subr.bf16.mxu0 0
        %1154 = vmatpush1.bf16.msra.mxu0 0
        %1155 = vmatprep.subr.bf16.mxu0 0
        %1156 = vmatpush1.bf16.msra.mxu0 0
        %1157 = vmatprep.subr.bf16.mxu0 0
        %1158 = vmatpush1.bf16.msra.mxu0 0
        %1159 = vmatprep.subr.bf16.mxu0 0
        %1160 = vmatpush1.bf16.msra.mxu0 0
        %1161 = vmatprep.subr.bf16.mxu0 0
        %1162 = vmatpush1.bf16.msra.mxu0 0
        %1163 = vmatprep.subr.bf16.mxu0 0
        %1164 = vmatpush1.bf16.msra.mxu0 0
        %1165 = vmatprep.subr.bf16.mxu0 0
        %1166 = vmatpush1.bf16.msra.mxu0 0
        %1167 = vmatprep.subr.bf16.mxu0 0
        %1168 = vmatpush1.bf16.msra.mxu0 0
        %1169 = vmatprep.subr.bf16.mxu0 0
        %1170 = vmatpush1.bf16.msra.mxu0 0
        %1171 = vmatprep.subr.bf16.mxu0 0
        %1172 = vmatpush1.bf16.msra.mxu0 0
        %1173 = vmatprep.subr.bf16.mxu0 0
        %1174 = vmatpush1.bf16.msra.mxu0 0
        %1175 = vmatprep.subr.bf16.mxu0 0
        %1176 = vmatpush1.bf16.msra.mxu0 0
        %1177 = vmatprep.mubr.bf16.mxu0 0
        %1178 = vmatmul.mubr.bf16.gmra.mrb[0].mxu0 %v1143
        %v1179 = vpop.f32.mrb[0].mxu0
        %v1180 = vadd.f32 0.0, %v1179
        %v1181 = vpop.f32.mrb[0].mxu0
        %v1182 = vpop.f32.mrb[0].mxu0
        %v1183 = vpop.f32.mrb[0].mxu0
        %1184 = vdwg.mxu0
        %v1185 = vmul.f32 %v1180, %v1083
        %v1186 = vadd.f32 %v1078, %v1185
        %vm1187 = vcmp.ge.s32.totalorder %v840, 16
        %vm1188 = vcmp.lt.s32.totalorder %v840, 24
        %vm1189 = vmand %vm1187, %vm1188
        %v1190 = vsel %vm1189, 1, 0
        %v1191 = vcvt.s32.f32 %v1190
        %v1192 = vmul.f32 %v952, %v1191
        %v1193 = vpack.c.bf16 %v1192, %v1192
        %v1195 = vsel %vm849, %v1193, 0
        %1197 = vmatprep.subr.bf16.mxu0 0
        %1198 = vmatpush1.bf16.xpose.msra.mxu0 %v968
        %1199 = vmatprep.subr.bf16.mxu0 0
        %1200 = vmatpush1.bf16.xpose.msra.mxu0 0
        %1201 = vmatprep.subr.bf16.mxu0 0
        %1202 = vmatpush1.bf16.xpose.msra.mxu0 0
        %1203 = vmatprep.subr.bf16.mxu0 0
        %1204 = vmatpush1.bf16.xpose.msra.mxu0 0
        %1205 = vmatprep.subr.bf16.mxu0 0
        %1206 = vmatpush1.bf16.xpose.msra.mxu0 0
        %1207 = vmatprep.subr.bf16.mxu0 0
        %1208 = vmatpush1.bf16.xpose.msra.mxu0 0
        %1209 = vmatprep.subr.bf16.mxu0 0
        %1210 = vmatpush1.bf16.xpose.msra.mxu0 0
        %1211 = vmatprep.subr.bf16.mxu0 0
        %1212 = vmatpush1.bf16.xpose.msra.mxu0 0
        %1213 = vmatprep.subr.bf16.mxu0 0
        %1214 = vmatpush1.bf16.xpose.msra.mxu0 0
        %1215 = vmatprep.subr.bf16.mxu0 0
        %1216 = vmatpush1.bf16.xpose.msra.mxu0 0
        %1217 = vmatprep.subr.bf16.mxu0 0
        %1218 = vmatpush1.bf16.xpose.msra.mxu0 0
        %1219 = vmatprep.subr.bf16.mxu0 0
        %1220 = vmatpush1.bf16.xpose.msra.mxu0 0
        %1221 = vmatprep.subr.bf16.mxu0 0
        %1222 = vmatpush1.bf16.xpose.msra.mxu0 0
        %1223 = vmatprep.subr.bf16.mxu0 0
        %1224 = vmatpush1.bf16.xpose.msra.mxu0 0
        %1225 = vmatprep.subr.bf16.mxu0 0
        %1226 = vmatpush1.bf16.xpose.msra.mxu0 0
        %1227 = vmatprep.subr.bf16.mxu0 0
        %1228 = vmatpush1.bf16.xpose.msra.mxu0 0
        %1229 = vmatprep.mubr.bf16.mxu0 0
        %1230 = vmatmul.mubr.bf16.gmra.mrb[0].mxu0 %v1195
        %v1231 = vpop.f32.mrb[0].mxu0
        %v1232 = vadd.f32 0.0, %v1231
        %v1233 = vpop.f32.mrb[0].mxu0
        %v1234 = vpop.f32.mrb[0].mxu0
        %v1235 = vpop.f32.mrb[0].mxu0
        %1236 = vdwg.mxu0
        %v1237 = vmul.f32 %v1232, 0.35355338
        %v1238 = vsel %vm1011, %v1237, -inf
        %1239 = vmax.xlane.f32.xlu0 %v1238
        %v1240 = vpop.xlane.xlu0 %1239
        %v1241 = vsub.f32 %v1237, %v1240
        %v1242 = vmul.f32 %v1241, 1.442695
        %v1243 = vpow.pop %v1242
        %v1244 = vsel %vm1011, %v1243, 0.0
        %1245 = vadd.xlane.f32.xlu0 %v1244
        %v1246 = vpop.xlane.xlu0 %1245
        %v1247 = vrcp.pop %v1246
        %v1248 = vmul.f32 %v1243, %v1247
        %v1249 = vpack.c.bf16 %v1248, %v1248
        %v1251 = vsel %vm1026, %v1249, 0
        %1253 = vmatprep.subr.bf16.mxu0 0
        %1254 = vmatpush1.bf16.msra.mxu0 %v1035
        %1255 = vmatprep.subr.bf16.mxu0 0
        %1256 = vmatpush1.bf16.msra.mxu0 0
        %1257 = vmatprep.subr.bf16.mxu0 0
        %1258 = vmatpush1.bf16.msra.mxu0 0
        %1259 = vmatprep.subr.bf16.mxu0 0
        %1260 = vmatpush1.bf16.msra.mxu0 0
        %1261 = vmatprep.subr.bf16.mxu0 0
        %1262 = vmatpush1.bf16.msra.mxu0 0
        %1263 = vmatprep.subr.bf16.mxu0 0
        %1264 = vmatpush1.bf16.msra.mxu0 0
        %1265 = vmatprep.subr.bf16.mxu0 0
        %1266 = vmatpush1.bf16.msra.mxu0 0
        %1267 = vmatprep.subr.bf16.mxu0 0
        %1268 = vmatpush1.bf16.msra.mxu0 0
        %1269 = vmatprep.subr.bf16.mxu0 0
        %1270 = vmatpush1.bf16.msra.mxu0 0
        %1271 = vmatprep.subr.bf16.mxu0 0
        %1272 = vmatpush1.bf16.msra.mxu0 0
        %1273 = vmatprep.subr.bf16.mxu0 0
        %1274 = vmatpush1.bf16.msra.mxu0 0
        %1275 = vmatprep.subr.bf16.mxu0 0
        %1276 = vmatpush1.bf16.msra.mxu0 0
        %1277 = vmatprep.subr.bf16.mxu0 0
        %1278 = vmatpush1.bf16.msra.mxu0 0
        %1279 = vmatprep.subr.bf16.mxu0 0
        %1280 = vmatpush1.bf16.msra.mxu0 0
        %1281 = vmatprep.subr.bf16.mxu0 0
        %1282 = vmatpush1.bf16.msra.mxu0 0
        %1283 = vmatprep.subr.bf16.mxu0 0
        %1284 = vmatpush1.bf16.msra.mxu0 0
        %1285 = vmatprep.mubr.bf16.mxu0 0
        %1286 = vmatmul.mubr.bf16.gmra.mrb[0].mxu0 %v1251
        %v1287 = vpop.f32.mrb[0].mxu0
        %v1288 = vadd.f32 0.0, %v1287
        %v1289 = vpop.f32.mrb[0].mxu0
        %v1290 = vpop.f32.mrb[0].mxu0
        %v1291 = vpop.f32.mrb[0].mxu0
        %1292 = vdwg.mxu0
        %v1293 = vmul.f32 %v1288, %v1191
        %v1294 = vadd.f32 %v1186, %v1293
        %vm1295 = vcmp.ge.s32.totalorder %v840, 24
        %vm1296 = vcmp.lt.s32.totalorder %v840, 32
        %vm1297 = vmand %vm1295, %vm1296
        %v1298 = vsel %vm1297, 1, 0
        %v1299 = vcvt.s32.f32 %v1298
        %v1300 = vmul.f32 %v952, %v1299
        %v1301 = vpack.c.bf16 %v1300, %v1300
        %v1303 = vsel %vm849, %v1301, 0
        %1305 = vmatprep.subr.bf16.mxu0 0
        %1306 = vmatpush1.bf16.xpose.msra.mxu0 %v968
        %1307 = vmatprep.subr.bf16.mxu0 0
        %1308 = vmatpush1.bf16.xpose.msra.mxu0 0
        %1309 = vmatprep.subr.bf16.mxu0 0
        %1310 = vmatpush1.bf16.xpose.msra.mxu0 0
        %1311 = vmatprep.subr.bf16.mxu0 0
        %1312 = vmatpush1.bf16.xpose.msra.mxu0 0
        %1313 = vmatprep.subr.bf16.mxu0 0
        %1314 = vmatpush1.bf16.xpose.msra.mxu0 0
        %1315 = vmatprep.subr.bf16.mxu0 0
        %1316 = vmatpush1.bf16.xpose.msra.mxu0 0
        %1317 = vmatprep.subr.bf16.mxu0 0
        %1318 = vmatpush1.bf16.xpose.msra.mxu0 0
        %1319 = vmatprep.subr.bf16.mxu0 0
        %1320 = vmatpush1.bf16.xpose.msra.mxu0 0
        %1321 = vmatprep.subr.bf16.mxu0 0
        %1322 = vmatpush1.bf16.xpose.msra.mxu0 0
        %1323 = vmatprep.subr.bf16.mxu0 0
        %1324 = vmatpush1.bf16.xpose.msra.mxu0 0
        %1325 = vmatprep.subr.bf16.mxu0 0
        %1326 = vmatpush1.bf16.xpose.msra.mxu0 0
        %1327 = vmatprep.subr.bf16.mxu0 0
        %1328 = vmatpush1.bf16.xpose.msra.mxu0 0
        %1329 = vmatprep.subr.bf16.mxu0 0
        %1330 = vmatpush1.bf16.xpose.msra.mxu0 0
        %1331 = vmatprep.subr.bf16.mxu0 0
        %1332 = vmatpush1.bf16.xpose.msra.mxu0 0
        %1333 = vmatprep.subr.bf16.mxu0 0
        %1334 = vmatpush1.bf16.xpose.msra.mxu0 0
        %1335 = vmatprep.subr.bf16.mxu0 0
        %1336 = vmatpush1.bf16.xpose.msra.mxu0 0
        %1337 = vmatprep.mubr.bf16.mxu0 0
        %1338 = vmatmul.mubr.bf16.gmra.mrb[0].mxu0 %v1303
        %v1339 = vpop.f32.mrb[0].mxu0
        %v1340 = vadd.f32 0.0, %v1339
        %v1341 = vpop.f32.mrb[0].mxu0
        %v1342 = vpop.f32.mrb[0].mxu0
        %v1343 = vpop.f32.mrb[0].mxu0
        %1344 = vdwg.mxu0
        %v1345 = vmul.f32 %v1340, 0.35355338
        %v1346 = vsel %vm1011, %v1345, -inf
        %1347 = vmax.xlane.f32.xlu0 %v1346
        %v1348 = vpop.xlane.xlu0 %1347
        %v1349 = vsub.f32 %v1345, %v1348
        %v1350 = vmul.f32 %v1349, 1.442695
        %v1351 = vpow.pop %v1350
        %v1352 = vsel %vm1011, %v1351, 0.0
        %1353 = vadd.xlane.f32.xlu0 %v1352
        %v1354 = vpop.xlane.xlu0 %1353
        %v1355 = vrcp.pop %v1354
        %v1356 = vmul.f32 %v1351, %v1355
        %v1357 = vpack.c.bf16 %v1356, %v1356
        %v1359 = vsel %vm1026, %v1357, 0
        %1361 = vmatprep.subr.bf16.mxu0 0
        %1362 = vmatpush1.bf16.msra.mxu0 %v1035
        %1363 = vmatprep.subr.bf16.mxu0 0
        %1364 = vmatpush1.bf16.msra.mxu0 0
        %1365 = vmatprep.subr.bf16.mxu0 0
        %1366 = vmatpush1.bf16.msra.mxu0 0
        %1367 = vmatprep.subr.bf16.mxu0 0
        %1368 = vmatpush1.bf16.msra.mxu0 0
        %1369 = vmatprep.subr.bf16.mxu0 0
        %1370 = vmatpush1.bf16.msra.mxu0 0
        %1371 = vmatprep.subr.bf16.mxu0 0
        %1372 = vmatpush1.bf16.msra.mxu0 0
        %1373 = vmatprep.subr.bf16.mxu0 0
        %1374 = vmatpush1.bf16.msra.mxu0 0
        %1375 = vmatprep.subr.bf16.mxu0 0
        %1376 = vmatpush1.bf16.msra.mxu0 0
        %1377 = vmatprep.subr.bf16.mxu0 0
        %1378 = vmatpush1.bf16.msra.mxu0 0
        %1379 = vmatprep.subr.bf16.mxu0 0
        %1380 = vmatpush1.bf16.msra.mxu0 0
        %1381 = vmatprep.subr.bf16.mxu0 0
        %1382 = vmatpush1.bf16.msra.mxu0 0
        %1383 = vmatprep.subr.bf16.mxu0 0
        %1384 = vmatpush1.bf16.msra.mxu0 0
        %1385 = vmatprep.subr.bf16.mxu0 0
        %1386 = vmatpush1.bf16.msra.mxu0 0
        %1387 = vmatprep.subr.bf16.mxu0 0
        %1388 = vmatpush1.bf16.msra.mxu0 0
        %1389 = vmatprep.subr.bf16.mxu0 0
        %1390 = vmatpush1.bf16.msra.mxu0 0
        %1391 = vmatprep.subr.bf16.mxu0 0
        %1392 = vmatpush1.bf16.msra.mxu0 0
        %1393 = vmatprep.mubr.bf16.mxu0 0
        %1394 = vmatmul.mubr.bf16.gmra.mrb[0].mxu0 %v1359
        %v1395 = vpop.f32.mrb[0].mxu0
        %v1396 = vadd.f32 0.0, %v1395
        %v1397 = vpop.f32.mrb[0].mxu0
        %v1398 = vpop.f32.mrb[0].mxu0
        %v1399 = vpop.f32.mrb[0].mxu0
        %1400 = vdwg.mxu0
        %v1401 = vmul.f32 %v1396, %v1299
        %v1402 = vadd.f32 %v1294, %v1401
        %v1403 = vld [vmem:[#allocation7] sm:$0x1]
        %v1404 = vld [vmem:[%s5] sm:$0xff]
        %v1405 = vld [vmem:[%s5 + $0x8] sm:$0xff]
        %v1406 = vld [vmem:[%s5 + $0x10] sm:$0xff]
        %v1407 = vld [vmem:[%s5 + $0x18] sm:$0xff]
        %v1408 = vpack.c.bf16 %v1402, %v1402
        %v1409 = vpack.c.bf16 %v1405, %v1404
        %v1410 = vpack.c.bf16 %v1407, %v1406
        %v1412 = vsel %vm849, %v1408, 0
        %1414 = vmatprep.subr.bf16.mxu0 0
        %1415 = vmatpush1.bf16.msra.mxu0 %v1409
        %1416 = vmatprep.subr.bf16.mxu0 0
        %1417 = vmatpush1.bf16.msra.mxu0 %v1410
        %1418 = vmatprep.subr.bf16.mxu0 0
        %1419 = vmatpush1.bf16.msra.mxu0 0
        %1420 = vmatprep.subr.bf16.mxu0 0
        %1421 = vmatpush1.bf16.msra.mxu0 0
        %1422 = vmatprep.subr.bf16.mxu0 0
        %1423 = vmatpush1.bf16.msra.mxu0 0
        %1424 = vmatprep.subr.bf16.mxu0 0
        %1425 = vmatpush1.bf16.msra.mxu0 0
        %1426 = vmatprep.subr.bf16.mxu0 0
        %1427 = vmatpush1.bf16.msra.mxu0 0
        %1428 = vmatprep.subr.bf16.mxu0 0
        %1429 = vmatpush1.bf16.msra.mxu0 0
        %1430 = vmatprep.subr.bf16.mxu0 0
        %1431 = vmatpush1.bf16.msra.mxu0 0
        %1432 = vmatprep.subr.bf16.mxu0 0
        %1433 = vmatpush1.bf16.msra.mxu0 0
        %1434 = vmatprep.subr.bf16.mxu0 0
        %1435 = vmatpush1.bf16.msra.mxu0 0
        %1436 = vmatprep.subr.bf16.mxu0 0
        %1437 = vmatpush1.bf16.msra.mxu0 0
        %1438 = vmatprep.subr.bf16.mxu0 0
        %1439 = vmatpush1.bf16.msra.mxu0 0
        %1440 = vmatprep.subr.bf16.mxu0 0
        %1441 = vmatpush1.bf16.msra.mxu0 0
        %1442 = vmatprep.subr.bf16.mxu0 0
        %1443 = vmatpush1.bf16.msra.mxu0 0
        %1444 = vmatprep.subr.bf16.mxu0 0
        %1445 = vmatpush1.bf16.msra.mxu0 0
        %1446 = vmatprep.mubr.bf16.mxu0 0
        %1447 = vmatmul.mubr.bf16.gmra.mrb[0].mxu0 %v1412
        %v1448 = vpop.f32.mrb[0].mxu0
        %v1449 = vadd.f32 0.0, %v1448
        %v1450 = vpop.f32.mrb[0].mxu0
        %v1451 = vpop.f32.mrb[0].mxu0
        %v1452 = vpop.f32.mrb[0].mxu0
        %1453 = vdwg.mxu0
        %v1455 = vlaneseq
        %v1456 = vshrl.u32 %v1455, 7
        %v1457 = vsub.s32 0, %v1456
        %v1458 = vrot.slane %v1403, %v1457
        %v1460 = vadd.f32 %v1458, %v1449
        %v1461 = vmul.f32 %v1402, %v1402
        %s1462 = scalar_lea.vmem %s5, 32
        %v1463 = vld [vmem:[%s1462] sm:$0xff]
        %v1464 = vld [vmem:[%s1462 + $0x8] sm:$0xff]
        %v1465 = vld [vmem:[%s1462 + $0x10] sm:$0xff]
        %v1466 = vld [vmem:[%s1462 + $0x18] sm:$0xff]
        %v1467 = vpack.c.bf16 %v1461, %v1461
        %v1468 = vpack.c.bf16 %v1464, %v1463
        %v1469 = vpack.c.bf16 %v1466, %v1465
        %v1471 = vsel %vm849, %v1467, 0
        %1473 = vmatprep.subr.bf16.mxu0 0
        %1474 = vmatpush1.bf16.msra.mxu0 %v1468
        %1475 = vmatprep.subr.bf16.mxu0 0
        %1476 = vmatpush1.bf16.msra.mxu0 %v1469
        %1477 = vmatprep.subr.bf16.mxu0 0
        %1478 = vmatpush1.bf16.msra.mxu0 0
        %1479 = vmatprep.subr.bf16.mxu0 0
        %1480 = vmatpush1.bf16.msra.mxu0 0
        %1481 = vmatprep.subr.bf16.mxu0 0
        %1482 = vmatpush1.bf16.msra.mxu0 0
        %1483 = vmatprep.subr.bf16.mxu0 0
        %1484 = vmatpush1.bf16.msra.mxu0 0
        %1485 = vmatprep.subr.bf16.mxu0 0
        %1486 = vmatpush1.bf16.msra.mxu0 0
        %1487 = vmatprep.subr.bf16.mxu0 0
        %1488 = vmatpush1.bf16.msra.mxu0 0
        %1489 = vmatprep.subr.bf16.mxu0 0
        %1490 = vmatpush1.bf16.msra.mxu0 0
        %1491 = vmatprep.subr.bf16.mxu0 0
        %1492 = vmatpush1.bf16.msra.mxu0 0
        %1493 = vmatprep.subr.bf16.mxu0 0
        %1494 = vmatpush1.bf16.msra.mxu0 0
        %1495 = vmatprep.subr.bf16.mxu0 0
        %1496 = vmatpush1.bf16.msra.mxu0 0
        %1497 = vmatprep.subr.bf16.mxu0 0
        %1498 = vmatpush1.bf16.msra.mxu0 0
        %1499 = vmatprep.subr.bf16.mxu0 0
        %1500 = vmatpush1.bf16.msra.mxu0 0
        %1501 = vmatprep.subr.bf16.mxu0 0
        %1502 = vmatpush1.bf16.msra.mxu0 0
        %1503 = vmatprep.subr.bf16.mxu0 0
        %1504 = vmatpush1.bf16.msra.mxu0 0
        %1505 = vmatprep.mubr.bf16.mxu0 0
        %1506 = vmatmul.mubr.bf16.gmra.mrb[0].mxu0 %v1471
        %v1507 = vpop.f32.mrb[0].mxu0
        %v1508 = vadd.f32 0.0, %v1507
        %v1509 = vpop.f32.mrb[0].mxu0
        %v1510 = vpop.f32.mrb[0].mxu0
        %v1511 = vpop.f32.mrb[0].mxu0
        %1512 = vdwg.mxu0
        %v1513 = vadd.f32 %v1460, %v1508
        %v1514 = vadd.f32 %v834, %v1513
        %v1515 = vld [vmem:[#allocation13] sm:$0x1]
        %v1516 = vld [vmem:[#allocation14] sm:$0x1]
        %vm1517 = vcmask 260096
        %v1518 = vsel %vm1517, %v1514, 0.0
        %1519 = vadd.xlane.f32.xlu0 %v1518
        %v1520 = vpop.xlane.xlu0 %1519
        %v1521 = vrcp.pop 32.0
        %v1522 = vmul.f32 %v1520, %v1521
        %v1523 = vsub.f32 %v1514, %v1522
        %v1524 = vmul.f32 %v1523, %v1523
        %v1525 = vsel %vm1517, %v1524, 0.0
        %1526 = vadd.xlane.f32.xlu0 %v1525
        %v1527 = vpop.xlane.xlu0 %1526
        %v1528 = vmul.f32 %v1527, %v1521
        %v1529 = vadd.f32 %v1528, 1e-05
        %v1530 = vrsqrt.pop %v1529
        %v1531 = vmul.f32 %v1523, %v1530
        %v1533 = vlaneseq
        %v1534 = vshrl.u32 %v1533, 7
        %v1535 = vsub.s32 0, %v1534
        %v1536 = vrot.slane %v1515, %v1535
        %v1538 = vmul.f32 %v1531, %v1536
        %v1540 = vlaneseq
        %v1541 = vshrl.u32 %v1540, 7
        %v1542 = vsub.s32 0, %v1541
        %v1543 = vrot.slane %v1516, %v1542
        %v1545 = vadd.f32 %v1538, %v1543
        %v1546 = vld [vmem:[#allocation8] sm:$0xff]
        %v1547 = vld [vmem:[#allocation8 + $0x8] sm:$0xff]
        %v1548 = vld [vmem:[#allocation8 + $0x10] sm:$0xff]
        %v1549 = vld [vmem:[#allocation8 + $0x18] sm:$0xff]
        %v1550 = vpack.c.bf16 %v1545, %v1545
        %v1551 = vpack.c.bf16 %v1547, %v1546
        %v1552 = vpack.c.bf16 %v1549, %v1548
        %v1553 = vld [vmem:[#allocation10] sm:$0x1]
        %v1555 = vlaneseq
        %v1556 = vshrl.u32 %v1555, 7
        %v1557 = vsub.s32 0, %v1556
        %v1558 = vrot.slane %v1553, %v1557
        %v1561 = vsel %vm849, %v1550, 0
        %1563 = vmatprep.subr.bf16.mxu0 0
        %1564 = vmatpush1.bf16.msra.mxu0 %v1551
        %1565 = vmatprep.subr.bf16.mxu0 0
        %1566 = vmatpush1.bf16.msra.mxu0 %v1552
        %1567 = vmatprep.subr.bf16.mxu0 0
        %1568 = vmatpush1.bf16.msra.mxu0 0
        %1569 = vmatprep.subr.bf16.mxu0 0
        %1570 = vmatpush1.bf16.msra.mxu0 0
        %1571 = vmatprep.subr.bf16.mxu0 0
        %1572 = vmatpush1.bf16.msra.mxu0 0
        %1573 = vmatprep.subr.bf16.mxu0 0
        %1574 = vmatpush1.bf16.msra.mxu0 0
        %1575 = vmatprep.subr.bf16.mxu0 0
        %1576 = vmatpush1.bf16.msra.mxu0 0
        %1577 = vmatprep.subr.bf16.mxu0 0
        %1578 = vmatpush1.bf16.msra.mxu0 0
        %1579 = vmatprep.subr.bf16.mxu0 0
        %1580 = vmatpush1.bf16.msra.mxu0 0
        %1581 = vmatprep.subr.bf16.mxu0 0
        %1582 = vmatpush1.bf16.msra.mxu0 0
        %1583 = vmatprep.subr.bf16.mxu0 0
        %1584 = vmatpush1.bf16.msra.mxu0 0
        %1585 = vmatprep.subr.bf16.mxu0 0
        %1586 = vmatpush1.bf16.msra.mxu0 0
        %1587 = vmatprep.subr.bf16.mxu0 0
        %1588 = vmatpush1.bf16.msra.mxu0 0
        %1589 = vmatprep.subr.bf16.mxu0 0
        %1590 = vmatpush1.bf16.msra.mxu0 0
        %1591 = vmatprep.subr.bf16.mxu0 0
        %1592 = vmatpush1.bf16.msra.mxu0 0
        %1593 = vmatprep.subr.bf16.mxu0 0
        %1594 = vmatpush1.bf16.msra.mxu0 0
        %1595 = vmatprep.mubr.bf16.mxu0 0
        %1596 = vmatmul.mubr.bf16.gmra.mrb[0].mxu0 %v1561
        %v1597 = vpop.f32.mrb[0].mxu0
        %v1598 = vadd.f32 %v1558, %v1597
        %v1599 = vpop.f32.mrb[0].mxu0
        %v1600 = vpop.f32.mrb[0].mxu0
        %v1601 = vpop.f32.mrb[0].mxu0
        %1602 = vdwg.mxu0
        %v1603 = vmax.f32 %v1598, 0.0
        %v1604 = vld [vmem:[%s9] sm:$0xff]
        %v1605 = vld [vmem:[%s9 + $0x8] sm:$0xff]
        %v1606 = vld [vmem:[%s9 + $0x10] sm:$0xff]
        %v1607 = vld [vmem:[%s9 + $0x18] sm:$0xff]
        %v1608 = vld [vmem:[%s9 + $0x20] sm:$0xff]
        %v1609 = vld [vmem:[%s9 + $0x28] sm:$0xff]
        %v1610 = vld [vmem:[%s9 + $0x30] sm:$0xff]
        %v1611 = vld [vmem:[%s9 + $0x38] sm:$0xff]
        %v1612 = vpack.c.bf16 %v1603, %v1603
        %v1613 = vpack.c.bf16 %v1605, %v1604
        %v1614 = vpack.c.bf16 %v1607, %v1606
        %v1615 = vpack.c.bf16 %v1609, %v1608
        %v1616 = vpack.c.bf16 %v1611, %v1610
        %v1617 = vld [vmem:[#allocation11] sm:$0x1]
        %v1619 = vlaneseq
        %v1620 = vshrl.u32 %v1619, 7
        %v1621 = vsub.s32 0, %v1620
        %v1622 = vrot.slane %v1617, %v1621
        %vm1624 = vcmask 523264
        %v1626 = vsel %vm1624, %v1612, 0
        %1628 = vmatprep.subr.bf16.mxu0 0
        %1629 = vmatpush1.bf16.msra.mxu0 %v1613
        %1630 = vmatprep.subr.bf16.mxu0 0
        %1631 = vmatpush1.bf16.msra.mxu0 %v1614
        %1632 = vmatprep.subr.bf16.mxu0 0
        %1633 = vmatpush1.bf16.msra.mxu0 %v1615
        %1634 = vmatprep.subr.bf16.mxu0 0
        %1635 = vmatpush1.bf16.msra.mxu0 %v1616
        %1636 = vmatprep.subr.bf16.mxu0 0
        %1637 = vmatpush1.bf16.msra.mxu0 0
        %1638 = vmatprep.subr.bf16.mxu0 0
        %1639 = vmatpush1.bf16.msra.mxu0 0
        %1640 = vmatprep.subr.bf16.mxu0 0
        %1641 = vmatpush1.bf16.msra.mxu0 0
        %1642 = vmatprep.subr.bf16.mxu0 0
        %1643 = vmatpush1.bf16.msra.mxu0 0
        %1644 = vmatprep.subr.bf16.mxu0 0
        %1645 = vmatpush1.bf16.msra.mxu0 0
        %1646 = vmatprep.subr.bf16.mxu0 0
        %1647 = vmatpush1.bf16.msra.mxu0 0
        %1648 = vmatprep.subr.bf16.mxu0 0
        %1649 = vmatpush1.bf16.msra.mxu0 0
        %1650 = vmatprep.subr.bf16.mxu0 0
        %1651 = vmatpush1.bf16.msra.mxu0 0
        %1652 = vmatprep.subr.bf16.mxu0 0
        %1653 = vmatpush1.bf16.msra.mxu0 0
        %1654 = vmatprep.subr.bf16.mxu0 0
        %1655 = vmatpush1.bf16.msra.mxu0 0
        %1656 = vmatprep.subr.bf16.mxu0 0
        %1657 = vmatpush1.bf16.msra.mxu0 0
        %1658 = vmatprep.subr.bf16.mxu0 0
        %1659 = vmatpush1.bf16.msra.mxu0 0
        %1660 = vmatprep.mubr.bf16.mxu0 0
        %1661 = vmatmul.mubr.bf16.gmra.mrb[0].mxu0 %v1626
        %v1662 = vpop.f32.mrb[0].mxu0
        %v1663 = vadd.f32 %v1622, %v1662
        %v1664 = vpop.f32.mrb[0].mxu0
        %v1665 = vpop.f32.mrb[0].mxu0
        %v1666 = vpop.f32.mrb[0].mxu0
        %1667 = vdwg.mxu0
        %v1668 = vadd.f32 %v1545, %v1663
        %v1669 = vld [vmem:[#allocation16] sm:$0x1]
        %v1670 = vld [vmem:[#allocation17] sm:$0x1]
        %v1671 = vsel %vm1517, %v1668, 0.0
        %1672 = vadd.xlane.f32.xlu0 %v1671
        %v1673 = vpop.xlane.xlu0 %1672
        %v1674 = vmul.f32 %v1673, %v1521
        %v1675 = vsub.f32 %v1668, %v1674
        %v1676 = vmul.f32 %v1675, %v1675
        %v1677 = vsel %vm1517, %v1676, 0.0
        %1678 = vadd.xlane.f32.xlu0 %v1677
        %v1679 = vpop.xlane.xlu0 %1678
        %v1680 = vmul.f32 %v1679, %v1521
        %v1681 = vadd.f32 %v1680, 1e-05
        %v1682 = vrsqrt.pop %v1681
        %v1683 = vmul.f32 %v1675, %v1682
        %v1685 = vlaneseq
        %v1686 = vshrl.u32 %v1685, 7
        %v1687 = vsub.s32 0, %v1686
        %v1688 = vrot.slane %v1669, %v1687
        %v1690 = vmul.f32 %v1683, %v1688
        %v1692 = vlaneseq
        %v1693 = vshrl.u32 %v1692, 7
        %v1694 = vsub.s32 0, %v1693
        %v1695 = vrot.slane %v1670, %v1694
        %v1697 = vadd.f32 %v1690, %v1695
        %s1698 = scalar_lea.vmem %s4, 1
        %v1699 = vld [vmem:[%s1698] sm:$0x1]
        %s1700 = scalar_lea.vmem %s3, 64
        %v1701 = vld [vmem:[%s1700] sm:$0xff]
        %v1702 = vld [vmem:[%s1700 + $0x8] sm:$0xff]
        %v1703 = vld [vmem:[%s1700 + $0x10] sm:$0xff]
        %v1704 = vld [vmem:[%s1700 + $0x18] sm:$0xff]
        %v1705 = vpack.c.bf16 %v1697, %v1697
        %v1706 = vpack.c.bf16 %v1702, %v1701
        %v1707 = vpack.c.bf16 %v1704, %v1703
        %v1709 = vsel %vm849, %v1705, 0
        %1711 = vmatprep.subr.bf16.mxu0 0
        %1712 = vmatpush1.bf16.msra.mxu0 %v1706
        %1713 = vmatprep.subr.bf16.mxu0 0
        %1714 = vmatpush1.bf16.msra.mxu0 %v1707
        %1715 = vmatprep.subr.bf16.mxu0 0
        %1716 = vmatpush1.bf16.msra.mxu0 0
        %1717 = vmatprep.subr.bf16.mxu0 0
        %1718 = vmatpush1.bf16.msra.mxu0 0
        %1719 = vmatprep.subr.bf16.mxu0 0
        %1720 = vmatpush1.bf16.msra.mxu0 0
        %1721 = vmatprep.subr.bf16.mxu0 0
        %1722 = vmatpush1.bf16.msra.mxu0 0
        %1723 = vmatprep.subr.bf16.mxu0 0
        %1724 = vmatpush1.bf16.msra.mxu0 0
        %1725 = vmatprep.subr.bf16.mxu0 0
        %1726 = vmatpush1.bf16.msra.mxu0 0
        %1727 = vmatprep.subr.bf16.mxu0 0
        %1728 = vmatpush1.bf16.msra.mxu0 0
        %1729 = vmatprep.subr.bf16.mxu0 0
        %1730 = vmatpush1.bf16.msra.mxu0 0
        %1731 = vmatprep.subr.bf16.mxu0 0
        %1732 = vmatpush1.bf16.msra.mxu0 0
        %1733 = vmatprep.subr.bf16.mxu0 0
        %1734 = vmatpush1.bf16.msra.mxu0 0
        %1735 = vmatprep.subr.bf16.mxu0 0
        %1736 = vmatpush1.bf16.msra.mxu0 0
        %1737 = vmatprep.subr.bf16.mxu0 0
        %1738 = vmatpush1.bf16.msra.mxu0 0
        %1739 = vmatprep.subr.bf16.mxu0 0
        %1740 = vmatpush1.bf16.msra.mxu0 0
        %1741 = vmatprep.subr.bf16.mxu0 0
        %1742 = vmatpush1.bf16.msra.mxu0 0
        %1743 = vmatprep.mubr.bf16.mxu0 0
        %1744 = vmatmul.mubr.bf16.gmra.mrb[0].mxu0 %v1709
        %v1745 = vpop.f32.mrb[0].mxu0
        %v1746 = vadd.f32 0.0, %v1745
        %v1747 = vpop.f32.mrb[0].mxu0
        %v1748 = vpop.f32.mrb[0].mxu0
        %v1749 = vpop.f32.mrb[0].mxu0
        %1750 = vdwg.mxu0
        %v1752 = vlaneseq
        %v1753 = vshrl.u32 %v1752, 7
        %v1754 = vsub.s32 0, %v1753
        %v1755 = vrot.slane %v1699, %v1754
        %v1757 = vadd.f32 %v1755, %v1746
        %v1758 = vmul.f32 %v1697, %v1697
        %s1759 = scalar_lea.vmem %s3, 96
        %v1760 = vld [vmem:[%s1759] sm:$0xff]
        %v1761 = vld [vmem:[%s1759 + $0x8] sm:$0xff]
        %v1762 = vld [vmem:[%s1759 + $0x10] sm:$0xff]
        %v1763 = vld [vmem:[%s1759 + $0x18] sm:$0xff]
        %v1764 = vpack.c.bf16 %v1758, %v1758
        %v1765 = vpack.c.bf16 %v1761, %v1760
        %v1766 = vpack.c.bf16 %v1763, %v1762
        %v1768 = vsel %vm849, %v1764, 0
        %1770 = vmatprep.subr.bf16.mxu0 0
        %1771 = vmatpush1.bf16.msra.mxu0 %v1765
        %1772 = vmatprep.subr.bf16.mxu0 0
        %1773 = vmatpush1.bf16.msra.mxu0 %v1766
        %1774 = vmatprep.subr.bf16.mxu0 0
        %1775 = vmatpush1.bf16.msra.mxu0 0
        %1776 = vmatprep.subr.bf16.mxu0 0
        %1777 = vmatpush1.bf16.msra.mxu0 0
        %1778 = vmatprep.subr.bf16.mxu0 0
        %1779 = vmatpush1.bf16.msra.mxu0 0
        %1780 = vmatprep.subr.bf16.mxu0 0
        %1781 = vmatpush1.bf16.msra.mxu0 0
        %1782 = vmatprep.subr.bf16.mxu0 0
        %1783 = vmatpush1.bf16.msra.mxu0 0
        %1784 = vmatprep.subr.bf16.mxu0 0
        %1785 = vmatpush1.bf16.msra.mxu0 0
        %1786 = vmatprep.subr.bf16.mxu0 0
        %1787 = vmatpush1.bf16.msra.mxu0 0
        %1788 = vmatprep.subr.bf16.mxu0 0
        %1789 = vmatpush1.bf16.msra.mxu0 0
        %1790 = vmatprep.subr.bf16.mxu0 0
        %1791 = vmatpush1.bf16.msra.mxu0 0
        %1792 = vmatprep.subr.bf16.mxu0 0
        %1793 = vmatpush1.bf16.msra.mxu0 0
        %1794 = vmatprep.subr.bf16.mxu0 0
        %1795 = vmatpush1.bf16.msra.mxu0 0
        %1796 = vmatprep.subr.bf16.mxu0 0
        %1797 = vmatpush1.bf16.msra.mxu0 0
        %1798 = vmatprep.subr.bf16.mxu0 0
        %1799 = vmatpush1.bf16.msra.mxu0 0
        %1800 = vmatprep.subr.bf16.mxu0 0
        %1801 = vmatpush1.bf16.msra.mxu0 0
        %1802 = vmatprep.mubr.bf16.mxu0 0
        %1803 = vmatmul.mubr.bf16.gmra.mrb[0].mxu0 %v1768
        %v1804 = vpop.f32.mrb[0].mxu0
        %v1805 = vadd.f32 0.0, %v1804
        %v1806 = vpop.f32.mrb[0].mxu0
        %v1807 = vpop.f32.mrb[0].mxu0
        %v1808 = vpop.f32.mrb[0].mxu0
        %1809 = vdwg.mxu0
        %v1810 = vadd.f32 %v1757, %v1805
        %v1811 = vmul.f32 %v1810, %v957
        %v1812 = vpack.c.bf16 %v1811, %v1811
        %v1813 = vpack.c.bf16 %v1810, %v1810
        %1815 = vrot.lane.b32.xlu0 %v1813, 96
        %v1816 = vpop.permute.xlu0 %1815
        %v1818 = vsel %vm849, %v1812, 0
        %v1821 = vsel %vm849, %v1816, 0
        %1823 = vmatprep.subr.bf16.mxu0 0
        %1824 = vmatpush1.bf16.xpose.msra.mxu0 %v1821
        %1825 = vmatprep.subr.bf16.mxu0 0
        %1826 = vmatpush1.bf16.xpose.msra.mxu0 0
        %1827 = vmatprep.subr.bf16.mxu0 0
        %1828 = vmatpush1.bf16.xpose.msra.mxu0 0
        %1829 = vmatprep.subr.bf16.mxu0 0
        %1830 = vmatpush1.bf16.xpose.msra.mxu0 0
        %1831 = vmatprep.subr.bf16.mxu0 0
        %1832 = vmatpush1.bf16.xpose.msra.mxu0 0
        %1833 = vmatprep.subr.bf16.mxu0 0
        %1834 = vmatpush1.bf16.xpose.msra.mxu0 0
        %1835 = vmatprep.subr.bf16.mxu0 0
        %1836 = vmatpush1.bf16.xpose.msra.mxu0 0
        %1837 = vmatprep.subr.bf16.mxu0 0
        %1838 = vmatpush1.bf16.xpose.msra.mxu0 0
        %1839 = vmatprep.subr.bf16.mxu0 0
        %1840 = vmatpush1.bf16.xpose.msra.mxu0 0
        %1841 = vmatprep.subr.bf16.mxu0 0
        %1842 = vmatpush1.bf16.xpose.msra.mxu0 0
        %1843 = vmatprep.subr.bf16.mxu0 0
        %1844 = vmatpush1.bf16.xpose.msra.mxu0 0
        %1845 = vmatprep.subr.bf16.mxu0 0
        %1846 = vmatpush1.bf16.xpose.msra.mxu0 0
        %1847 = vmatprep.subr.bf16.mxu0 0
        %1848 = vmatpush1.bf16.xpose.msra.mxu0 0
        %1849 = vmatprep.subr.bf16.mxu0 0
        %1850 = vmatpush1.bf16.xpose.msra.mxu0 0
        %1851 = vmatprep.subr.bf16.mxu0 0
        %1852 = vmatpush1.bf16.xpose.msra.mxu0 0
        %1853 = vmatprep.subr.bf16.mxu0 0
        %1854 = vmatpush1.bf16.xpose.msra.mxu0 0
        %1855 = vmatprep.mubr.bf16.mxu0 0
        %1856 = vmatmul.mubr.bf16.gmra.mrb[0].mxu0 %v1818
        %v1857 = vpop.f32.mrb[0].mxu0
        %v1858 = vadd.f32 0.0, %v1857
        %v1859 = vpop.f32.mrb[0].mxu0
        %v1860 = vpop.f32.mrb[0].mxu0
        %v1861 = vpop.f32.mrb[0].mxu0
        %1862 = vdwg.mxu0
        %v1863 = vmul.f32 %v1858, 0.35355338
        %v1864 = vsel %vm1011, %v1863, -inf
        %1865 = vmax.xlane.f32.xlu0 %v1864
        %v1866 = vpop.xlane.xlu0 %1865
        %v1867 = vsub.f32 %v1863, %v1866
        %v1868 = vmul.f32 %v1867, 1.442695
        %v1869 = vpow.pop %v1868
        %v1870 = vsel %vm1011, %v1869, 0.0
        %1871 = vadd.xlane.f32.xlu0 %v1870
        %v1872 = vpop.xlane.xlu0 %1871
        %v1873 = vrcp.pop %v1872
        %v1874 = vmul.f32 %v1869, %v1873
        %v1875 = vpack.c.bf16 %v1874, %v1874
        %1876 = vrot.lane.b32.xlu0 %v1813, 64
        %v1877 = vpop.permute.xlu0 %1876
        %v1879 = vsel %vm1026, %v1875, 0
        %v1882 = vand.u32 %v1877, %v1033
        %1884 = vmatprep.subr.bf16.mxu0 0
        %1885 = vmatpush1.bf16.msra.mxu0 %v1882
        %1886 = vmatprep.subr.bf16.mxu0 0
        %1887 = vmatpush1.bf16.msra.mxu0 0
        %1888 = vmatprep.subr.bf16.mxu0 0
        %1889 = vmatpush1.bf16.msra.mxu0 0
        %1890 = vmatprep.subr.bf16.mxu0 0
        %1891 = vmatpush1.bf16.msra.mxu0 0
        %1892 = vmatprep.subr.bf16.mxu0 0
        %1893 = vmatpush1.bf16.msra.mxu0 0
        %1894 = vmatprep.subr.bf16.mxu0 0
        %1895 = vmatpush1.bf16.msra.mxu0 0
        %1896 = vmatprep.subr.bf16.mxu0 0
        %1897 = vmatpush1.bf16.msra.mxu0 0
        %1898 = vmatprep.subr.bf16.mxu0 0
        %1899 = vmatpush1.bf16.msra.mxu0 0
        %1900 = vmatprep.subr.bf16.mxu0 0
        %1901 = vmatpush1.bf16.msra.mxu0 0
        %1902 = vmatprep.subr.bf16.mxu0 0
        %1903 = vmatpush1.bf16.msra.mxu0 0
        %1904 = vmatprep.subr.bf16.mxu0 0
        %1905 = vmatpush1.bf16.msra.mxu0 0
        %1906 = vmatprep.subr.bf16.mxu0 0
        %1907 = vmatpush1.bf16.msra.mxu0 0
        %1908 = vmatprep.subr.bf16.mxu0 0
        %1909 = vmatpush1.bf16.msra.mxu0 0
        %1910 = vmatprep.subr.bf16.mxu0 0
        %1911 = vmatpush1.bf16.msra.mxu0 0
        %1912 = vmatprep.subr.bf16.mxu0 0
        %1913 = vmatpush1.bf16.msra.mxu0 0
        %1914 = vmatprep.subr.bf16.mxu0 0
        %1915 = vmatpush1.bf16.msra.mxu0 0
        %1916 = vmatprep.mubr.bf16.mxu0 0
        %1917 = vmatmul.mubr.bf16.gmra.mrb[0].mxu0 %v1879
        %v1918 = vpop.f32.mrb[0].mxu0
        %v1919 = vadd.f32 0.0, %v1918
        %v1920 = vpop.f32.mrb[0].mxu0
        %v1921 = vpop.f32.mrb[0].mxu0
        %v1922 = vpop.f32.mrb[0].mxu0
        %1923 = vdwg.mxu0
        %v1924 = vmul.f32 %v1919, %v957
        %v1925 = vadd.f32 %v1924, 0.0
        %v1926 = vmul.f32 %v1810, %v1083
        %v1927 = vpack.c.bf16 %v1926, %v1926
        %v1929 = vsel %vm849, %v1927, 0
        %1931 = vmatprep.subr.bf16.mxu0 0
        %1932 = vmatpush1.bf16.xpose.msra.mxu0 %v1821
        %1933 = vmatprep.subr.bf16.mxu0 0
        %1934 = vmatpush1.bf16.xpose.msra.mxu0 0
        %1935 = vmatprep.subr.bf16.mxu0 0
        %1936 = vmatpush1.bf16.xpose.msra.mxu0 0
        %1937 = vmatprep.subr.bf16.mxu0 0
        %1938 = vmatpush1.bf16.xpose.msra.mxu0 0
        %1939 = vmatprep.subr.bf16.mxu0 0
        %1940 = vmatpush1.bf16.xpose.msra.mxu0 0
        %1941 = vmatprep.subr.bf16.mxu0 0
        %1942 = vmatpush1.bf16.xpose.msra.mxu0 0
        %1943 = vmatprep.subr.bf16.mxu0 0
        %1944 = vmatpush1.bf16.xpose.msra.mxu0 0
        %1945 = vmatprep.subr.bf16.mxu0 0
        %1946 = vmatpush1.bf16.xpose.msra.mxu0 0
        %1947 = vmatprep.subr.bf16.mxu0 0
        %1948 = vmatpush1.bf16.xpose.msra.mxu0 0
        %1949 = vmatprep.subr.bf16.mxu0 0
        %1950 = vmatpush1.bf16.xpose.msra.mxu0 0
        %1951 = vmatprep.subr.bf16.mxu0 0
        %1952 = vmatpush1.bf16.xpose.msra.mxu0 0
        %1953 = vmatprep.subr.bf16.mxu0 0
        %1954 = vmatpush1.bf16.xpose.msra.mxu0 0
        %1955 = vmatprep.subr.bf16.mxu0 0
        %1956 = vmatpush1.bf16.xpose.msra.mxu0 0
        %1957 = vmatprep.subr.bf16.mxu0 0
        %1958 = vmatpush1.bf16.xpose.msra.mxu0 0
        %1959 = vmatprep.subr.bf16.mxu0 0
        %1960 = vmatpush1.bf16.xpose.msra.mxu0 0
        %1961 = vmatprep.subr.bf16.mxu0 0
        %1962 = vmatpush1.bf16.xpose.msra.mxu0 0
        %1963 = vmatprep.mubr.bf16.mxu0 0
        %1964 = vmatmul.mubr.bf16.gmra.mrb[0].mxu0 %v1929
        %v1965 = vpop.f32.mrb[0].mxu0
        %v1966 = vadd.f32 0.0, %v1965
        %v1967 = vpop.f32.mrb[0].mxu0
        %v1968 = vpop.f32.mrb[0].mxu0
        %v1969 = vpop.f32.mrb[0].mxu0
        %1970 = vdwg.mxu0
        %v1971 = vmul.f32 %v1966, 0.35355338
        %v1972 = vsel %vm1011, %v1971, -inf
        %1973 = vmax.xlane.f32.xlu0 %v1972
        %v1974 = vpop.xlane.xlu0 %1973
        %v1975 = vsub.f32 %v1971, %v1974
        %v1976 = vmul.f32 %v1975, 1.442695
        %v1977 = vpow.pop %v1976
        %v1978 = vsel %vm1011, %v1977, 0.0
        %1979 = vadd.xlane.f32.xlu0 %v1978
        %v1980 = vpop.xlane.xlu0 %1979
        %v1981 = vrcp.pop %v1980
        %v1982 = vmul.f32 %v1977, %v1981
        %v1983 = vpack.c.bf16 %v1982, %v1982
        %v1985 = vsel %vm1026, %v1983, 0
        %1987 = vmatprep.subr.bf16.mxu0 0
        %1988 = vmatpush1.bf16.msra.mxu0 %v1882
        %1989 = vmatprep.subr.bf16.mxu0 0
        %1990 = vmatpush1.bf16.msra.mxu0 0
        %1991 = vmatprep.subr.bf16.mxu0 0
        %1992 = vmatpush1.bf16.msra.mxu0 0
        %1993 = vmatprep.subr.bf16.mxu0 0
        %1994 = vmatpush1.bf16.msra.mxu0 0
        %1995 = vmatprep.subr.bf16.mxu0 0
        %1996 = vmatpush1.bf16.msra.mxu0 0
        %1997 = vmatprep.subr.bf16.mxu0 0
        %1998 = vmatpush1.bf16.msra.mxu0 0
        %1999 = vmatprep.subr.bf16.mxu0 0
        %2000 = vmatpush1.bf16.msra.mxu0 0
        %2001 = vmatprep.subr.bf16.mxu0 0
        %2002 = vmatpush1.bf16.msra.mxu0 0
        %2003 = vmatprep.subr.bf16.mxu0 0
        %2004 = vmatpush1.bf16.msra.mxu0 0
        %2005 = vmatprep.subr.bf16.mxu0 0
        %2006 = vmatpush1.bf16.msra.mxu0 0
        %2007 = vmatprep.subr.bf16.mxu0 0
        %2008 = vmatpush1.bf16.msra.mxu0 0
        %2009 = vmatprep.subr.bf16.mxu0 0
        %2010 = vmatpush1.bf16.msra.mxu0 0
        %2011 = vmatprep.subr.bf16.mxu0 0
        %2012 = vmatpush1.bf16.msra.mxu0 0
        %2013 = vmatprep.subr.bf16.mxu0 0
        %2014 = vmatpush1.bf16.msra.mxu0 0
        %2015 = vmatprep.subr.bf16.mxu0 0
        %2016 = vmatpush1.bf16.msra.mxu0 0
        %2017 = vmatprep.subr.bf16.mxu0 0
        %2018 = vmatpush1.bf16.msra.mxu0 0
        %2019 = vmatprep.mubr.bf16.mxu0 0
        %2020 = vmatmul.mubr.bf16.gmra.mrb[0].mxu0 %v1985
        %v2021 = vpop.f32.mrb[0].mxu0
        %v2022 = vadd.f32 0.0, %v2021
        %v2023 = vpop.f32.mrb[0].mxu0
        %v2024 = vpop.f32.mrb[0].mxu0
        %v2025 = vpop.f32.mrb[0].mxu0
        %2026 = vdwg.mxu0
        %v2027 = vmul.f32 %v2022, %v1083
        %v2028 = vadd.f32 %v1925, %v2027
        %v2029 = vmul.f32 %v1810, %v1191
        %v2030 = vpack.c.bf16 %v2029, %v2029
        %v2032 = vsel %vm849, %v2030, 0
        %2034 = vmatprep.subr.bf16.mxu0 0
        %2035 = vmatpush1.bf16.xpose.msra.mxu0 %v1821
        %2036 = vmatprep.subr.bf16.mxu0 0
        %2037 = vmatpush1.bf16.xpose.msra.mxu0 0
        %2038 = vmatprep.subr.bf16.mxu0 0
        %2039 = vmatpush1.bf16.xpose.msra.mxu0 0
        %2040 = vmatprep.subr.bf16.mxu0 0
        %2041 = vmatpush1.bf16.xpose.msra.mxu0 0
        %2042 = vmatprep.subr.bf16.mxu0 0
        %2043 = vmatpush1.bf16.xpose.msra.mxu0 0
        %2044 = vmatprep.subr.bf16.mxu0 0
        %2045 = vmatpush1.bf16.xpose.msra.mxu0 0
        %2046 = vmatprep.subr.bf16.mxu0 0
        %2047 = vmatpush1.bf16.xpose.msra.mxu0 0
        %2048 = vmatprep.subr.bf16.mxu0 0
        %2049 = vmatpush1.bf16.xpose.msra.mxu0 0
        %2050 = vmatprep.subr.bf16.mxu0 0
        %2051 = vmatpush1.bf16.xpose.msra.mxu0 0
        %2052 = vmatprep.subr.bf16.mxu0 0
        %2053 = vmatpush1.bf16.xpose.msra.mxu0 0
        %2054 = vmatprep.subr.bf16.mxu0 0
        %2055 = vmatpush1.bf16.xpose.msra.mxu0 0
        %2056 = vmatprep.subr.bf16.mxu0 0
        %2057 = vmatpush1.bf16.xpose.msra.mxu0 0
        %2058 = vmatprep.subr.bf16.mxu0 0
        %2059 = vmatpush1.bf16.xpose.msra.mxu0 0
        %2060 = vmatprep.subr.bf16.mxu0 0
        %2061 = vmatpush1.bf16.xpose.msra.mxu0 0
        %2062 = vmatprep.subr.bf16.mxu0 0
        %2063 = vmatpush1.bf16.xpose.msra.mxu0 0
        %2064 = vmatprep.subr.bf16.mxu0 0
        %2065 = vmatpush1.bf16.xpose.msra.mxu0 0
        %2066 = vmatprep.mubr.bf16.mxu0 0
        %2067 = vmatmul.mubr.bf16.gmra.mrb[0].mxu0 %v2032
        %v2068 = vpop.f32.mrb[0].mxu0
        %v2069 = vadd.f32 0.0, %v2068
        %v2070 = vpop.f32.mrb[0].mxu0
        %v2071 = vpop.f32.mrb[0].mxu0
        %v2072 = vpop.f32.mrb[0].mxu0
        %2073 = vdwg.mxu0
        %v2074 = vmul.f32 %v2069, 0.35355338
        %v2075 = vsel %vm1011, %v2074, -inf
        %2076 = vmax.xlane.f32.xlu0 %v2075
        %v2077 = vpop.xlane.xlu0 %2076
        %v2078 = vsub.f32 %v2074, %v2077
        %v2079 = vmul.f32 %v2078, 1.442695
        %v2080 = vpow.pop %v2079
        %v2081 = vsel %vm1011, %v2080, 0.0
        %2082 = vadd.xlane.f32.xlu0 %v2081
        %v2083 = vpop.xlane.xlu0 %2082
        %v2084 = vrcp.pop %v2083
        %v2085 = vmul.f32 %v2080, %v2084
        %v2086 = vpack.c.bf16 %v2085, %v2085
        %v2088 = vsel %vm1026, %v2086, 0
        %2090 = vmatprep.subr.bf16.mxu0 0
        %2091 = vmatpush1.bf16.msra.mxu0 %v1882
        %2092 = vmatprep.subr.bf16.mxu0 0
        %2093 = vmatpush1.bf16.msra.mxu0 0
        %2094 = vmatprep.subr.bf16.mxu0 0
        %2095 = vmatpush1.bf16.msra.mxu0 0
        %2096 = vmatprep.subr.bf16.mxu0 0
        %2097 = vmatpush1.bf16.msra.mxu0 0
        %2098 = vmatprep.subr.bf16.mxu0 0
        %2099 = vmatpush1.bf16.msra.mxu0 0
        %2100 = vmatprep.subr.bf16.mxu0 0
        %2101 = vmatpush1.bf16.msra.mxu0 0
        %2102 = vmatprep.subr.bf16.mxu0 0
        %2103 = vmatpush1.bf16.msra.mxu0 0
        %2104 = vmatprep.subr.bf16.mxu0 0
        %2105 = vmatpush1.bf16.msra.mxu0 0
        %2106 = vmatprep.subr.bf16.mxu0 0
        %2107 = vmatpush1.bf16.msra.mxu0 0
        %2108 = vmatprep.subr.bf16.mxu0 0
        %2109 = vmatpush1.bf16.msra.mxu0 0
        %2110 = vmatprep.subr.bf16.mxu0 0
        %2111 = vmatpush1.bf16.msra.mxu0 0
        %2112 = vmatprep.subr.bf16.mxu0 0
        %2113 = vmatpush1.bf16.msra.mxu0 0
        %2114 = vmatprep.subr.bf16.mxu0 0
        %2115 = vmatpush1.bf16.msra.mxu0 0
        %2116 = vmatprep.subr.bf16.mxu0 0
        %2117 = vmatpush1.bf16.msra.mxu0 0
        %2118 = vmatprep.subr.bf16.mxu0 0
        %2119 = vmatpush1.bf16.msra.mxu0 0
        %2120 = vmatprep.subr.bf16.mxu0 0
        %2121 = vmatpush1.bf16.msra.mxu0 0
        %2122 = vmatprep.mubr.bf16.mxu0 0
        %2123 = vmatmul.mubr.bf16.gmra.mrb[0].mxu0 %v2088
        %v2124 = vpop.f32.mrb[0].mxu0
        %v2125 = vadd.f32 0.0, %v2124
        %v2126 = vpop.f32.mrb[0].mxu0
        %v2127 = vpop.f32.mrb[0].mxu0
        %v2128 = vpop.f32.mrb[0].mxu0
        %2129 = vdwg.mxu0
        %v2130 = vmul.f32 %v2125, %v1191
        %v2131 = vadd.f32 %v2028, %v2130
        %v2132 = vmul.f32 %v1810, %v1299
        %v2133 = vpack.c.bf16 %v2132, %v2132
        %v2135 = vsel %vm849, %v2133, 0
        %2137 = vmatprep.subr.bf16.mxu0 0
        %2138 = vmatpush1.bf16.xpose.msra.mxu0 %v1821
        %2139 = vmatprep.subr.bf16.mxu0 0
        %2140 = vmatpush1.bf16.xpose.msra.mxu0 0
        %2141 = vmatprep.subr.bf16.mxu0 0
        %2142 = vmatpush1.bf16.xpose.msra.mxu0 0
        %2143 = vmatprep.subr.bf16.mxu0 0
        %2144 = vmatpush1.bf16.xpose.msra.mxu0 0
        %2145 = vmatprep.subr.bf16.mxu0 0
        %2146 = vmatpush1.bf16.xpose.msra.mxu0 0
        %2147 = vmatprep.subr.bf16.mxu0 0
        %2148 = vmatpush1.bf16.xpose.msra.mxu0 0
        %2149 = vmatprep.subr.bf16.mxu0 0
        %2150 = vmatpush1.bf16.xpose.msra.mxu0 0
        %2151 = vmatprep.subr.bf16.mxu0 0
        %2152 = vmatpush1.bf16.xpose.msra.mxu0 0
        %2153 = vmatprep.subr.bf16.mxu0 0
        %2154 = vmatpush1.bf16.xpose.msra.mxu0 0
        %2155 = vmatprep.subr.bf16.mxu0 0
        %2156 = vmatpush1.bf16.xpose.msra.mxu0 0
        %2157 = vmatprep.subr.bf16.mxu0 0
        %2158 = vmatpush1.bf16.xpose.msra.mxu0 0
        %2159 = vmatprep.subr.bf16.mxu0 0
        %2160 = vmatpush1.bf16.xpose.msra.mxu0 0
        %2161 = vmatprep.subr.bf16.mxu0 0
        %2162 = vmatpush1.bf16.xpose.msra.mxu0 0
        %2163 = vmatprep.subr.bf16.mxu0 0
        %2164 = vmatpush1.bf16.xpose.msra.mxu0 0
        %2165 = vmatprep.subr.bf16.mxu0 0
        %2166 = vmatpush1.bf16.xpose.msra.mxu0 0
        %2167 = vmatprep.subr.bf16.mxu0 0
        %2168 = vmatpush1.bf16.xpose.msra.mxu0 0
        %2169 = vmatprep.mubr.bf16.mxu0 0
        %2170 = vmatmul.mubr.bf16.gmra.mrb[0].mxu0 %v2135
        %v2171 = vpop.f32.mrb[0].mxu0
        %v2172 = vadd.f32 0.0, %v2171
        %v2173 = vpop.f32.mrb[0].mxu0
        %v2174 = vpop.f32.mrb[0].mxu0
        %v2175 = vpop.f32.mrb[0].mxu0
        %2176 = vdwg.mxu0
        %v2177 = vmul.f32 %v2172, 0.35355338
        %v2178 = vsel %vm1011, %v2177, -inf
        %2179 = vmax.xlane.f32.xlu0 %v2178
        %v2180 = vpop.xlane.xlu0 %2179
        %v2181 = vsub.f32 %v2177, %v2180
        %v2182 = vmul.f32 %v2181, 1.442695
        %v2183 = vpow.pop %v2182
        %v2184 = vsel %vm1011, %v2183, 0.0
        %2185 = vadd.xlane.f32.xlu0 %v2184
        %v2186 = vpop.xlane.xlu0 %2185
        %v2187 = vrcp.pop %v2186
        %v2188 = vmul.f32 %v2183, %v2187
        %v2189 = vpack.c.bf16 %v2188, %v2188
        %v2191 = vsel %vm1026, %v2189, 0
        %2193 = vmatprep.subr.bf16.mxu0 0
        %2194 = vmatpush1.bf16.msra.mxu0 %v1882
        %2195 = vmatprep.subr.bf16.mxu0 0
        %2196 = vmatpush1.bf16.msra.mxu0 0
        %2197 = vmatprep.subr.bf16.mxu0 0
        %2198 = vmatpush1.bf16.msra.mxu0 0
        %2199 = vmatprep.subr.bf16.mxu0 0
        %2200 = vmatpush1.bf16.msra.mxu0 0
        %2201 = vmatprep.subr.bf16.mxu0 0
        %2202 = vmatpush1.bf16.msra.mxu0 0
        %2203 = vmatprep.subr.bf16.mxu0 0
        %2204 = vmatpush1.bf16.msra.mxu0 0
        %2205 = vmatprep.subr.bf16.mxu0 0
        %2206 = vmatpush1.bf16.msra.mxu0 0
        %2207 = vmatprep.subr.bf16.mxu0 0
        %2208 = vmatpush1.bf16.msra.mxu0 0
        %2209 = vmatprep.subr.bf16.mxu0 0
        %2210 = vmatpush1.bf16.msra.mxu0 0
        %2211 = vmatprep.subr.bf16.mxu0 0
        %2212 = vmatpush1.bf16.msra.mxu0 0
        %2213 = vmatprep.subr.bf16.mxu0 0
        %2214 = vmatpush1.bf16.msra.mxu0 0
        %2215 = vmatprep.subr.bf16.mxu0 0
        %2216 = vmatpush1.bf16.msra.mxu0 0
        %2217 = vmatprep.subr.bf16.mxu0 0
        %2218 = vmatpush1.bf16.msra.mxu0 0
        %2219 = vmatprep.subr.bf16.mxu0 0
        %2220 = vmatpush1.bf16.msra.mxu0 0
        %2221 = vmatprep.subr.bf16.mxu0 0
        %2222 = vmatpush1.bf16.msra.mxu0 0
        %2223 = vmatprep.subr.bf16.mxu0 0
        %2224 = vmatpush1.bf16.msra.mxu0 0
        %2225 = vmatprep.mubr.bf16.mxu0 0
        %2226 = vmatmul.mubr.bf16.gmra.mrb[0].mxu0 %v2191
        %v2227 = vpop.f32.mrb[0].mxu0
        %v2228 = vadd.f32 0.0, %v2227
        %v2229 = vpop.f32.mrb[0].mxu0
        %v2230 = vpop.f32.mrb[0].mxu0
        %v2231 = vpop.f32.mrb[0].mxu0
        %2232 = vdwg.mxu0
        %v2233 = vmul.f32 %v2228, %v1299
        %v2234 = vadd.f32 %v2131, %v2233
        %s2235 = scalar_lea.vmem [#allocation7], 1
        %v2236 = vld [vmem:[%s2235] sm:$0x1]
        %s2237 = scalar_lea.vmem %s5, 64
        %v2238 = vld [vmem:[%s2237] sm:$0xff]
        %v2239 = vld [vmem:[%s2237 + $0x8] sm:$0xff]
        %v2240 = vld [vmem:[%s2237 + $0x10] sm:$0xff]
        %v2241 = vld [vmem:[%s2237 + $0x18] sm:$0xff]
        %v2242 = vpack.c.bf16 %v2234, %v2234
        %v2243 = vpack.c.bf16 %v2239, %v2238
        %v2244 = vpack.c.bf16 %v2241, %v2240
        %v2246 = vsel %vm849, %v2242, 0
        %2248 = vmatprep.subr.bf16.mxu0 0
        %2249 = vmatpush1.bf16.msra.mxu0 %v2243
        %2250 = vmatprep.subr.bf16.mxu0 0
        %2251 = vmatpush1.bf16.msra.mxu0 %v2244
        %2252 = vmatprep.subr.bf16.mxu0 0
        %2253 = vmatpush1.bf16.msra.mxu0 0
        %2254 = vmatprep.subr.bf16.mxu0 0
        %2255 = vmatpush1.bf16.msra.mxu0 0
        %2256 = vmatprep.subr.bf16.mxu0 0
        %2257 = vmatpush1.bf16.msra.mxu0 0
        %2258 = vmatprep.subr.bf16.mxu0 0
        %2259 = vmatpush1.bf16.msra.mxu0 0
        %2260 = vmatprep.subr.bf16.mxu0 0
        %2261 = vmatpush1.bf16.msra.mxu0 0
        %2262 = vmatprep.subr.bf16.mxu0 0
        %2263 = vmatpush1.bf16.msra.mxu0 0
        %2264 = vmatprep.subr.bf16.mxu0 0
        %2265 = vmatpush1.bf16.msra.mxu0 0
        %2266 = vmatprep.subr.bf16.mxu0 0
        %2267 = vmatpush1.bf16.msra.mxu0 0
        %2268 = vmatprep.subr.bf16.mxu0 0
        %2269 = vmatpush1.bf16.msra.mxu0 0
        %2270 = vmatprep.subr.bf16.mxu0 0
        %2271 = vmatpush1.bf16.msra.mxu0 0
        %2272 = vmatprep.subr.bf16.mxu0 0
        %2273 = vmatpush1.bf16.msra.mxu0 0
        %2274 = vmatprep.subr.bf16.mxu0 0
        %2275 = vmatpush1.bf16.msra.mxu0 0
        %2276 = vmatprep.subr.bf16.mxu0 0
        %2277 = vmatpush1.bf16.msra.mxu0 0
        %2278 = vmatprep.subr.bf16.mxu0 0
        %2279 = vmatpush1.bf16.msra.mxu0 0
        %2280 = vmatprep.mubr.bf16.mxu0 0
        %2281 = vmatmul.mubr.bf16.gmra.mrb[0].mxu0 %v2246
        %v2282 = vpop.f32.mrb[0].mxu0
        %v2283 = vadd.f32 0.0, %v2282
        %v2284 = vpop.f32.mrb[0].mxu0
        %v2285 = vpop.f32.mrb[0].mxu0
        %v2286 = vpop.f32.mrb[0].mxu0
        %2287 = vdwg.mxu0
        %v2289 = vlaneseq
        %v2290 = vshrl.u32 %v2289, 7
        %v2291 = vsub.s32 0, %v2290
        %v2292 = vrot.slane %v2236, %v2291
        %v2294 = vadd.f32 %v2292, %v2283
        %v2295 = vmul.f32 %v2234, %v2234
        %s2296 = scalar_lea.vmem %s5, 96
        %v2297 = vld [vmem:[%s2296] sm:$0xff]
        %v2298 = vld [vmem:[%s2296 + $0x8] sm:$0xff]
        %v2299 = vld [vmem:[%s2296 + $0x10] sm:$0xff]
        %v2300 = vld [vmem:[%s2296 + $0x18] sm:$0xff]
        %v2301 = vpack.c.bf16 %v2295, %v2295
        %v2302 = vpack.c.bf16 %v2298, %v2297
        %v2303 = vpack.c.bf16 %v2300, %v2299
        %v2305 = vsel %vm849, %v2301, 0
        %2307 = vmatprep.subr.bf16.mxu0 0
        %2308 = vmatpush1.bf16.msra.mxu0 %v2302
        %2309 = vmatprep.subr.bf16.mxu0 0
        %2310 = vmatpush1.bf16.msra.mxu0 %v2303
        %2311 = vmatprep.subr.bf16.mxu0 0
        %2312 = vmatpush1.bf16.msra.mxu0 0
        %2313 = vmatprep.subr.bf16.mxu0 0
        %2314 = vmatpush1.bf16.msra.mxu0 0
        %2315 = vmatprep.subr.bf16.mxu0 0
        %2316 = vmatpush1.bf16.msra.mxu0 0
        %2317 = vmatprep.subr.bf16.mxu0 0
        %2318 = vmatpush1.bf16.msra.mxu0 0
        %2319 = vmatprep.subr.bf16.mxu0 0
        %2320 = vmatpush1.bf16.msra.mxu0 0
        %2321 = vmatprep.subr.bf16.mxu0 0
        %2322 = vmatpush1.bf16.msra.mxu0 0
        %2323 = vmatprep.subr.bf16.mxu0 0
        %2324 = vmatpush1.bf16.msra.mxu0 0
        %2325 = vmatprep.subr.bf16.mxu0 0
        %2326 = vmatpush1.bf16.msra.mxu0 0
        %2327 = vmatprep.subr.bf16.mxu0 0
        %2328 = vmatpush1.bf16.msra.mxu0 0
        %2329 = vmatprep.subr.bf16.mxu0 0
        %2330 = vmatpush1.bf16.msra.mxu0 0
        %2331 = vmatprep.subr.bf16.mxu0 0
        %2332 = vmatpush1.bf16.msra.mxu0 0
        %2333 = vmatprep.subr.bf16.mxu0 0
        %2334 = vmatpush1.bf16.msra.mxu0 0
        %2335 = vmatprep.subr.bf16.mxu0 0
        %2336 = vmatpush1.bf16.msra.mxu0 0
        %2337 = vmatprep.subr.bf16.mxu0 0
        %2338 = vmatpush1.bf16.msra.mxu0 0
        %2339 = vmatprep.mubr.bf16.mxu0 0
        %2340 = vmatmul.mubr.bf16.gmra.mrb[0].mxu0 %v2305
        %v2341 = vpop.f32.mrb[0].mxu0
        %v2342 = vadd.f32 0.0, %v2341
        %v2343 = vpop.f32.mrb[0].mxu0
        %v2344 = vpop.f32.mrb[0].mxu0
        %v2345 = vpop.f32.mrb[0].mxu0
        %2346 = vdwg.mxu0
        %v2347 = vadd.f32 %v2294, %v2342
        %v2348 = vadd.f32 %v1697, %v2347
        %s2349 = scalar_lea.vmem [#allocation13], 1
        %v2350 = vld [vmem:[%s2349] sm:$0x1]
        %s2351 = scalar_lea.vmem [#allocation14], 1
        %v2352 = vld [vmem:[%s2351] sm:$0x1]
        %v2353 = vsel %vm1517, %v2348, 0.0
        %2354 = vadd.xlane.f32.xlu0 %v2353
        %v2355 = vpop.xlane.xlu0 %2354
        %v2356 = vmul.f32 %v2355, %v1521
        %v2357 = vsub.f32 %v2348, %v2356
        %v2358 = vmul.f32 %v2357, %v2357
        %v2359 = vsel %vm1517, %v2358, 0.0
        %2360 = vadd.xlane.f32.xlu0 %v2359
        %v2361 = vpop.xlane.xlu0 %2360
        %v2362 = vmul.f32 %v2361, %v1521
        %v2363 = vadd.f32 %v2362, 1e-05
        %v2364 = vrsqrt.pop %v2363
        %v2365 = vmul.f32 %v2357, %v2364
        %v2367 = vlaneseq
        %v2368 = vshrl.u32 %v2367, 7
        %v2369 = vsub.s32 0, %v2368
        %v2370 = vrot.slane %v2350, %v2369
        %v2372 = vmul.f32 %v2365, %v2370
        %v2374 = vlaneseq
        %v2375 = vshrl.u32 %v2374, 7
        %v2376 = vsub.s32 0, %v2375
        %v2377 = vrot.slane %v2352, %v2376
        %v2379 = vadd.f32 %v2372, %v2377
        %s2380 = scalar_lea.vmem [#allocation8], 32
        %v2381 = vld [vmem:[%s2380] sm:$0xff]
        %v2382 = vld [vmem:[%s2380 + $0x8] sm:$0xff]
        %v2383 = vld [vmem:[%s2380 + $0x10] sm:$0xff]
        %v2384 = vld [vmem:[%s2380 + $0x18] sm:$0xff]
        %v2385 = vpack.c.bf16 %v2379, %v2379
        %v2386 = vpack.c.bf16 %v2382, %v2381
        %v2387 = vpack.c.bf16 %v2384, %v2383
        %s2388 = scalar_lea.vmem [#allocation10], 1
        %v2389 = vld [vmem:[%s2388] sm:$0x1]
        %v2391 = vlaneseq
        %v2392 = vshrl.u32 %v2391, 7
        %v2393 = vsub.s32 0, %v2392
        %v2394 = vrot.slane %v2389, %v2393
        %v2397 = vsel %vm849, %v2385, 0
        %2399 = vmatprep.subr.bf16.mxu0 0
        %2400 = vmatpush1.bf16.msra.mxu0 %v2386
        %2401 = vmatprep.subr.bf16.mxu0 0
        %2402 = vmatpush1.bf16.msra.mxu0 %v2387
        %2403 = vmatprep.subr.bf16.mxu0 0
        %2404 = vmatpush1.bf16.msra.mxu0 0
        %2405 = vmatprep.subr.bf16.mxu0 0
        %2406 = vmatpush1.bf16.msra.mxu0 0
        %2407 = vmatprep.subr.bf16.mxu0 0
        %2408 = vmatpush1.bf16.msra.mxu0 0
        %2409 = vmatprep.subr.bf16.mxu0 0
        %2410 = vmatpush1.bf16.msra.mxu0 0
        %2411 = vmatprep.subr.bf16.mxu0 0
        %2412 = vmatpush1.bf16.msra.mxu0 0
        %2413 = vmatprep.subr.bf16.mxu0 0
        %2414 = vmatpush1.bf16.msra.mxu0 0
        %2415 = vmatprep.subr.bf16.mxu0 0
        %2416 = vmatpush1.bf16.msra.mxu0 0
        %2417 = vmatprep.subr.bf16.mxu0 0
        %2418 = vmatpush1.bf16.msra.mxu0 0
        %2419 = vmatprep.subr.bf16.mxu0 0
        %2420 = vmatpush1.bf16.msra.mxu0 0
        %2421 = vmatprep.subr.bf16.mxu0 0
        %2422 = vmatpush1.bf16.msra.mxu0 0
        %2423 = vmatprep.subr.bf16.mxu0 0
        %2424 = vmatpush1.bf16.msra.mxu0 0
        %2425 = vmatprep.subr.bf16.mxu0 0
        %2426 = vmatpush1.bf16.msra.mxu0 0
        %2427 = vmatprep.subr.bf16.mxu0 0
        %2428 = vmatpush1.bf16.msra.mxu0 0
        %2429 = vmatprep.subr.bf16.mxu0 0
        %2430 = vmatpush1.bf16.msra.mxu0 0
        %2431 = vmatprep.mubr.bf16.mxu0 0
        %2432 = vmatmul.mubr.bf16.gmra.mrb[0].mxu0 %v2397
        %v2433 = vpop.f32.mrb[0].mxu0
        %v2434 = vadd.f32 %v2394, %v2433
        %v2435 = vpop.f32.mrb[0].mxu0
        %v2436 = vpop.f32.mrb[0].mxu0
        %v2437 = vpop.f32.mrb[0].mxu0
        %2438 = vdwg.mxu0
        %v2439 = vmax.f32 %v2434, 0.0
        %s2440 = scalar_lea.vmem %s9, 64
        %v2441 = vld [vmem:[%s2440] sm:$0xff]
        %v2442 = vld [vmem:[%s2440 + $0x8] sm:$0xff]
        %v2443 = vld [vmem:[%s2440 + $0x10] sm:$0xff]
        %v2444 = vld [vmem:[%s2440 + $0x18] sm:$0xff]
        %v2445 = vld [vmem:[%s2440 + $0x20] sm:$0xff]
        %v2446 = vld [vmem:[%s2440 + $0x28] sm:$0xff]
        %v2447 = vld [vmem:[%s2440 + $0x30] sm:$0xff]
        %v2448 = vld [vmem:[%s2440 + $0x38] sm:$0xff]
        %v2449 = vpack.c.bf16 %v2439, %v2439
        %v2450 = vpack.c.bf16 %v2442, %v2441
        %v2451 = vpack.c.bf16 %v2444, %v2443
        %v2452 = vpack.c.bf16 %v2446, %v2445
        %v2453 = vpack.c.bf16 %v2448, %v2447
        %s2454 = scalar_lea.vmem [#allocation11], 1
        %v2455 = vld [vmem:[%s2454] sm:$0x1]
        %v2457 = vlaneseq
        %v2458 = vshrl.u32 %v2457, 7
        %v2459 = vsub.s32 0, %v2458
        %v2460 = vrot.slane %v2455, %v2459
        %v2463 = vsel %vm1624, %v2449, 0
        %2465 = vmatprep.subr.bf16.mxu0 0
        %2466 = vmatpush1.bf16.msra.mxu0 %v2450
        %2467 = vmatprep.subr.bf16.mxu0 0
        %2468 = vmatpush1.bf16.msra.mxu0 %v2451
        %2469 = vmatprep.subr.bf16.mxu0 0
        %2470 = vmatpush1.bf16.msra.mxu0 %v2452
        %2471 = vmatprep.subr.bf16.mxu0 0
        %2472 = vmatpush1.bf16.msra.mxu0 %v2453
        %2473 = vmatprep.subr.bf16.mxu0 0
        %2474 = vmatpush1.bf16.msra.mxu0 0
        %2475 = vmatprep.subr.bf16.mxu0 0
        %2476 = vmatpush1.bf16.msra.mxu0 0
        %2477 = vmatprep.subr.bf16.mxu0 0
        %2478 = vmatpush1.bf16.msra.mxu0 0
        %2479 = vmatprep.subr.bf16.mxu0 0
        %2480 = vmatpush1.bf16.msra.mxu0 0
        %2481 = vmatprep.subr.bf16.mxu0 0
        %2482 = vmatpush1.bf16.msra.mxu0 0
        %2483 = vmatprep.subr.bf16.mxu0 0
        %2484 = vmatpush1.bf16.msra.mxu0 0
        %2485 = vmatprep.subr.bf16.mxu0 0
        %2486 = vmatpush1.bf16.msra.mxu0 0
        %2487 = vmatprep.subr.bf16.mxu0 0
        %2488 = vmatpush1.bf16.msra.mxu0 0
        %2489 = vmatprep.subr.bf16.mxu0 0
        %2490 = vmatpush1.bf16.msra.mxu0 0
        %2491 = vmatprep.subr.bf16.mxu0 0
        %2492 = vmatpush1.bf16.msra.mxu0 0
        %2493 = vmatprep.subr.bf16.mxu0 0
        %2494 = vmatpush1.bf16.msra.mxu0 0
        %2495 = vmatprep.subr.bf16.mxu0 0
        %2496 = vmatpush1.bf16.msra.mxu0 0
        %2497 = vmatprep.mubr.bf16.mxu0 0
        %2498 = vmatmul.mubr.bf16.gmra.mrb[0].mxu0 %v2463
        %v2499 = vpop.f32.mrb[0].mxu0
        %v2500 = vadd.f32 %v2460, %v2499
        %v2501 = vpop.f32.mrb[0].mxu0
        %v2502 = vpop.f32.mrb[0].mxu0
        %v2503 = vpop.f32.mrb[0].mxu0
        %2504 = vdwg.mxu0
        %v2505 = vadd.f32 %v2379, %v2500
        %s2506 = scalar_lea.vmem [#allocation16], 1
        %v2507 = vld [vmem:[%s2506] sm:$0x1]
        %s2508 = scalar_lea.vmem [#allocation17], 1
        %v2509 = vld [vmem:[%s2508] sm:$0x1]
        %v2510 = vsel %vm1517, %v2505, 0.0
        %2511 = vadd.xlane.f32.xlu0 %v2510
        %v2512 = vpop.xlane.xlu0 %2511
        %v2513 = vmul.f32 %v2512, %v1521
        %v2514 = vsub.f32 %v2505, %v2513
        %v2515 = vmul.f32 %v2514, %v2514
        %v2516 = vsel %vm1517, %v2515, 0.0
        %2517 = vadd.xlane.f32.xlu0 %v2516
        %v2518 = vpop.xlane.xlu0 %2517
        %v2519 = vmul.f32 %v2518, %v1521
        %v2520 = vadd.f32 %v2519, 1e-05
        %v2521 = vrsqrt.pop %v2520
        %v2522 = vmul.f32 %v2514, %v2521
        %v2524 = vlaneseq
        %v2525 = vshrl.u32 %v2524, 7
        %v2526 = vsub.s32 0, %v2525
        %v2527 = vrot.slane %v2507, %v2526
        %v2529 = vmul.f32 %v2522, %v2527
        %v2531 = vlaneseq
        %v2532 = vshrl.u32 %v2531, 7
        %v2533 = vsub.s32 0, %v2532
        %v2534 = vrot.slane %v2509, %v2533
        %v2536 = vadd.f32 %v2529, %v2534
        %v2537 = vld [vmem:[%s15] sm:$0x1]
        %v2538 = vld [vmem:[#allocation19] sm:$0x1]
        %v2539 = vsel %vm1517, %v2536, 0.0
        %2540 = vadd.xlane.f32.xlu0 %v2539
        %v2541 = vpop.xlane.xlu0 %2540
        %v2542 = vmul.f32 %v2541, %v1521
        %v2543 = vsub.f32 %v2536, %v2542
        %v2544 = vmul.f32 %v2543, %v2543
        %v2545 = vsel %vm1517, %v2544, 0.0
        %2546 = vadd.xlane.f32.xlu0 %v2545
        %v2547 = vpop.xlane.xlu0 %2546
        %v2548 = vmul.f32 %v2547, %v1521
        %v2549 = vadd.f32 %v2548, 1e-05
        %v2550 = vrsqrt.pop %v2549
        %v2551 = vmul.f32 %v2543, %v2550
        %v2553 = vlaneseq
        %v2554 = vshrl.u32 %v2553, 7
        %v2555 = vsub.s32 0, %v2554
        %v2556 = vrot.slane %v2537, %v2555
        %v2558 = vmul.f32 %v2551, %v2556
        %v2560 = vlaneseq
        %v2561 = vshrl.u32 %v2560, 7
        %v2562 = vsub.s32 0, %v2561
        %v2563 = vrot.slane %v2538, %v2562
        %v2565 = vadd.f32 %v2558, %v2563
        %v2566 = vpack.c.bf16 %v2565, %v2565
        %v2567 = vld [vmem:[%s17] sm:$0xff]
        %v2568 = vpack.c.bf16 %v2567, %v2567
        %v2569 = vld [vmem:[%s18] sm:$0x1]
        %v2571 = vlaneseq
        %v2572 = vshrl.u32 %v2571, 7
        %v2573 = vsub.s32 0, %v2572
        %v2574 = vrot.slane %v2569, %v2573
        %v2577 = vsel %vm849, %v2566, 0
        %v2580 = vsel %vm849, %v2568, 0
        %2582 = vmatprep.subr.bf16.mxu0 0
        %2583 = vmatpush1.bf16.xpose.msra.mxu0 %v2580
        %2584 = vmatprep.subr.bf16.mxu0 0
        %2585 = vmatpush1.bf16.xpose.msra.mxu0 0
        %2586 = vmatprep.subr.bf16.mxu0 0
        %2587 = vmatpush1.bf16.xpose.msra.mxu0 0
        %2588 = vmatprep.subr.bf16.mxu0 0
        %2589 = vmatpush1.bf16.xpose.msra.mxu0 0
        %2590 = vmatprep.subr.bf16.mxu0 0
        %2591 = vmatpush1.bf16.xpose.msra.mxu0 0
        %2592 = vmatprep.subr.bf16.mxu0 0
        %2593 = vmatpush1.bf16.xpose.msra.mxu0 0
        %2594 = vmatprep.subr.bf16.mxu0 0
        %2595 = vmatpush1.bf16.xpose.msra.mxu0 0
        %2596 = vmatprep.subr.bf16.mxu0 0
        %2597 = vmatpush1.bf16.xpose.msra.mxu0 0
        %2598 = vmatprep.subr.bf16.mxu0 0
        %2599 = vmatpush1.bf16.xpose.msra.mxu0 0
        %2600 = vmatprep.subr.bf16.mxu0 0
        %2601 = vmatpush1.bf16.xpose.msra.mxu0 0
        %2602 = vmatprep.subr.bf16.mxu0 0
        %2603 = vmatpush1.bf16.xpose.msra.mxu0 0
        %2604 = vmatprep.subr.bf16.mxu0 0
        %2605 = vmatpush1.bf16.xpose.msra.mxu0 0
        %2606 = vmatprep.subr.bf16.mxu0 0
        %2607 = vmatpush1.bf16.xpose.msra.mxu0 0
        %2608 = vmatprep.subr.bf16.mxu0 0
        %2609 = vmatpush1.bf16.xpose.msra.mxu0 0
        %2610 = vmatprep.subr.bf16.mxu0 0
        %2611 = vmatpush1.bf16.xpose.msra.mxu0 0
        %2612 = vmatprep.subr.bf16.mxu0 0
        %2613 = vmatpush1.bf16.xpose.msra.mxu0 0
        %2614 = vmatprep.mubr.bf16.mxu0 0
        %2615 = vmatmul.mubr.bf16.gmra.mrb[0].mxu0 %v2577
        %v2616 = vpop.f32.mrb[0].mxu0
        %v2617 = vadd.f32 %v2574, %v2616
        %v2618 = vpop.f32.mrb[0].mxu0
        %v2619 = vpop.f32.mrb[0].mxu0
        %v2620 = vpop.f32.mrb[0].mxu0
        %2621 = vdwg.mxu0
        %v2622 = vmul.f32 %v2617, %v775
        %v2623 = vadd.f32 %v2622, %v761
        %vm2624 = vcmask 60416
        %2625 = vst.msk [vmem:[%s749] sm:$0xf] %vm2624, %v2623
        %s2626 = sand.u32 %s451, 1
        %s2627 = scalar_lea.sflag [#allocation4], %s2626
        %s2628 = sand.u32 %s451, 1
        %s2629 = smul.addr %s2628, 4
        %s2630 = scalar_lea.vmem [#allocation20], %s2629
        // Predicated region
        $region141: #{ikransformer_forward.1} parent=95 // pred_check
          %p2631 = pneg %p461
        $region142: #{ikransformer_forward.1} parent=95 // pred_check_branch
          %2633 = sbr.rel (%p2631) target = $region144
        $region143: #{ikransformer_forward.1} parent=95 // pred_region
          %s2635 = ssub.s32 64, 64
          %2636 = vsyncadd %s2627, %s2635
          %s2637 = smul.addr %s39, 64
          %s2638 = scalar_lea.hbm %s19, %s2637
          %s2640 = sshll.u32 %s2630, 4
          %s2641 = int_to_ptr.vmem [resolvable:$true] %s2640
          %2643 = dma.vmem_to_hbm [thread:$0]  %s2641, 64, %s2638, %s2627
        $region144: #{ikransformer_forward.1} parent=95 // pred_fallthru
          _
      $region96: #{ikransformer_forward.1} parent=5 // pred_fallthru
        _
      %p2644 = scmp.le.s32.totalorder 2, %s34
      // Predicated region
      $region145: #{ikransformer_forward.1} parent=5 // pred_check
        %p2645 = pneg %p2644
      $region146: #{ikransformer_forward.1} parent=5 // pred_check_branch
        %2647 = sbr.rel (%p2645) target = $region148
      $region147: #{ikransformer_forward.1} parent=5 // pred_region
        %s2648 = ssub.s32 %s34, 2
        // Predicated region
        $region149: #{ikransformer_forward.1} parent=147 // pred_check
          %p2649 = pneg %p467
        $region150: #{ikransformer_forward.1} parent=147 // pred_check_branch
          %2651 = sbr.rel (%p2649) target = $region152
        $region151: #{ikransformer_forward.1} parent=147 // pred_region
          %s2652 = sand.u32 %s452, 1
          %s2653 = scalar_lea.sflag [#allocation4], %s2652
          %s2654 = sand.u32 %s452, 1
          %s2655 = smul.addr %s2654, 4
          %s2656 = scalar_lea.vmem [#allocation20], %s2655
          %2657 = dma.done %s2653, 64
        $region152: #{ikransformer_forward.1} parent=147 // pred_fallthru
          _
      $region148: #{ikransformer_forward.1} parent=5 // pred_fallthru
        _
    $region6: #{ikransformer_forward.1} parent=1 // loop_footer
      %s38 = sadd.s32 1, %s34
    $region7: #{ikransformer_forward.1} parent=1 // loop_footer_branch
      %33 = sbr.rel target = $region3
    $region8: #{ikransformer_forward.1} parent=1 // loop_exit
      _
    %2658 = vsyncpa [#allocation3], 1
    %s2659 = scalar_lea.sflag [#allocation3], 1
    %2660 = vsyncpa %s2659, 1
    %2661 = vsyncpa [#allocation6], 1
    %2662 = vsyncpa [#allocation9], 1
    %2663 = vsyncpa [#allocation12], 1
    %2664 = vsyncpa [#allocation15], 1
    %2665 = vsyncpa [#allocation18], 1
    %2666 = vsyncpa [#allocation4], 1
    %s2667 = scalar_lea.sflag [#allocation4], 1
    %2668 = vsyncpa %s2667, 1

</llo_original>
